<compile_context>
chip_gen: v7x
topology: tpu7x:2x2x1
jax: 0.10.0
libtpu: 0.0.40
codegen_flags: <defaults>
</compile_context>

<pallas_src>
import functools

import jax
import jax.numpy as jnp
from jax.experimental import pallas as pl
from jax.experimental.pallas import tpu as pltpu


_VMEM_LIMIT = 48 * 1024 * 1024     # headroom on v7x (64 MiB physical VMEM)
_TM_MAX = 512                      # row tile; good middle ground for v5e/v6e/v7x


def _round_up(x, m):
    return (x + m - 1) // m * m


# ---------------------------------------------------------------------------
# Fused matmul + bias + epilogue kernel (MXU), row-tiled over M.
# ---------------------------------------------------------------------------
def _mm_kernel(a_ref, w_ref, b_ref, o_ref, *, epilogue):
    acc = jnp.dot(a_ref[...], w_ref[...], preferred_element_type=jnp.float32)
    acc = acc + b_ref[...]                      # f32 bias broadcast over rows
    if epilogue == "relu":
        acc = jnp.maximum(acc, 0.0)
    elif epilogue == "log_softmax":
        m = jnp.max(acc, axis=-1, keepdims=True)
        s = acc - m
        acc = s - jnp.log(jnp.sum(jnp.exp(s), axis=-1, keepdims=True))
    o_ref[...] = acc.astype(o_ref.dtype)


def matmul_bias(a, w, b, *, epilogue="none", out_dtype=jnp.bfloat16,
                tm_max=_TM_MAX):
    """a: (M, K) bf16, w: (K, N) bf16, b: (1, N) f32 -> (M, N) out_dtype."""
    M, K = a.shape
    Kw, N = w.shape
    assert K == Kw and b.shape == (1, N)

    # Choose a row tile: full (rounded) M if small, else TM_MAX, padding M so
    # the tile divides it exactly (keeps (8,128)/bf16 packing rules trivially).
    Mp = _round_up(M, 16)
    tm = Mp if Mp <= tm_max else tm_max
    Mp = _round_up(M, tm)
    if Mp != M:
        a = jnp.pad(a, ((0, Mp - M), (0, 0)))

    flops = 2 * Mp * K * N
    transcendentals = Mp * N if epilogue == "log_softmax" else 0
    bytes_accessed = (Mp * K * a.dtype.itemsize
                      + K * N * w.dtype.itemsize
                      + N * 4
                      + Mp * N * jnp.dtype(out_dtype).itemsize)

    out = pl.pallas_call(
        functools.partial(_mm_kernel, epilogue=epilogue),
        out_shape=jax.ShapeDtypeStruct((Mp, N), out_dtype),
        grid=(Mp // tm,),
        in_specs=[
            pl.BlockSpec((tm, K), lambda i: (i, 0)),   # activations: tiled rows
            pl.BlockSpec((K, N), lambda i: (0, 0)),    # weights: resident
            pl.BlockSpec((1, N), lambda i: (0, 0)),    # bias: resident
        ],
        out_specs=pl.BlockSpec((tm, N), lambda i: (i, 0)),
        compiler_params=pltpu.CompilerParams(
            dimension_semantics=("parallel",),
            vmem_limit_bytes=_VMEM_LIMIT,
        ),
        cost_estimate=pl.CostEstimate(
            flops=flops,
            transcendentals=transcendentals,
            bytes_accessed=bytes_accessed,
        ),
    )(a, w, b)
    if Mp != M:
        out = out[:M]
    return out


# ---------------------------------------------------------------------------
# Fused 2x2 max-pool kernel.
# Input is viewed (free, row-major) as (N*Ho, 2*W*C): each row holds the two
# input H-rows of one output row.  H-max is a lane-aligned half-row max; W-max
# is an unrolled pairwise max over C-wide chunks (same slicing pattern as RoPE
# half-dim splits).  Output rows are Wo*C wide (multiple of 128 -> dense vst).
# ---------------------------------------------------------------------------
def _pool_kernel(x_ref, o_ref, *, wo, c):
    x = x_ref[...]                                  # (TR, 2*W*C), W = 2*wo
    wc = 2 * wo * c
    h = jnp.maximum(x[:, :wc], x[:, wc:])           # max over the H pair
    cols = [jnp.maximum(h[:, (2 * j) * c:(2 * j + 1) * c],
                        h[:, (2 * j + 1) * c:(2 * j + 2) * c])
            for j in range(wo)]
    o_ref[...] = jnp.concatenate(cols, axis=-1)     # (TR, Wo*C)


def max_pool_2x2(x, *, tr_max=_TM_MAX):
    """x: (N, H, W, C) NHWC, H and W even -> (N, H//2, W//2, C)."""
    n, hh, ww, c = x.shape
    ho, wo = hh // 2, ww // 2
    rows = n * ho
    x2 = x.reshape(rows, 2 * ww * c)                # pure view, no copy

    rp = _round_up(rows, 16)
    tr = rp if rp <= tr_max else tr_max
    rp = _round_up(rows, tr)
    if rp != rows:
        x2 = jnp.pad(x2, ((0, rp - rows), (0, 0)))

    out = pl.pallas_call(
        functools.partial(_pool_kernel, wo=wo, c=c),
        out_shape=jax.ShapeDtypeStruct((rp, wo * c), x.dtype),
        grid=(rp // tr,),
        in_specs=[pl.BlockSpec((tr, 2 * ww * c), lambda i: (i, 0))],
        out_specs=pl.BlockSpec((tr, wo * c), lambda i: (i, 0)),
        compiler_params=pltpu.CompilerParams(
            dimension_semantics=("parallel",),
            vmem_limit_bytes=_VMEM_LIMIT,
        ),
    )(x2)
    if rp != rows:
        out = out[:rows]
    return out.reshape(n, ho, wo, c)


# ---------------------------------------------------------------------------
# JAX glue: im2col (bf16) and conv wrapper
# ---------------------------------------------------------------------------
def im2col_3x3(x):
    """x: (N, H, W, C) -> ((N*(H-2)*(W-2), 9*C), (N, Ho, Wo)).

    Patch index (ki*3 + kj) outer, input channel inner — matches the weight
    matrix built from PyTorch (Cout, Cin, KH, KW) via transpose to
    (KH, KW, Cin, Cout).
    """
    n, hh, ww, c = x.shape
    ho, wo = hh - 2, ww - 2
    patches = [x[:, i:i + ho, j:j + wo, :] for i in range(3) for j in range(3)]
    cols = jnp.stack(patches, axis=3)               # (N, Ho, Wo, 9, C)
    return cols.reshape(n * ho * wo, 9 * c), (n, ho, wo)


def conv3x3_relu(x, w_mat, b):
    """x NHWC bf16; w_mat (9*Cin, Cout) bf16; b (1, Cout) f32. Valid, stride 1."""
    cols, (n, ho, wo) = im2col_3x3(x)
    cout = w_mat.shape[1]
    out = matmul_bias(cols, w_mat, b, epilogue="relu", out_dtype=jnp.bfloat16)
    return out.reshape(n, ho, wo, cout)


# ---------------------------------------------------------------------------
# One-time parameter preparation (hoisted out of the forward pass)
# ---------------------------------------------------------------------------
def prepare_params(params):
    def conv_w(w):
        cout = w.shape[0]
        return jnp.transpose(w, (2, 3, 1, 0)).reshape(-1, cout).astype(jnp.bfloat16)

    def bias(b):
        return b.reshape(1, -1).astype(jnp.float32)

    # fc1: pre-transpose to (2048, 128) and permute rows from NCHW flatten
    # order (c*16 + h*4 + w) to NHWC flatten order (h*512 + w*128 + c) so the
    # activation-side transpose can be dropped.
    wf1_t = params['wf1'].T.reshape(128, 4, 4, 128)            # (Cin, H, W, out)
    wf1_nhwc = jnp.transpose(wf1_t, (1, 2, 0, 3)).reshape(2048, 128)

    return dict(
        w1=conv_w(params['w1']), b1=bias(params['b1']),
        w2=conv_w(params['w2']), b2=bias(params['b2']),
        w3=conv_w(params['w3']), b3=bias(params['b3']),
        w4=conv_w(params['w4']), b4=bias(params['b4']),
        wf1=wf1_nhwc.astype(jnp.bfloat16), bf1=bias(params['bf1']),
        wf2=params['wf2'].T.astype(jnp.bfloat16), bf2=bias(params['bf2']),
    )


# ---------------------------------------------------------------------------
# Net2 forward
# ---------------------------------------------------------------------------
def net2_forward(x_nchw, p):
    x = jnp.transpose(x_nchw, (0, 2, 3, 1)).astype(jnp.bfloat16)  # NCHW -> NHWC
    x = conv3x3_relu(x, p['w1'], p['b1'])                         # (N, 26, 26, 16)
    x = conv3x3_relu(x, p['w2'], p['b2'])                         # (N, 24, 24, 32)
    x = max_pool_2x2(x)                                           # (N, 12, 12, 32)
    x = conv3x3_relu(x, p['w3'], p['b3'])                         # (N, 10, 10, 64)
    x = conv3x3_relu(x, p['w4'], p['b4'])                         # (N,  8,  8, 128)
    x = max_pool_2x2(x)                                           # (N,  4,  4, 128)
    n = x.shape[0]
    x = x.reshape(n, -1)            # NHWC flatten; wf1 rows pre-permuted to match
    x = matmul_bias(x, p['wf1'], p['bf1'],
                    epilogue="relu", out_dtype=jnp.bfloat16)      # (N, 128)
    return matmul_bias(x, p['wf2'], p['bf2'],
                       epilogue="log_softmax", out_dtype=jnp.float32)  # (N, 10)


# ---------------------------------------------------------------------------
# Deterministic parameter init (shapes from Net2.__init__, PyTorch layout)
# ---------------------------------------------------------------------------
def init_params(key):
    ks = jax.random.split(key, 12)

    def nrm(k, shape, scale=0.05):
        return scale * jax.random.normal(k, shape, dtype=jnp.float32)

    return dict(
        w1=nrm(ks[0], (16, 1, 3, 3)),    b1=nrm(ks[1], (16,)),
        w2=nrm(ks[2], (32, 16, 3, 3)),   b2=nrm(ks[3], (32,)),
        w3=nrm(ks[4], (64, 32, 3, 3)),   b3=nrm(ks[5], (64,)),
        w4=nrm(ks[6], (128, 64, 3, 3)),  b4=nrm(ks[7], (128,)),
        wf1=nrm(ks[8], (128, 2048)),     bf1=nrm(ks[9], (128,)),
        wf2=nrm(ks[10], (10, 128)),      bf2=nrm(ks[11], (10,)),
    )


if __name__ == "__main__":
    key = jax.random.PRNGKey(0)
    kx, kp = jax.random.split(key)
    # 28x28 single-channel input is what makes fc1's in_features == 2048.
    x = jax.random.normal(kx, (2, 1, 28, 28), dtype=jnp.float32)
    params = prepare_params(init_params(kp))    # one-time weight prep

    out = jax.jit(net2_forward)(x, params)
    out = jax.block_until_ready(out)
    assert out.shape == (2, 10)
    # log_softmax rows should sum to ~1 in prob space
    assert bool(jnp.all(jnp.abs(jnp.sum(jnp.exp(out), axis=1) - 1.0) < 1e-4))
    print("KERNEL_OK")
</pallas_src>

<mosaic_0001>
module attributes {stable_mosaic.version = 11 : i64} {
  func.func @_mm_kernel(%arg0: i32, %arg1: memref<512x9xbf16, #tpu.memory_space<vmem>>, %arg2: memref<9x16xbf16, #tpu.memory_space<vmem>>, %arg3: memref<1x16xf32, #tpu.memory_space<vmem>>, %arg4: memref<512x16xbf16, #tpu.memory_space<vmem>>) attributes {dimension_semantics = [#tpu.dimension_semantics<parallel>], iteration_bounds = array<i64: 3>, scalar_prefetch = 0 : i64, scratch_operands = 0 : i64, tpu.core_type = #tpu.core_type<tc>, window_params = [{transform_indices = @transform_0, window_bounds = array<i64: 512, 9>}, {pipeline_mode = #tpu.pipeline_mode<synchronous>, transform_indices = @transform_1, window_bounds = array<i64: 9, 16>}, {pipeline_mode = #tpu.pipeline_mode<synchronous>, transform_indices = @transform_2, window_bounds = array<i64: 1, 16>}, {transform_indices = @transform_3, window_bounds = array<i64: 512, 16>}]} {
    %c0 = arith.constant 0 : index
    %c0_0 = arith.constant 0 : index
    %0 = vector.load %arg1[%c0, %c0_0] : memref<512x9xbf16, #tpu.memory_space<vmem>>, vector<512x9xbf16>
    %c0_1 = arith.constant 0 : index
    %c0_2 = arith.constant 0 : index
    %1 = vector.load %arg2[%c0_1, %c0_2] : memref<9x16xbf16, #tpu.memory_space<vmem>>, vector<9x16xbf16>
    %cst = arith.constant dense<0.000000e+00> : vector<512x16xf32>
    %2 = tpu.matmul %0, %1, %cst {dimension_numbers = #tpu.dot_dimension_numbers<[1], [0], [0], [1], [0, 0, 1, 1], [], []>} : vector<512x9xbf16>, vector<9x16xbf16>, vector<512x16xf32> -> vector<512x16xf32>
    %c0_3 = arith.constant 0 : index
    %c0_4 = arith.constant 0 : index
    %3 = vector.load %arg3[%c0_3, %c0_4] : memref<1x16xf32, #tpu.memory_space<vmem>>, vector<1x16xf32>
    %4 = vector.broadcast %3 : vector<1x16xf32> to vector<512x16xf32>
    %5 = arith.addf %2, %4 : vector<512x16xf32>
    %cst_5 = arith.constant 0.000000e+00 : f32
    %6 = vector.broadcast %cst_5 : f32 to vector<512x16xf32>
    %7 = arith.maximumf %5, %6 : vector<512x16xf32>
    %8 = arith.truncf %7 : vector<512x16xf32> to vector<512x16xbf16>
    %c0_6 = arith.constant 0 : index
    %c0_7 = arith.constant 0 : index
    %9 = vector.load %arg4[%c0_6, %c0_7] : memref<512x16xbf16, #tpu.memory_space<vmem>>, vector<512x16xbf16>
    tpu.vector_store %arg4[%c0_6, %c0_7], %8 {strides = array<i32>} : memref<512x16xbf16, #tpu.memory_space<vmem>>, vector<512x16xbf16>,
    return
  }
  func.func @transform_0(%arg0: i32) -> (i32, i32) {
    %c0_i32 = arith.constant 0 : i32
    %c0_i32_0 = arith.constant 0 : i32
    return %arg0, %c0_i32 : i32, i32
  }
  func.func @transform_1(%arg0: i32) -> (i32, i32) {
    %c0_i32 = arith.constant 0 : i32
    %c0_i32_0 = arith.constant 0 : i32
    %c0_i32_1 = arith.constant 0 : i32
    return %c0_i32, %c0_i32_0 : i32, i32
  }
  func.func @transform_2(%arg0: i32) -> (i32, i32) {
    %c0_i32 = arith.constant 0 : i32
    %c0_i32_0 = arith.constant 0 : i32
    %c0_i32_1 = arith.constant 0 : i32
    return %c0_i32, %c0_i32_0 : i32, i32
  }
  func.func @transform_3(%arg0: i32) -> (i32, i32) {
    %c0_i32 = arith.constant 0 : i32
    %c0_i32_0 = arith.constant 0 : i32
    return %arg0, %c0_i32 : i32, i32
  }
}

module attributes {stable_mosaic.version = 11 : i64} {
  func.func @_mm_kernel(%arg0: i32, %arg1: memref<512x144xbf16, #tpu.memory_space<vmem>>, %arg2: memref<144x32xbf16, #tpu.memory_space<vmem>>, %arg3: memref<1x32xf32, #tpu.memory_space<vmem>>, %arg4: memref<512x32xbf16, #tpu.memory_space<vmem>>) attributes {dimension_semantics = [#tpu.dimension_semantics<parallel>], iteration_bounds = array<i64: 3>, scalar_prefetch = 0 : i64, scratch_operands = 0 : i64, tpu.core_type = #tpu.core_type<tc>, window_params = [{transform_indices = @transform_0, window_bounds = array<i64: 512, 144>}, {pipeline_mode = #tpu.pipeline_mode<synchronous>, transform_indices = @transform_1, window_bounds = array<i64: 144, 32>}, {pipeline_mode = #tpu.pipeline_mode<synchronous>, transform_indices = @transform_2, window_bounds = array<i64: 1, 32>}, {transform_indices = @transform_3, window_bounds = array<i64: 512, 32>}]} {
    %c0 = arith.constant 0 : index
    %c0_0 = arith.constant 0 : index
    %0 = vector.load %arg1[%c0, %c0_0] : memref<512x144xbf16, #tpu.memory_space<vmem>>, vector<512x144xbf16>
    %c0_1 = arith.constant 0 : index
    %c0_2 = arith.constant 0 : index
    %1 = vector.load %arg2[%c0_1, %c0_2] : memref<144x32xbf16, #tpu.memory_space<vmem>>, vector<144x32xbf16>
    %cst = arith.constant dense<0.000000e+00> : vector<512x32xf32>
    %2 = tpu.matmul %0, %1, %cst {dimension_numbers = #tpu.dot_dimension_numbers<[1], [0], [0], [1], [0, 0, 1, 1], [], []>} : vector<512x144xbf16>, vector<144x32xbf16>, vector<512x32xf32> -> vector<512x32xf32>
    %c0_3 = arith.constant 0 : index
    %c0_4 = arith.constant 0 : index
    %3 = vector.load %arg3[%c0_3, %c0_4] : memref<1x32xf32, #tpu.memory_space<vmem>>, vector<1x32xf32>
    %4 = vector.broadcast %3 : vector<1x32xf32> to vector<512x32xf32>
    %5 = arith.addf %2, %4 : vector<512x32xf32>
    %cst_5 = arith.constant 0.000000e+00 : f32
    %6 = vector.broadcast %cst_5 : f32 to vector<512x32xf32>
    %7 = arith.maximumf %5, %6 : vector<512x32xf32>
    %8 = arith.truncf %7 : vector<512x32xf32> to vector<512x32xbf16>
    %c0_6 = arith.constant 0 : index
    %c0_7 = arith.constant 0 : index
    %9 = vector.load %arg4[%c0_6, %c0_7] : memref<512x32xbf16, #tpu.memory_space<vmem>>, vector<512x32xbf16>
    tpu.vector_store %arg4[%c0_6, %c0_7], %8 {strides = array<i32>} : memref<512x32xbf16, #tpu.memory_space<vmem>>, vector<512x32xbf16>,
    return
  }
  func.func @transform_0(%arg0: i32) -> (i32, i32) {
    %c0_i32 = arith.constant 0 : i32
    %c0_i32_0 = arith.constant 0 : i32
    return %arg0, %c0_i32 : i32, i32
  }
  func.func @transform_1(%arg0: i32) -> (i32, i32) {
    %c0_i32 = arith.constant 0 : i32
    %c0_i32_0 = arith.constant 0 : i32
    %c0_i32_1 = arith.constant 0 : i32
    return %c0_i32, %c0_i32_0 : i32, i32
  }
  func.func @transform_2(%arg0: i32) -> (i32, i32) {
    %c0_i32 = arith.constant 0 : i32
    %c0_i32_0 = arith.constant 0 : i32
    %c0_i32_1 = arith.constant 0 : i32
    return %c0_i32, %c0_i32_0 : i32, i32
  }
  func.func @transform_3(%arg0: i32) -> (i32, i32) {
    %c0_i32 = arith.constant 0 : i32
    %c0_i32_0 = arith.constant 0 : i32
    return %arg0, %c0_i32 : i32, i32
  }
}

module attributes {stable_mosaic.version = 11 : i64} {
  func.func @_pool_kernel(%arg0: i32, %arg1: memref<32x1536xbf16, #tpu.memory_space<vmem>>, %arg2: memref<32x384xbf16, #tpu.memory_space<vmem>>) attributes {dimension_semantics = [#tpu.dimension_semantics<parallel>], iteration_bounds = array<i64: 1>, scalar_prefetch = 0 : i64, scratch_operands = 0 : i64, tpu.core_type = #tpu.core_type<tc>, window_params = [{transform_indices = @transform_0, window_bounds = array<i64: 32, 1536>}, {transform_indices = @transform_1, window_bounds = array<i64: 32, 384>}]} {
    %c0 = arith.constant 0 : index
    %c0_0 = arith.constant 0 : index
    %0 = vector.load %arg1[%c0, %c0_0] : memref<32x1536xbf16, #tpu.memory_space<vmem>>, vector<32x1536xbf16>
    %1 = vector.extract_strided_slice %0 {offsets = [0, 0], sizes = [32, 768], strides = [1, 1]} : vector<32x1536xbf16> to vector<32x768xbf16>
    %2 = vector.extract_strided_slice %0 {offsets = [0, 768], sizes = [32, 768], strides = [1, 1]} : vector<32x1536xbf16> to vector<32x768xbf16>
    %3 = arith.maximumf %1, %2 : vector<32x768xbf16>
    %4 = vector.extract_strided_slice %3 {offsets = [0, 0], sizes = [32, 32], strides = [1, 1]} : vector<32x768xbf16> to vector<32x32xbf16>
    %5 = vector.extract_strided_slice %3 {offsets = [0, 32], sizes = [32, 32], strides = [1, 1]} : vector<32x768xbf16> to vector<32x32xbf16>
    %6 = arith.maximumf %4, %5 : vector<32x32xbf16>
    %7 = vector.extract_strided_slice %3 {offsets = [0, 64], sizes = [32, 32], strides = [1, 1]} : vector<32x768xbf16> to vector<32x32xbf16>
    %8 = vector.extract_strided_slice %3 {offsets = [0, 96], sizes = [32, 32], strides = [1, 1]} : vector<32x768xbf16> to vector<32x32xbf16>
    %9 = arith.maximumf %7, %8 : vector<32x32xbf16>
    %10 = vector.extract_strided_slice %3 {offsets = [0, 128], sizes = [32, 32], strides = [1, 1]} : vector<32x768xbf16> to vector<32x32xbf16>
    %11 = vector.extract_strided_slice %3 {offsets = [0, 160], sizes = [32, 32], strides = [1, 1]} : vector<32x768xbf16> to vector<32x32xbf16>
    %12 = arith.maximumf %10, %11 : vector<32x32xbf16>
    %13 = vector.extract_strided_slice %3 {offsets = [0, 192], sizes = [32, 32], strides = [1, 1]} : vector<32x768xbf16> to vector<32x32xbf16>
    %14 = vector.extract_strided_slice %3 {offsets = [0, 224], sizes = [32, 32], strides = [1, 1]} : vector<32x768xbf16> to vector<32x32xbf16>
    %15 = arith.maximumf %13, %14 : vector<32x32xbf16>
    %16 = vector.extract_strided_slice %3 {offsets = [0, 256], sizes = [32, 32], strides = [1, 1]} : vector<32x768xbf16> to vector<32x32xbf16>
    %17 = vector.extract_strided_slice %3 {offsets = [0, 288], sizes = [32, 32], strides = [1, 1]} : vector<32x768xbf16> to vector<32x32xbf16>
    %18 = arith.maximumf %16, %17 : vector<32x32xbf16>
    %19 = vector.extract_strided_slice %3 {offsets = [0, 320], sizes = [32, 32], strides = [1, 1]} : vector<32x768xbf16> to vector<32x32xbf16>
    %20 = vector.extract_strided_slice %3 {offsets = [0, 352], sizes = [32, 32], strides = [1, 1]} : vector<32x768xbf16> to vector<32x32xbf16>
    %21 = arith.maximumf %19, %20 : vector<32x32xbf16>
    %22 = vector.extract_strided_slice %3 {offsets = [0, 384], sizes = [32, 32], strides = [1, 1]} : vector<32x768xbf16> to vector<32x32xbf16>
    %23 = vector.extract_strided_slice %3 {offsets = [0, 416], sizes = [32, 32], strides = [1, 1]} : vector<32x768xbf16> to vector<32x32xbf16>
    %24 = arith.maximumf %22, %23 : vector<32x32xbf16>
    %25 = vector.extract_strided_slice %3 {offsets = [0, 448], sizes = [32, 32], strides = [1, 1]} : vector<32x768xbf16> to vector<32x32xbf16>
    %26 = vector.extract_strided_slice %3 {offsets = [0, 480], sizes = [32, 32], strides = [1, 1]} : vector<32x768xbf16> to vector<32x32xbf16>
    %27 = arith.maximumf %25, %26 : vector<32x32xbf16>
    %28 = vector.extract_strided_slice %3 {offsets = [0, 512], sizes = [32, 32], strides = [1, 1]} : vector<32x768xbf16> to vector<32x32xbf16>
    %29 = vector.extract_strided_slice %3 {offsets = [0, 544], sizes = [32, 32], strides = [1, 1]} : vector<32x768xbf16> to vector<32x32xbf16>
    %30 = arith.maximumf %28, %29 : vector<32x32xbf16>
    %31 = vector.extract_strided_slice %3 {offsets = [0, 576], sizes = [32, 32], strides = [1, 1]} : vector<32x768xbf16> to vector<32x32xbf16>
    %32 = vector.extract_strided_slice %3 {offsets = [0, 608], sizes = [32, 32], strides = [1, 1]} : vector<32x768xbf16> to vector<32x32xbf16>
    %33 = arith.maximumf %31, %32 : vector<32x32xbf16>
    %34 = vector.extract_strided_slice %3 {offsets = [0, 640], sizes = [32, 32], strides = [1, 1]} : vector<32x768xbf16> to vector<32x32xbf16>
    %35 = vector.extract_strided_slice %3 {offsets = [0, 672], sizes = [32, 32], strides = [1, 1]} : vector<32x768xbf16> to vector<32x32xbf16>
    %36 = arith.maximumf %34, %35 : vector<32x32xbf16>
    %37 = vector.extract_strided_slice %3 {offsets = [0, 704], sizes = [32, 32], strides = [1, 1]} : vector<32x768xbf16> to vector<32x32xbf16>
    %38 = vector.extract_strided_slice %3 {offsets = [0, 736], sizes = [32, 32], strides = [1, 1]} : vector<32x768xbf16> to vector<32x32xbf16>
    %39 = arith.maximumf %37, %38 : vector<32x32xbf16>
    %40 = tpu.concatenate %6, %9, %12, %15, %18, %21, %24, %27, %30, %33, %36, %39 in 1 : vector<32x32xbf16>, vector<32x32xbf16>, vector<32x32xbf16>, vector<32x32xbf16>, vector<32x32xbf16>, vector<32x32xbf16>, vector<32x32xbf16>, vector<32x32xbf16>, vector<32x32xbf16>, vector<32x32xbf16>, vector<32x32xbf16>, vector<32x32xbf16> -> vector<32x384xbf16>
    %c0_1 = arith.constant 0 : index
    %c0_2 = arith.constant 0 : index
    %41 = vector.load %arg2[%c0_1, %c0_2] : memref<32x384xbf16, #tpu.memory_space<vmem>>, vector<32x384xbf16>
    tpu.vector_store %arg2[%c0_1, %c0_2], %40 {strides = array<i32>} : memref<32x384xbf16, #tpu.memory_space<vmem>>, vector<32x384xbf16>,
    return
  }
  func.func @transform_0(%arg0: i32) -> (i32, i32) {
    %c0_i32 = arith.constant 0 : i32
    %c0_i32_0 = arith.constant 0 : i32
    return %arg0, %c0_i32 : i32, i32
  }
  func.func @transform_1(%arg0: i32) -> (i32, i32) {
    %c0_i32 = arith.constant 0 : i32
    %c0_i32_0 = arith.constant 0 : i32
    return %arg0, %c0_i32 : i32, i32
  }
}

module attributes {stable_mosaic.version = 11 : i64} {
  func.func @_mm_kernel(%arg0: i32, %arg1: memref<208x288xbf16, #tpu.memory_space<vmem>>, %arg2: memref<288x64xbf16, #tpu.memory_space<vmem>>, %arg3: memref<1x64xf32, #tpu.memory_space<vmem>>, %arg4: memref<208x64xbf16, #tpu.memory_space<vmem>>) attributes {dimension_semantics = [#tpu.dimension_semantics<parallel>], iteration_bounds = array<i64: 1>, scalar_prefetch = 0 : i64, scratch_operands = 0 : i64, tpu.core_type = #tpu.core_type<tc>, window_params = [{transform_indices = @transform_0, window_bounds = array<i64: 208, 288>}, {pipeline_mode = #tpu.pipeline_mode<synchronous>, transform_indices = @transform_1, window_bounds = array<i64: 288, 64>}, {pipeline_mode = #tpu.pipeline_mode<synchronous>, transform_indices = @transform_2, window_bounds = array<i64: 1, 64>}, {transform_indices = @transform_3, window_bounds = array<i64: 208, 64>}]} {
    %c0 = arith.constant 0 : index
    %c0_0 = arith.constant 0 : index
    %0 = vector.load %arg1[%c0, %c0_0] : memref<208x288xbf16, #tpu.memory_space<vmem>>, vector<208x288xbf16>
    %c0_1 = arith.constant 0 : index
    %c0_2 = arith.constant 0 : index
    %1 = vector.load %arg2[%c0_1, %c0_2] : memref<288x64xbf16, #tpu.memory_space<vmem>>, vector<288x64xbf16>
    %cst = arith.constant dense<0.000000e+00> : vector<208x64xf32>
    %2 = tpu.matmul %0, %1, %cst {dimension_numbers = #tpu.dot_dimension_numbers<[1], [0], [0], [1], [0, 0, 1, 1], [], []>} : vector<208x288xbf16>, vector<288x64xbf16>, vector<208x64xf32> -> vector<208x64xf32>
    %c0_3 = arith.constant 0 : index
    %c0_4 = arith.constant 0 : index
    %3 = vector.load %arg3[%c0_3, %c0_4] : memref<1x64xf32, #tpu.memory_space<vmem>>, vector<1x64xf32>
    %4 = vector.broadcast %3 : vector<1x64xf32> to vector<208x64xf32>
    %5 = arith.addf %2, %4 : vector<208x64xf32>
    %cst_5 = arith.constant 0.000000e+00 : f32
    %6 = vector.broadcast %cst_5 : f32 to vector<208x64xf32>
    %7 = arith.maximumf %5, %6 : vector<208x64xf32>
    %8 = arith.truncf %7 : vector<208x64xf32> to vector<208x64xbf16>
    %c0_6 = arith.constant 0 : index
    %c0_7 = arith.constant 0 : index
    %9 = vector.load %arg4[%c0_6, %c0_7] : memref<208x64xbf16, #tpu.memory_space<vmem>>, vector<208x64xbf16>
    tpu.vector_store %arg4[%c0_6, %c0_7], %8 {strides = array<i32>} : memref<208x64xbf16, #tpu.memory_space<vmem>>, vector<208x64xbf16>,
    return
  }
  func.func @transform_0(%arg0: i32) -> (i32, i32) {
    %c0_i32 = arith.constant 0 : i32
    %c0_i32_0 = arith.constant 0 : i32
    return %arg0, %c0_i32 : i32, i32
  }
  func.func @transform_1(%arg0: i32) -> (i32, i32) {
    %c0_i32 = arith.constant 0 : i32
    %c0_i32_0 = arith.constant 0 : i32
    %c0_i32_1 = arith.constant 0 : i32
    return %c0_i32, %c0_i32_0 : i32, i32
  }
  func.func @transform_2(%arg0: i32) -> (i32, i32) {
    %c0_i32 = arith.constant 0 : i32
    %c0_i32_0 = arith.constant 0 : i32
    %c0_i32_1 = arith.constant 0 : i32
    return %c0_i32, %c0_i32_0 : i32, i32
  }
  func.func @transform_3(%arg0: i32) -> (i32, i32) {
    %c0_i32 = arith.constant 0 : i32
    %c0_i32_0 = arith.constant 0 : i32
    return %arg0, %c0_i32 : i32, i32
  }
}

module attributes {stable_mosaic.version = 11 : i64} {
  func.func @_mm_kernel(%arg0: i32, %arg1: memref<128x576xbf16, #tpu.memory_space<vmem>>, %arg2: memref<576x128xbf16, #tpu.memory_space<vmem>>, %arg3: memref<1x128xf32, #tpu.memory_space<vmem>>, %arg4: memref<128x128xbf16, #tpu.memory_space<vmem>>) attributes {dimension_semantics = [#tpu.dimension_semantics<parallel>], iteration_bounds = array<i64: 1>, scalar_prefetch = 0 : i64, scratch_operands = 0 : i64, tpu.core_type = #tpu.core_type<tc>, window_params = [{transform_indices = @transform_0, window_bounds = array<i64: 128, 576>}, {pipeline_mode = #tpu.pipeline_mode<synchronous>, transform_indices = @transform_1, window_bounds = array<i64: 576, 128>}, {pipeline_mode = #tpu.pipeline_mode<synchronous>, transform_indices = @transform_2, window_bounds = array<i64: 1, 128>}, {transform_indices = @transform_3, window_bounds = array<i64: 128, 128>}]} {
    %c0 = arith.constant 0 : index
    %c0_0 = arith.constant 0 : index
    %0 = vector.load %arg1[%c0, %c0_0] : memref<128x576xbf16, #tpu.memory_space<vmem>>, vector<128x576xbf16>
    %c0_1 = arith.constant 0 : index
    %c0_2 = arith.constant 0 : index
    %1 = vector.load %arg2[%c0_1, %c0_2] : memref<576x128xbf16, #tpu.memory_space<vmem>>, vector<576x128xbf16>
    %cst = arith.constant dense<0.000000e+00> : vector<128x128xf32>
    %2 = tpu.matmul %0, %1, %cst {dimension_numbers = #tpu.dot_dimension_numbers<[1], [0], [0], [1], [0, 0, 1, 1], [], []>} : vector<128x576xbf16>, vector<576x128xbf16>, vector<128x128xf32> -> vector<128x128xf32>
    %c0_3 = arith.constant 0 : index
    %c0_4 = arith.constant 0 : index
    %3 = vector.load %arg3[%c0_3, %c0_4] : memref<1x128xf32, #tpu.memory_space<vmem>>, vector<1x128xf32>
    %4 = vector.broadcast %3 : vector<1x128xf32> to vector<128x128xf32>
    %5 = arith.addf %2, %4 : vector<128x128xf32>
    %cst_5 = arith.constant 0.000000e+00 : f32
    %6 = vector.broadcast %cst_5 : f32 to vector<128x128xf32>
    %7 = arith.maximumf %5, %6 : vector<128x128xf32>
    %8 = arith.truncf %7 : vector<128x128xf32> to vector<128x128xbf16>
    %c0_6 = arith.constant 0 : index
    %c0_7 = arith.constant 0 : index
    %9 = vector.load %arg4[%c0_6, %c0_7] : memref<128x128xbf16, #tpu.memory_space<vmem>>, vector<128x128xbf16>
    tpu.vector_store %arg4[%c0_6, %c0_7], %8 {strides = array<i32>} : memref<128x128xbf16, #tpu.memory_space<vmem>>, vector<128x128xbf16>,
    return
  }
  func.func @transform_0(%arg0: i32) -> (i32, i32) {
    %c0_i32 = arith.constant 0 : i32
    %c0_i32_0 = arith.constant 0 : i32
    return %arg0, %c0_i32 : i32, i32
  }
  func.func @transform_1(%arg0: i32) -> (i32, i32) {
    %c0_i32 = arith.constant 0 : i32
    %c0_i32_0 = arith.constant 0 : i32
    %c0_i32_1 = arith.constant 0 : i32
    return %c0_i32, %c0_i32_0 : i32, i32
  }
  func.func @transform_2(%arg0: i32) -> (i32, i32) {
    %c0_i32 = arith.constant 0 : i32
    %c0_i32_0 = arith.constant 0 : i32
    %c0_i32_1 = arith.constant 0 : i32
    return %c0_i32, %c0_i32_0 : i32, i32
  }
  func.func @transform_3(%arg0: i32) -> (i32, i32) {
    %c0_i32 = arith.constant 0 : i32
    %c0_i32_0 = arith.constant 0 : i32
    return %arg0, %c0_i32 : i32, i32
  }
}

module attributes {stable_mosaic.version = 11 : i64} {
  func.func @_pool_kernel(%arg0: i32, %arg1: memref<16x2048xbf16, #tpu.memory_space<vmem>>, %arg2: memref<16x512xbf16, #tpu.memory_space<vmem>>) attributes {dimension_semantics = [#tpu.dimension_semantics<parallel>], iteration_bounds = array<i64: 1>, scalar_prefetch = 0 : i64, scratch_operands = 0 : i64, tpu.core_type = #tpu.core_type<tc>, window_params = [{transform_indices = @transform_0, window_bounds = array<i64: 16, 2048>}, {transform_indices = @transform_1, window_bounds = array<i64: 16, 512>}]} {
    %c0 = arith.constant 0 : index
    %c0_0 = arith.constant 0 : index
    %0 = vector.load %arg1[%c0, %c0_0] : memref<16x2048xbf16, #tpu.memory_space<vmem>>, vector<16x2048xbf16>
    %1 = vector.extract_strided_slice %0 {offsets = [0, 0], sizes = [16, 1024], strides = [1, 1]} : vector<16x2048xbf16> to vector<16x1024xbf16>
    %2 = vector.extract_strided_slice %0 {offsets = [0, 1024], sizes = [16, 1024], strides = [1, 1]} : vector<16x2048xbf16> to vector<16x1024xbf16>
    %3 = arith.maximumf %1, %2 : vector<16x1024xbf16>
    %4 = vector.extract_strided_slice %3 {offsets = [0, 0], sizes = [16, 128], strides = [1, 1]} : vector<16x1024xbf16> to vector<16x128xbf16>
    %5 = vector.extract_strided_slice %3 {offsets = [0, 128], sizes = [16, 128], strides = [1, 1]} : vector<16x1024xbf16> to vector<16x128xbf16>
    %6 = arith.maximumf %4, %5 : vector<16x128xbf16>
    %7 = vector.extract_strided_slice %3 {offsets = [0, 256], sizes = [16, 128], strides = [1, 1]} : vector<16x1024xbf16> to vector<16x128xbf16>
    %8 = vector.extract_strided_slice %3 {offsets = [0, 384], sizes = [16, 128], strides = [1, 1]} : vector<16x1024xbf16> to vector<16x128xbf16>
    %9 = arith.maximumf %7, %8 : vector<16x128xbf16>
    %10 = vector.extract_strided_slice %3 {offsets = [0, 512], sizes = [16, 128], strides = [1, 1]} : vector<16x1024xbf16> to vector<16x128xbf16>
    %11 = vector.extract_strided_slice %3 {offsets = [0, 640], sizes = [16, 128], strides = [1, 1]} : vector<16x1024xbf16> to vector<16x128xbf16>
    %12 = arith.maximumf %10, %11 : vector<16x128xbf16>
    %13 = vector.extract_strided_slice %3 {offsets = [0, 768], sizes = [16, 128], strides = [1, 1]} : vector<16x1024xbf16> to vector<16x128xbf16>
    %14 = vector.extract_strided_slice %3 {offsets = [0, 896], sizes = [16, 128], strides = [1, 1]} : vector<16x1024xbf16> to vector<16x128xbf16>
    %15 = arith.maximumf %13, %14 : vector<16x128xbf16>
    %16 = tpu.concatenate %6, %9, %12, %15 in 1 : vector<16x128xbf16>, vector<16x128xbf16>, vector<16x128xbf16>, vector<16x128xbf16> -> vector<16x512xbf16>
    %c0_1 = arith.constant 0 : index
    %c0_2 = arith.constant 0 : index
    %17 = vector.load %arg2[%c0_1, %c0_2] : memref<16x512xbf16, #tpu.memory_space<vmem>>, vector<16x512xbf16>
    tpu.vector_store %arg2[%c0_1, %c0_2], %16 {strides = array<i32>} : memref<16x512xbf16, #tpu.memory_space<vmem>>, vector<16x512xbf16>,
    return
  }
  func.func @transform_0(%arg0: i32) -> (i32, i32) {
    %c0_i32 = arith.constant 0 : i32
    %c0_i32_0 = arith.constant 0 : i32
    return %arg0, %c0_i32 : i32, i32
  }
  func.func @transform_1(%arg0: i32) -> (i32, i32) {
    %c0_i32 = arith.constant 0 : i32
    %c0_i32_0 = arith.constant 0 : i32
    return %arg0, %c0_i32 : i32, i32
  }
}

module attributes {stable_mosaic.version = 11 : i64} {
  func.func @_mm_kernel(%arg0: i32, %arg1: memref<16x2048xbf16, #tpu.memory_space<vmem>>, %arg2: memref<2048x128xbf16, #tpu.memory_space<vmem>>, %arg3: memref<1x128xf32, #tpu.memory_space<vmem>>, %arg4: memref<16x128xbf16, #tpu.memory_space<vmem>>) attributes {dimension_semantics = [#tpu.dimension_semantics<parallel>], iteration_bounds = array<i64: 1>, scalar_prefetch = 0 : i64, scratch_operands = 0 : i64, tpu.core_type = #tpu.core_type<tc>, window_params = [{transform_indices = @transform_0, window_bounds = array<i64: 16, 2048>}, {pipeline_mode = #tpu.pipeline_mode<synchronous>, transform_indices = @transform_1, window_bounds = array<i64: 2048, 128>}, {pipeline_mode = #tpu.pipeline_mode<synchronous>, transform_indices = @transform_2, window_bounds = array<i64: 1, 128>}, {transform_indices = @transform_3, window_bounds = array<i64: 16, 128>}]} {
    %c0 = arith.constant 0 : index
    %c0_0 = arith.constant 0 : index
    %0 = vector.load %arg1[%c0, %c0_0] : memref<16x2048xbf16, #tpu.memory_space<vmem>>, vector<16x2048xbf16>
    %c0_1 = arith.constant 0 : index
    %c0_2 = arith.constant 0 : index
    %1 = vector.load %arg2[%c0_1, %c0_2] : memref<2048x128xbf16, #tpu.memory_space<vmem>>, vector<2048x128xbf16>
    %cst = arith.constant dense<0.000000e+00> : vector<16x128xf32>
    %2 = tpu.matmul %0, %1, %cst {dimension_numbers = #tpu.dot_dimension_numbers<[1], [0], [0], [1], [0, 0, 1, 1], [], []>} : vector<16x2048xbf16>, vector<2048x128xbf16>, vector<16x128xf32> -> vector<16x128xf32>
    %c0_3 = arith.constant 0 : index
    %c0_4 = arith.constant 0 : index
    %3 = vector.load %arg3[%c0_3, %c0_4] : memref<1x128xf32, #tpu.memory_space<vmem>>, vector<1x128xf32>
    %4 = vector.broadcast %3 : vector<1x128xf32> to vector<16x128xf32>
    %5 = arith.addf %2, %4 : vector<16x128xf32>
    %cst_5 = arith.constant 0.000000e+00 : f32
    %6 = vector.broadcast %cst_5 : f32 to vector<16x128xf32>
    %7 = arith.maximumf %5, %6 : vector<16x128xf32>
    %8 = arith.truncf %7 : vector<16x128xf32> to vector<16x128xbf16>
    %c0_6 = arith.constant 0 : index
    %c0_7 = arith.constant 0 : index
    %9 = vector.load %arg4[%c0_6, %c0_7] : memref<16x128xbf16, #tpu.memory_space<vmem>>, vector<16x128xbf16>
    tpu.vector_store %arg4[%c0_6, %c0_7], %8 {strides = array<i32>} : memref<16x128xbf16, #tpu.memory_space<vmem>>, vector<16x128xbf16>,
    return
  }
  func.func @transform_0(%arg0: i32) -> (i32, i32) {
    %c0_i32 = arith.constant 0 : i32
    %c0_i32_0 = arith.constant 0 : i32
    return %arg0, %c0_i32 : i32, i32
  }
  func.func @transform_1(%arg0: i32) -> (i32, i32) {
    %c0_i32 = arith.constant 0 : i32
    %c0_i32_0 = arith.constant 0 : i32
    %c0_i32_1 = arith.constant 0 : i32
    return %c0_i32, %c0_i32_0 : i32, i32
  }
  func.func @transform_2(%arg0: i32) -> (i32, i32) {
    %c0_i32 = arith.constant 0 : i32
    %c0_i32_0 = arith.constant 0 : i32
    %c0_i32_1 = arith.constant 0 : i32
    return %c0_i32, %c0_i32_0 : i32, i32
  }
  func.func @transform_3(%arg0: i32) -> (i32, i32) {
    %c0_i32 = arith.constant 0 : i32
    %c0_i32_0 = arith.constant 0 : i32
    return %arg0, %c0_i32 : i32, i32
  }
}

module attributes {stable_mosaic.version = 11 : i64} {
  func.func @_mm_kernel(%arg0: i32, %arg1: memref<16x128xbf16, #tpu.memory_space<vmem>>, %arg2: memref<128x10xbf16, #tpu.memory_space<vmem>>, %arg3: memref<1x10xf32, #tpu.memory_space<vmem>>, %arg4: memref<16x10xf32, #tpu.memory_space<vmem>>) attributes {dimension_semantics = [#tpu.dimension_semantics<parallel>], iteration_bounds = array<i64: 1>, scalar_prefetch = 0 : i64, scratch_operands = 0 : i64, tpu.core_type = #tpu.core_type<tc>, window_params = [{transform_indices = @transform_0, window_bounds = array<i64: 16, 128>}, {pipeline_mode = #tpu.pipeline_mode<synchronous>, transform_indices = @transform_1, window_bounds = array<i64: 128, 10>}, {pipeline_mode = #tpu.pipeline_mode<synchronous>, transform_indices = @transform_2, window_bounds = array<i64: 1, 10>}, {transform_indices = @transform_3, window_bounds = array<i64: 16, 10>}]} {
    %c0 = arith.constant 0 : index
    %c0_0 = arith.constant 0 : index
    %0 = vector.load %arg1[%c0, %c0_0] : memref<16x128xbf16, #tpu.memory_space<vmem>>, vector<16x128xbf16>
    %c0_1 = arith.constant 0 : index
    %c0_2 = arith.constant 0 : index
    %1 = vector.load %arg2[%c0_1, %c0_2] : memref<128x10xbf16, #tpu.memory_space<vmem>>, vector<128x10xbf16>
    %cst = arith.constant dense<0.000000e+00> : vector<16x10xf32>
    %2 = tpu.matmul %0, %1, %cst {dimension_numbers = #tpu.dot_dimension_numbers<[1], [0], [0], [1], [0, 0, 1, 1], [], []>} : vector<16x128xbf16>, vector<128x10xbf16>, vector<16x10xf32> -> vector<16x10xf32>
    %c0_3 = arith.constant 0 : index
    %c0_4 = arith.constant 0 : index
    %3 = vector.load %arg3[%c0_3, %c0_4] : memref<1x10xf32, #tpu.memory_space<vmem>>, vector<1x10xf32>
    %4 = vector.broadcast %3 : vector<1x10xf32> to vector<16x10xf32>
    %5 = arith.addf %2, %4 : vector<16x10xf32>
    %cst_5 = arith.constant dense<0xFF800000> : vector<16xf32>
    %6 = vector.multi_reduction <maximumf>, %5, %cst_5 [1] : vector<16x10xf32> to vector<16xf32>
    %7 = vector.shape_cast %6 : vector<16xf32> to vector<16x1xf32>
    %8 = vector.broadcast %7 : vector<16x1xf32> to vector<16x10xf32>
    %9 = arith.subf %5, %8 : vector<16x10xf32>
    %10 = math.exp %9 : vector<16x10xf32>
    %cst_6 = arith.constant dense<0.000000e+00> : vector<16xf32>
    %11 = vector.multi_reduction <add>, %10, %cst_6 [1] : vector<16x10xf32> to vector<16xf32>
    %12 = vector.shape_cast %11 : vector<16xf32> to vector<16x1xf32>
    %13 = math.log %12 : vector<16x1xf32>
    %14 = vector.broadcast %13 : vector<16x1xf32> to vector<16x10xf32>
    %15 = arith.subf %9, %14 : vector<16x10xf32>
    %c0_7 = arith.constant 0 : index
    %c0_8 = arith.constant 0 : index
    %16 = vector.load %arg4[%c0_7, %c0_8] : memref<16x10xf32, #tpu.memory_space<vmem>>, vector<16x10xf32>
    tpu.vector_store %arg4[%c0_7, %c0_8], %15 {strides = array<i32>} : memref<16x10xf32, #tpu.memory_space<vmem>>, vector<16x10xf32>,
    return
  }
  func.func @transform_0(%arg0: i32) -> (i32, i32) {
    %c0_i32 = arith.constant 0 : i32
    %c0_i32_0 = arith.constant 0 : i32
    return %arg0, %c0_i32 : i32, i32
  }
  func.func @transform_1(%arg0: i32) -> (i32, i32) {
    %c0_i32 = arith.constant 0 : i32
    %c0_i32_0 = arith.constant 0 : i32
    %c0_i32_1 = arith.constant 0 : i32
    return %c0_i32, %c0_i32_0 : i32, i32
  }
  func.func @transform_2(%arg0: i32) -> (i32, i32) {
    %c0_i32 = arith.constant 0 : i32
    %c0_i32_0 = arith.constant 0 : i32
    %c0_i32_1 = arith.constant 0 : i32
    return %c0_i32, %c0_i32_0 : i32, i32
  }
  func.func @transform_3(%arg0: i32) -> (i32, i32) {
    %c0_i32 = arith.constant 0 : i32
    %c0_i32_0 = arith.constant 0 : i32
    return %arg0, %c0_i32 : i32, i32
  }
}

</mosaic_0001>

<llo_original>
// kernel: net2_forward.8
$region0: #{net2_forward.8}
  #allocation0 [shape = 'u32[]', space=smem, size = 0x4, offset = 0x4, fixed_abs, tag = 'smem constant byte address 0x4 - core index']
  #allocation1 [shape = 'u32[144,128]{1,0:T(1,128)}', space=vmem, size = 0x12000, scoped, tag = 'internal scratch']
  %s0 = inlined_call_operand.vmem [shape: bf16[1536,9], index: 0, kind: input, shape index: {}]
  %s1 = inlined_call_operand.vmem [shape: bf16[9,16], index: 1, kind: input, shape index: {}]
  %s2 = inlined_call_operand.vmem [shape: f32[1,16], index: 2, kind: input, shape index: {}]
  %s3 = inlined_call_operand.vmem [shape: bf16[1536,16], index: 3, kind: output, shape index: {}]
  %s4 = sld [smem:[#allocation0]]
  $region45: #{net2_forward.8} parent=0
    _
  %s6 = ssub.s32 1, %s4
  %s7 = scalar_select 0, %s6, %s4
  loop: start=0, step=1, limit=5
  $region2: #{net2_forward.8} parent=0 // loop_pre_header
    _
  $region3: #{net2_forward.8} parent=0 // loop_header
    %s9 = sphi 0, %s13
    %p10 = scmp.ge.s32.totalorder %s9, 5
    %s19 = sphi 0, %s21
    %s22 = sphi 0, %s19
    %s23 = sphi 0, %s22
    %s39 = sphi 0, %s23
    %s43 = sphi 0, %s43
    %s45 = sphi 0, %s43
    %s46 = sphi 0, %s45
    %s60 = sphi 0, %s46
    %s64 = sphi 0, %s64
    %s66 = sphi 0, %s64
    %s67 = sphi 0, %s66
    %s81 = sphi 0, %s67
    %s87 = sphi 0, %s89
    %s90 = sphi 0, %s87
    %s91 = sphi 0, %s90
    %s107 = sphi 0, %s91
  $region4: #{net2_forward.8} parent=0 // loop_header_branch
    %12 = sbr.rel (%p10) target = $region8
  $region5: #{net2_forward.8} parent=0 // loop_body
    %s14 = ssub.s32 %s9, 1
    %s15 = ssub.s32 %s9, 2
    %s16 = sadd.s32 %s9, 1
    %s17 = ssub.s32 %s9, %s16
    %p18 = scmp.eq.s32.totalorder %s17, 0
    %s20 = sadd.s32 %s19, 1
    %s21 = scalar_select %p18, %s19, %s20
    %p24 = pneg %p18
    %p25 = scmp.eq.s32.totalorder %s9, 2
    %p26 = por %p24, %p25
    %p27 = scmp.ne.s32.totalorder %s19, %s22
    %p28 = scmp.eq.s32.totalorder %s9, 0
    %p29 = por %p27, %p28
    %p30 = scmp.ne.s32.totalorder %s19, %s22
    %p31 = scmp.eq.s32.totalorder %s14, 2
    %p32 = por %p30, %p31
    %p33 = scmp.ne.s32.totalorder %s22, %s23
    %p34 = scmp.eq.s32.totalorder %s14, 0
    %p35 = por %p33, %p34
    %p36 = scmp.ne.s32.totalorder %s22, %s23
    %p37 = scmp.eq.s32.totalorder %s15, 2
    %p38 = por %p36, %p37
    %p40 = scmp.ne.s32.totalorder %s23, %s39
    %p41 = scmp.eq.s32.totalorder %s15, 0
    %p42 = por %p40, %p41
    %s44 = sadd.s32 %s43, 1
    %p47 = scmp.eq.s32.totalorder %s9, 2
    %p48 = scmp.ne.s32.totalorder %s43, %s45
    %p49 = scmp.eq.s32.totalorder %s9, 0
    %p50 = por %p48, %p49
    %p51 = scmp.ne.s32.totalorder %s43, %s45
    %p52 = scmp.eq.s32.totalorder %s14, 2
    %p53 = por %p51, %p52
    %p54 = scmp.ne.s32.totalorder %s45, %s46
    %p55 = scmp.eq.s32.totalorder %s14, 0
    %p56 = por %p54, %p55
    %p57 = scmp.ne.s32.totalorder %s45, %s46
    %p58 = scmp.eq.s32.totalorder %s15, 2
    %p59 = por %p57, %p58
    %p61 = scmp.ne.s32.totalorder %s46, %s60
    %p62 = scmp.eq.s32.totalorder %s15, 0
    %p63 = por %p61, %p62
    %s65 = sadd.s32 %s64, 1
    %p68 = scmp.eq.s32.totalorder %s9, 2
    %p69 = scmp.ne.s32.totalorder %s64, %s66
    %p70 = scmp.eq.s32.totalorder %s9, 0
    %p71 = por %p69, %p70
    %p72 = scmp.ne.s32.totalorder %s64, %s66
    %p73 = scmp.eq.s32.totalorder %s14, 2
    %p74 = por %p72, %p73
    %p75 = scmp.ne.s32.totalorder %s66, %s67
    %p76 = scmp.eq.s32.totalorder %s14, 0
    %p77 = por %p75, %p76
    %p78 = scmp.ne.s32.totalorder %s66, %s67
    %p79 = scmp.eq.s32.totalorder %s15, 2
    %p80 = por %p78, %p79
    %p82 = scmp.ne.s32.totalorder %s67, %s81
    %p83 = scmp.eq.s32.totalorder %s15, 0
    %p84 = por %p82, %p83
    %s85 = ssub.s32 %s9, %s16
    %p86 = scmp.eq.s32.totalorder %s85, 0
    %s88 = sadd.s32 %s87, 1
    %s89 = scalar_select %p86, %s87, %s88
    %p92 = pneg %p86
    %p93 = scmp.eq.s32.totalorder %s9, 2
    %p94 = por %p92, %p93
    %p95 = scmp.ne.s32.totalorder %s87, %s90
    %p96 = scmp.eq.s32.totalorder %s9, 0
    %p97 = por %p95, %p96
    %p98 = scmp.ne.s32.totalorder %s87, %s90
    %p99 = scmp.eq.s32.totalorder %s14, 2
    %p100 = por %p98, %p99
    %p101 = scmp.ne.s32.totalorder %s90, %s91
    %p102 = scmp.eq.s32.totalorder %s14, 0
    %p103 = por %p101, %p102
    %p104 = scmp.ne.s32.totalorder %s90, %s91
    %p105 = scmp.eq.s32.totalorder %s15, 2
    %p106 = por %p104, %p105
    %p108 = scmp.ne.s32.totalorder %s91, %s107
    %p109 = scmp.eq.s32.totalorder %s15, 0
    %p110 = por %p108, %p109
    %p111 = scmp.le.s32.totalorder 1, %s9
    %p112 = scmp.lt.s32.totalorder %s9, 4
    %p113 = pnand %p111, %p112
    %p114 = pneg %p113
    // Predicated region
    $region9: #{net2_forward.8} parent=5 // pred_check
      _
    $region10: #{net2_forward.8} parent=5 // pred_check_branch
      %116 = sbr.rel (%p113) target = $region12
    $region11: #{net2_forward.8} parent=5 // pred_region
      %s117 = ssub.s32 %s9, 1
      // Predicated region
      $region13: #{net2_forward.8} parent=11 // pred_check
        %p118 = pneg %p56
      $region14: #{net2_forward.8} parent=11 // pred_check_branch
        %120 = sbr.rel (%p118) target = $region16
      $region15: #{net2_forward.8} parent=11 // pred_region
        _
      $region16: #{net2_forward.8} parent=11 // pred_fallthru
        _
      // Predicated region
      $region17: #{net2_forward.8} parent=11 // pred_check
        %p121 = pneg %p77
      $region18: #{net2_forward.8} parent=11 // pred_check_branch
        %123 = sbr.rel (%p121) target = $region20
      $region19: #{net2_forward.8} parent=11 // pred_region
        _
      $region20: #{net2_forward.8} parent=11 // pred_fallthru
        _
    $region12: #{net2_forward.8} parent=5 // pred_fallthru
      _
    %p124 = scmp.lt.s32.totalorder %s9, 3
    // Predicated region
    $region21: #{net2_forward.8} parent=5 // pred_check
      %p125 = pneg %p124
    $region22: #{net2_forward.8} parent=5 // pred_check_branch
      %127 = sbr.rel (%p125) target = $region24
    $region23: #{net2_forward.8} parent=5 // pred_region
      // Predicated region
      $region25: #{net2_forward.8} parent=23 // pred_check
        %p128 = pneg %p29
      $region26: #{net2_forward.8} parent=23 // pred_check_branch
        %130 = sbr.rel (%p128) target = $region28
      $region27: #{net2_forward.8} parent=23 // pred_region
        %s131 = smul.u32 64, %s9
        %p132 = scmp.lt.s32.totalorder %s131, 191
        %s133 = scalar_select %p132, %s131, 191
        %s134 = smul.addr %s133, 4
        %s135 = scalar_lea.vmem %s0, %s134
        %s136 = smul.u32 64, %s9
      $region28: #{net2_forward.8} parent=23 // pred_fallthru
        _
    $region24: #{net2_forward.8} parent=5 // pred_fallthru
      _
    %p137 = scmp.le.s32.totalorder 1, %s9
    %p138 = scmp.lt.s32.totalorder %s9, 4
    %p139 = pnand %p137, %p138
    %p140 = pneg %p139
    // Predicated region
    $region29: #{net2_forward.8} parent=5 // pred_check
      _
    $region30: #{net2_forward.8} parent=5 // pred_check_branch
      %142 = sbr.rel (%p139) target = $region32
    $region31: #{net2_forward.8} parent=5 // pred_region
      %s143 = ssub.s32 %s9, 1
      %s144 = smul.u32 64, %s14
      %p145 = scmp.lt.s32.totalorder %s144, 191
      %s146 = scalar_select %p145, %s144, 191
      %s147 = smul.addr %s146, 4
      %s148 = scalar_lea.vmem %s0, %s147
      %p149 = pneg %p35
      %p150 = pneg %p32
      %p151 = pneg %p56
      %p152 = pneg %p53
      %p153 = pneg %p77
      %p154 = pneg %p74
      %p155 = pneg %p103
      %p156 = pneg %p100
      %s157 = smul.u32 64, %s14
      %p158 = scmp.lt.s32.totalorder %s157, 191
      %s159 = scalar_select %p158, %s157, 191
      %s160 = smul.addr %s159, 4
      %s161 = scalar_lea.vmem %s3, %s160
      %s162 = smul.u32 64, %s14
      %p163 = scmp.lt.s32.totalorder %s162, 191
      %s164 = scalar_select %p163, %s162, 191
      %s165 = smul.addr %s164, 4
      %s166 = scalar_lea.vmem %s0, %s165
      %s167 = smul.u32 64, %s14
      %s168 = smul.u32 64, %s14
      %p169 = scmp.lt.s32.totalorder %s168, 191
      %s170 = scalar_select %p169, %s168, 191
      %s171 = smul.addr %s170, 4
      %s172 = scalar_lea.vmem %s3, %s171
      %s173 = smul.u32 64, %s14
      %v175 = vld [vmem:[%s166] sm:$0xf]
      %v176 = vld [vmem:[%s166 + $0x4] sm:$0xf]
      %v177 = vld [vmem:[%s166 + $0x8] sm:$0xf]
      %v178 = vld [vmem:[%s166 + $0xc] sm:$0xf]
      %v179 = vld [vmem:[%s166 + $0x10] sm:$0xf]
      %v180 = vld [vmem:[%s166 + $0x14] sm:$0xf]
      %v181 = vld [vmem:[%s166 + $0x18] sm:$0xf]
      %v182 = vld [vmem:[%s166 + $0x1c] sm:$0xf]
      %v183 = vld [vmem:[%s166 + $0x20] sm:$0xf]
      %v184 = vld [vmem:[%s166 + $0x24] sm:$0xf]
      %v185 = vld [vmem:[%s166 + $0x28] sm:$0xf]
      %v186 = vld [vmem:[%s166 + $0x2c] sm:$0xf]
      %v187 = vld [vmem:[%s166 + $0x30] sm:$0xf]
      %v188 = vld [vmem:[%s166 + $0x34] sm:$0xf]
      %v189 = vld [vmem:[%s166 + $0x38] sm:$0xf]
      %v190 = vld [vmem:[%s166 + $0x3c] sm:$0xf]
      %v191 = vld [vmem:[%s166 + $0x40] sm:$0xf]
      %v192 = vld [vmem:[%s166 + $0x44] sm:$0xf]
      %v193 = vld [vmem:[%s166 + $0x48] sm:$0xf]
      %v194 = vld [vmem:[%s166 + $0x4c] sm:$0xf]
      %v195 = vld [vmem:[%s166 + $0x50] sm:$0xf]
      %v196 = vld [vmem:[%s166 + $0x54] sm:$0xf]
      %v197 = vld [vmem:[%s166 + $0x58] sm:$0xf]
      %v198 = vld [vmem:[%s166 + $0x5c] sm:$0xf]
      %v199 = vld [vmem:[%s166 + $0x60] sm:$0xf]
      %v200 = vld [vmem:[%s166 + $0x64] sm:$0xf]
      %v201 = vld [vmem:[%s166 + $0x68] sm:$0xf]
      %v202 = vld [vmem:[%s166 + $0x6c] sm:$0xf]
      %v203 = vld [vmem:[%s166 + $0x70] sm:$0xf]
      %v204 = vld [vmem:[%s166 + $0x74] sm:$0xf]
      %v205 = vld [vmem:[%s166 + $0x78] sm:$0xf]
      %v206 = vld [vmem:[%s166 + $0x7c] sm:$0xf]
      %v207 = vld [vmem:[%s166 + $0x80] sm:$0xf]
      %v208 = vld [vmem:[%s166 + $0x84] sm:$0xf]
      %v209 = vld [vmem:[%s166 + $0x88] sm:$0xf]
      %v210 = vld [vmem:[%s166 + $0x8c] sm:$0xf]
      %v211 = vld [vmem:[%s166 + $0x90] sm:$0xf]
      %v212 = vld [vmem:[%s166 + $0x94] sm:$0xf]
      %v213 = vld [vmem:[%s166 + $0x98] sm:$0xf]
      %v214 = vld [vmem:[%s166 + $0x9c] sm:$0xf]
      %v215 = vld [vmem:[%s166 + $0xa0] sm:$0xf]
      %v216 = vld [vmem:[%s166 + $0xa4] sm:$0xf]
      %v217 = vld [vmem:[%s166 + $0xa8] sm:$0xf]
      %v218 = vld [vmem:[%s166 + $0xac] sm:$0xf]
      %v219 = vld [vmem:[%s166 + $0xb0] sm:$0xf]
      %v220 = vld [vmem:[%s166 + $0xb4] sm:$0xf]
      %v221 = vld [vmem:[%s166 + $0xb8] sm:$0xf]
      %v222 = vld [vmem:[%s166 + $0xbc] sm:$0xf]
      %v223 = vld [vmem:[%s166 + $0xc0] sm:$0xf]
      %v224 = vld [vmem:[%s166 + $0xc4] sm:$0xf]
      %v225 = vld [vmem:[%s166 + $0xc8] sm:$0xf]
      %v226 = vld [vmem:[%s166 + $0xcc] sm:$0xf]
      %v227 = vld [vmem:[%s166 + $0xd0] sm:$0xf]
      %v228 = vld [vmem:[%s166 + $0xd4] sm:$0xf]
      %v229 = vld [vmem:[%s166 + $0xd8] sm:$0xf]
      %v230 = vld [vmem:[%s166 + $0xdc] sm:$0xf]
      %v231 = vld [vmem:[%s166 + $0xe0] sm:$0xf]
      %v232 = vld [vmem:[%s166 + $0xe4] sm:$0xf]
      %v233 = vld [vmem:[%s166 + $0xe8] sm:$0xf]
      %v234 = vld [vmem:[%s166 + $0xec] sm:$0xf]
      %v235 = vld [vmem:[%s166 + $0xf0] sm:$0xf]
      %v236 = vld [vmem:[%s166 + $0xf4] sm:$0xf]
      %v237 = vld [vmem:[%s166 + $0xf8] sm:$0xf]
      %v238 = vld [vmem:[%s166 + $0xfc] sm:$0xf]
      %v239 = vld [vmem:[%s1] sm:$0xf]
      %v240 = vld [vmem:[%s1 + $0x4] sm:$0x1]
      %v241 = vld [vmem:[%s2] sm:$0x1]
      %v243 = vlaneseq
      %v244 = vshrl.u32 %v243, 7
      %v245 = vsub.s32 0, %v244
      %v246 = vrot.slane %v241, %v245
      %v312 = vunpack.c.l.b16 %v175
      %v313 = vunpack.c.l.b16 %v176
      %v314 = vunpack.c.l.b16 %v177
      %v315 = vunpack.c.l.b16 %v178
      %v316 = vunpack.c.l.b16 %v179
      %v317 = vunpack.c.l.b16 %v180
      %v318 = vunpack.c.l.b16 %v181
      %v319 = vunpack.c.l.b16 %v182
      %v320 = vunpack.c.l.b16 %v183
      %v321 = vunpack.c.l.b16 %v184
      %v322 = vunpack.c.l.b16 %v185
      %v323 = vunpack.c.l.b16 %v186
      %v324 = vunpack.c.l.b16 %v187
      %v325 = vunpack.c.l.b16 %v188
      %v326 = vunpack.c.l.b16 %v189
      %v327 = vunpack.c.l.b16 %v190
      %v328 = vunpack.c.l.b16 %v191
      %v329 = vunpack.c.l.b16 %v192
      %v330 = vunpack.c.l.b16 %v193
      %v331 = vunpack.c.l.b16 %v194
      %v332 = vunpack.c.l.b16 %v195
      %v333 = vunpack.c.l.b16 %v196
      %v334 = vunpack.c.l.b16 %v197
      %v335 = vunpack.c.l.b16 %v198
      %v336 = vunpack.c.l.b16 %v199
      %v337 = vunpack.c.l.b16 %v200
      %v338 = vunpack.c.l.b16 %v201
      %v339 = vunpack.c.l.b16 %v202
      %v340 = vunpack.c.l.b16 %v203
      %v341 = vunpack.c.l.b16 %v204
      %v342 = vunpack.c.l.b16 %v205
      %v343 = vunpack.c.l.b16 %v206
      %v344 = vunpack.c.l.b16 %v207
      %v345 = vunpack.c.l.b16 %v208
      %v346 = vunpack.c.l.b16 %v209
      %v347 = vunpack.c.l.b16 %v210
      %v348 = vunpack.c.l.b16 %v211
      %v349 = vunpack.c.l.b16 %v212
      %v350 = vunpack.c.l.b16 %v213
      %v351 = vunpack.c.l.b16 %v214
      %v352 = vunpack.c.l.b16 %v215
      %v353 = vunpack.c.l.b16 %v216
      %v354 = vunpack.c.l.b16 %v217
      %v355 = vunpack.c.l.b16 %v218
      %v356 = vunpack.c.l.b16 %v219
      %v357 = vunpack.c.l.b16 %v220
      %v358 = vunpack.c.l.b16 %v221
      %v359 = vunpack.c.l.b16 %v222
      %v360 = vunpack.c.l.b16 %v223
      %v361 = vunpack.c.l.b16 %v224
      %v362 = vunpack.c.l.b16 %v225
      %v363 = vunpack.c.l.b16 %v226
      %v364 = vunpack.c.l.b16 %v227
      %v365 = vunpack.c.l.b16 %v228
      %v366 = vunpack.c.l.b16 %v229
      %v367 = vunpack.c.l.b16 %v230
      %v368 = vunpack.c.l.b16 %v231
      %v369 = vunpack.c.l.b16 %v232
      %v370 = vunpack.c.l.b16 %v233
      %v371 = vunpack.c.l.b16 %v234
      %v372 = vunpack.c.l.b16 %v235
      %v373 = vunpack.c.l.b16 %v236
      %v374 = vunpack.c.l.b16 %v237
      %v375 = vunpack.c.l.b16 %v238
      %v376 = vpack.c.b16 %v313, %v312
      %v377 = vpack.c.b16 %v315, %v314
      %v378 = vpack.c.b16 %v317, %v316
      %v379 = vpack.c.b16 %v319, %v318
      %v380 = vpack.c.b16 %v321, %v320
      %v381 = vpack.c.b16 %v323, %v322
      %v382 = vpack.c.b16 %v325, %v324
      %v383 = vpack.c.b16 %v327, %v326
      %v384 = vpack.c.b16 %v329, %v328
      %v385 = vpack.c.b16 %v331, %v330
      %v386 = vpack.c.b16 %v333, %v332
      %v387 = vpack.c.b16 %v335, %v334
      %v388 = vpack.c.b16 %v337, %v336
      %v389 = vpack.c.b16 %v339, %v338
      %v390 = vpack.c.b16 %v341, %v340
      %v391 = vpack.c.b16 %v343, %v342
      %v392 = vpack.c.b16 %v345, %v344
      %v393 = vpack.c.b16 %v347, %v346
      %v394 = vpack.c.b16 %v349, %v348
      %v395 = vpack.c.b16 %v351, %v350
      %v396 = vpack.c.b16 %v353, %v352
      %v397 = vpack.c.b16 %v355, %v354
      %v398 = vpack.c.b16 %v357, %v356
      %v399 = vpack.c.b16 %v359, %v358
      %v400 = vpack.c.b16 %v361, %v360
      %v401 = vpack.c.b16 %v363, %v362
      %v402 = vpack.c.b16 %v365, %v364
      %v403 = vpack.c.b16 %v367, %v366
      %v404 = vpack.c.b16 %v369, %v368
      %v405 = vpack.c.b16 %v371, %v370
      %v406 = vpack.c.b16 %v373, %v372
      %v407 = vpack.c.b16 %v375, %v374
      %v410 = vunpack.c.l.b16 %v239
      %v411 = vunpack.c.l.b16 %v240
      %v412 = vpack.c.b16 %v411, %v410
      %vm413 = vcmask 72704
      %v415 = vsel %vm413, %v376, 0
      %v418 = vsel %vm413, %v377, 0
      %v421 = vsel %vm413, %v378, 0
      %v424 = vsel %vm413, %v379, 0
      %v427 = vsel %vm413, %v380, 0
      %v430 = vsel %vm413, %v381, 0
      %v433 = vsel %vm413, %v382, 0
      %v436 = vsel %vm413, %v383, 0
      %v439 = vsel %vm413, %v384, 0
      %v442 = vsel %vm413, %v385, 0
      %v445 = vsel %vm413, %v386, 0
      %v448 = vsel %vm413, %v387, 0
      %v451 = vsel %vm413, %v388, 0
      %v454 = vsel %vm413, %v389, 0
      %v457 = vsel %vm413, %v390, 0
      %v460 = vsel %vm413, %v391, 0
      %v463 = vsel %vm413, %v392, 0
      %v466 = vsel %vm413, %v393, 0
      %v469 = vsel %vm413, %v394, 0
      %v472 = vsel %vm413, %v395, 0
      %v475 = vsel %vm413, %v396, 0
      %v478 = vsel %vm413, %v397, 0
      %v481 = vsel %vm413, %v398, 0
      %v484 = vsel %vm413, %v399, 0
      %v487 = vsel %vm413, %v400, 0
      %v490 = vsel %vm413, %v401, 0
      %v493 = vsel %vm413, %v402, 0
      %v496 = vsel %vm413, %v403, 0
      %v499 = vsel %vm413, %v404, 0
      %v502 = vsel %vm413, %v405, 0
      %v505 = vsel %vm413, %v406, 0
      %v508 = vsel %vm413, %v407, 0
      %vm510 = vcmask 1043456
      %vm511 = vcmask 1044480
      %v512 = vsel %vm510, 4294967295, 65535
      %v513 = vsel %vm511, %v512, 0
      %v515 = vand.u32 %v412, %v513
      %517 = vmatprep.subr.bf16.mxu0 0
      %518 = vmatpush1.bf16.msra.mxu0 %v515
      %519 = vmatprep.subr.bf16.mxu0 0
      %520 = vmatpush1.bf16.msra.mxu0 0
      %521 = vmatprep.subr.bf16.mxu0 0
      %522 = vmatpush1.bf16.msra.mxu0 0
      %523 = vmatprep.subr.bf16.mxu0 0
      %524 = vmatpush1.bf16.msra.mxu0 0
      %525 = vmatprep.subr.bf16.mxu0 0
      %526 = vmatpush1.bf16.msra.mxu0 0
      %527 = vmatprep.subr.bf16.mxu0 0
      %528 = vmatpush1.bf16.msra.mxu0 0
      %529 = vmatprep.subr.bf16.mxu0 0
      %530 = vmatpush1.bf16.msra.mxu0 0
      %531 = vmatprep.subr.bf16.mxu0 0
      %532 = vmatpush1.bf16.msra.mxu0 0
      %533 = vmatprep.subr.bf16.mxu0 0
      %534 = vmatpush1.bf16.msra.mxu0 0
      %535 = vmatprep.subr.bf16.mxu0 0
      %536 = vmatpush1.bf16.msra.mxu0 0
      %537 = vmatprep.subr.bf16.mxu0 0
      %538 = vmatpush1.bf16.msra.mxu0 0
      %539 = vmatprep.subr.bf16.mxu0 0
      %540 = vmatpush1.bf16.msra.mxu0 0
      %541 = vmatprep.subr.bf16.mxu0 0
      %542 = vmatpush1.bf16.msra.mxu0 0
      %543 = vmatprep.subr.bf16.mxu0 0
      %544 = vmatpush1.bf16.msra.mxu0 0
      %545 = vmatprep.subr.bf16.mxu0 0
      %546 = vmatpush1.bf16.msra.mxu0 0
      %547 = vmatprep.subr.bf16.mxu0 0
      %548 = vmatpush1.bf16.msra.mxu0 0
      %549 = vmatprep.mubr.bf16.mxu0 0
      %550 = vmatmul.mubr.bf16.gmra.mrb[0].mxu0 %v415
      %v551 = vpop.f32.mrb[0].mxu0
      %v552 = vadd.f32 %v246, %v551
      %v553 = vpop.f32.mrb[0].mxu0
      %v554 = vpop.f32.mrb[0].mxu0
      %v555 = vadd.f32 %v246, %v554
      %v556 = vpop.f32.mrb[0].mxu0
      %557 = vmatprep.mubr.bf16.mxu0 0
      %558 = vmatmul.mubr.bf16.gmra.mrb[0].mxu0 %v418
      %v559 = vpop.f32.mrb[0].mxu0
      %v560 = vadd.f32 %v246, %v559
      %v561 = vpop.f32.mrb[0].mxu0
      %v562 = vpop.f32.mrb[0].mxu0
      %v563 = vadd.f32 %v246, %v562
      %v564 = vpop.f32.mrb[0].mxu0
      %565 = vmatprep.mubr.bf16.mxu0 0
      %566 = vmatmul.mubr.bf16.gmra.mrb[0].mxu0 %v421
      %v567 = vpop.f32.mrb[0].mxu0
      %v568 = vadd.f32 %v246, %v567
      %v569 = vpop.f32.mrb[0].mxu0
      %v570 = vpop.f32.mrb[0].mxu0
      %v571 = vadd.f32 %v246, %v570
      %v572 = vpop.f32.mrb[0].mxu0
      %573 = vmatprep.mubr.bf16.mxu0 0
      %574 = vmatmul.mubr.bf16.gmra.mrb[0].mxu0 %v424
      %v575 = vpop.f32.mrb[0].mxu0
      %v576 = vadd.f32 %v246, %v575
      %v577 = vpop.f32.mrb[0].mxu0
      %v578 = vpop.f32.mrb[0].mxu0
      %v579 = vadd.f32 %v246, %v578
      %v580 = vpop.f32.mrb[0].mxu0
      %581 = vmatprep.mubr.bf16.mxu0 0
      %582 = vmatmul.mubr.bf16.gmra.mrb[0].mxu0 %v427
      %v583 = vpop.f32.mrb[0].mxu0
      %v584 = vadd.f32 %v246, %v583
      %v585 = vpop.f32.mrb[0].mxu0
      %v586 = vpop.f32.mrb[0].mxu0
      %v587 = vadd.f32 %v246, %v586
      %v588 = vpop.f32.mrb[0].mxu0
      %589 = vmatprep.mubr.bf16.mxu0 0
      %590 = vmatmul.mubr.bf16.gmra.mrb[0].mxu0 %v430
      %v591 = vpop.f32.mrb[0].mxu0
      %v592 = vadd.f32 %v246, %v591
      %v593 = vpop.f32.mrb[0].mxu0
      %v594 = vpop.f32.mrb[0].mxu0
      %v595 = vadd.f32 %v246, %v594
      %v596 = vpop.f32.mrb[0].mxu0
      %597 = vmatprep.mubr.bf16.mxu0 0
      %598 = vmatmul.mubr.bf16.gmra.mrb[0].mxu0 %v433
      %v599 = vpop.f32.mrb[0].mxu0
      %v600 = vadd.f32 %v246, %v599
      %v601 = vpop.f32.mrb[0].mxu0
      %v602 = vpop.f32.mrb[0].mxu0
      %v603 = vadd.f32 %v246, %v602
      %v604 = vpop.f32.mrb[0].mxu0
      %605 = vmatprep.mubr.bf16.mxu0 0
      %606 = vmatmul.mubr.bf16.gmra.mrb[0].mxu0 %v436
      %v607 = vpop.f32.mrb[0].mxu0
      %v608 = vadd.f32 %v246, %v607
      %v609 = vpop.f32.mrb[0].mxu0
      %v610 = vpop.f32.mrb[0].mxu0
      %v611 = vadd.f32 %v246, %v610
      %v612 = vpop.f32.mrb[0].mxu0
      %613 = vmatprep.mubr.bf16.mxu0 0
      %614 = vmatmul.mubr.bf16.gmra.mrb[0].mxu0 %v439
      %v615 = vpop.f32.mrb[0].mxu0
      %v616 = vadd.f32 %v246, %v615
      %v617 = vpop.f32.mrb[0].mxu0
      %v618 = vpop.f32.mrb[0].mxu0
      %v619 = vadd.f32 %v246, %v618
      %v620 = vpop.f32.mrb[0].mxu0
      %621 = vmatprep.mubr.bf16.mxu0 0
      %622 = vmatmul.mubr.bf16.gmra.mrb[0].mxu0 %v442
      %v623 = vpop.f32.mrb[0].mxu0
      %v624 = vadd.f32 %v246, %v623
      %v625 = vpop.f32.mrb[0].mxu0
      %v626 = vpop.f32.mrb[0].mxu0
      %v627 = vadd.f32 %v246, %v626
      %v628 = vpop.f32.mrb[0].mxu0
      %629 = vmatprep.mubr.bf16.mxu0 0
      %630 = vmatmul.mubr.bf16.gmra.mrb[0].mxu0 %v445
      %v631 = vpop.f32.mrb[0].mxu0
      %v632 = vadd.f32 %v246, %v631
      %v633 = vpop.f32.mrb[0].mxu0
      %v634 = vpop.f32.mrb[0].mxu0
      %v635 = vadd.f32 %v246, %v634
      %v636 = vpop.f32.mrb[0].mxu0
      %637 = vmatprep.mubr.bf16.mxu0 0
      %638 = vmatmul.mubr.bf16.gmra.mrb[0].mxu0 %v448
      %v639 = vpop.f32.mrb[0].mxu0
      %v640 = vadd.f32 %v246, %v639
      %v641 = vpop.f32.mrb[0].mxu0
      %v642 = vpop.f32.mrb[0].mxu0
      %v643 = vadd.f32 %v246, %v642
      %v644 = vpop.f32.mrb[0].mxu0
      %645 = vmatprep.mubr.bf16.mxu0 0
      %646 = vmatmul.mubr.bf16.gmra.mrb[0].mxu0 %v451
      %v647 = vpop.f32.mrb[0].mxu0
      %v648 = vadd.f32 %v246, %v647
      %v649 = vpop.f32.mrb[0].mxu0
      %v650 = vpop.f32.mrb[0].mxu0
      %v651 = vadd.f32 %v246, %v650
      %v652 = vpop.f32.mrb[0].mxu0
      %653 = vmatprep.mubr.bf16.mxu0 0
      %654 = vmatmul.mubr.bf16.gmra.mrb[0].mxu0 %v454
      %v655 = vpop.f32.mrb[0].mxu0
      %v656 = vadd.f32 %v246, %v655
      %v657 = vpop.f32.mrb[0].mxu0
      %v658 = vpop.f32.mrb[0].mxu0
      %v659 = vadd.f32 %v246, %v658
      %v660 = vpop.f32.mrb[0].mxu0
      %661 = vmatprep.mubr.bf16.mxu0 0
      %662 = vmatmul.mubr.bf16.gmra.mrb[0].mxu0 %v457
      %v663 = vpop.f32.mrb[0].mxu0
      %v664 = vadd.f32 %v246, %v663
      %v665 = vpop.f32.mrb[0].mxu0
      %v666 = vpop.f32.mrb[0].mxu0
      %v667 = vadd.f32 %v246, %v666
      %v668 = vpop.f32.mrb[0].mxu0
      %669 = vmatprep.mubr.bf16.mxu0 0
      %670 = vmatmul.mubr.bf16.gmra.mrb[0].mxu0 %v460
      %v671 = vpop.f32.mrb[0].mxu0
      %v672 = vadd.f32 %v246, %v671
      %v673 = vpop.f32.mrb[0].mxu0
      %v674 = vpop.f32.mrb[0].mxu0
      %v675 = vadd.f32 %v246, %v674
      %v676 = vpop.f32.mrb[0].mxu0
      %677 = vmatprep.mubr.bf16.mxu0 0
      %678 = vmatmul.mubr.bf16.gmra.mrb[0].mxu0 %v463
      %v679 = vpop.f32.mrb[0].mxu0
      %v680 = vadd.f32 %v246, %v679
      %v681 = vpop.f32.mrb[0].mxu0
      %v682 = vpop.f32.mrb[0].mxu0
      %v683 = vadd.f32 %v246, %v682
      %v684 = vpop.f32.mrb[0].mxu0
      %685 = vmatprep.mubr.bf16.mxu0 0
      %686 = vmatmul.mubr.bf16.gmra.mrb[0].mxu0 %v466
      %v687 = vpop.f32.mrb[0].mxu0
      %v688 = vadd.f32 %v246, %v687
      %v689 = vpop.f32.mrb[0].mxu0
      %v690 = vpop.f32.mrb[0].mxu0
      %v691 = vadd.f32 %v246, %v690
      %v692 = vpop.f32.mrb[0].mxu0
      %693 = vmatprep.mubr.bf16.mxu0 0
      %694 = vmatmul.mubr.bf16.gmra.mrb[0].mxu0 %v469
      %v695 = vpop.f32.mrb[0].mxu0
      %v696 = vadd.f32 %v246, %v695
      %v697 = vpop.f32.mrb[0].mxu0
      %v698 = vpop.f32.mrb[0].mxu0
      %v699 = vadd.f32 %v246, %v698
      %v700 = vpop.f32.mrb[0].mxu0
      %701 = vmatprep.mubr.bf16.mxu0 0
      %702 = vmatmul.mubr.bf16.gmra.mrb[0].mxu0 %v472
      %v703 = vpop.f32.mrb[0].mxu0
      %v704 = vadd.f32 %v246, %v703
      %v705 = vpop.f32.mrb[0].mxu0
      %v706 = vpop.f32.mrb[0].mxu0
      %v707 = vadd.f32 %v246, %v706
      %v708 = vpop.f32.mrb[0].mxu0
      %709 = vmatprep.mubr.bf16.mxu0 0
      %710 = vmatmul.mubr.bf16.gmra.mrb[0].mxu0 %v475
      %v711 = vpop.f32.mrb[0].mxu0
      %v712 = vadd.f32 %v246, %v711
      %v713 = vpop.f32.mrb[0].mxu0
      %v714 = vpop.f32.mrb[0].mxu0
      %v715 = vadd.f32 %v246, %v714
      %v716 = vpop.f32.mrb[0].mxu0
      %717 = vmatprep.mubr.bf16.mxu0 0
      %718 = vmatmul.mubr.bf16.gmra.mrb[0].mxu0 %v478
      %v719 = vpop.f32.mrb[0].mxu0
      %v720 = vadd.f32 %v246, %v719
      %v721 = vpop.f32.mrb[0].mxu0
      %v722 = vpop.f32.mrb[0].mxu0
      %v723 = vadd.f32 %v246, %v722
      %v724 = vpop.f32.mrb[0].mxu0
      %725 = vmatprep.mubr.bf16.mxu0 0
      %726 = vmatmul.mubr.bf16.gmra.mrb[0].mxu0 %v481
      %v727 = vpop.f32.mrb[0].mxu0
      %v728 = vadd.f32 %v246, %v727
      %v729 = vpop.f32.mrb[0].mxu0
      %v730 = vpop.f32.mrb[0].mxu0
      %v731 = vadd.f32 %v246, %v730
      %v732 = vpop.f32.mrb[0].mxu0
      %733 = vmatprep.mubr.bf16.mxu0 0
      %734 = vmatmul.mubr.bf16.gmra.mrb[0].mxu0 %v484
      %v735 = vpop.f32.mrb[0].mxu0
      %v736 = vadd.f32 %v246, %v735
      %v737 = vpop.f32.mrb[0].mxu0
      %v738 = vpop.f32.mrb[0].mxu0
      %v739 = vadd.f32 %v246, %v738
      %v740 = vpop.f32.mrb[0].mxu0
      %741 = vmatprep.mubr.bf16.mxu0 0
      %742 = vmatmul.mubr.bf16.gmra.mrb[0].mxu0 %v487
      %v743 = vpop.f32.mrb[0].mxu0
      %v744 = vadd.f32 %v246, %v743
      %v745 = vpop.f32.mrb[0].mxu0
      %v746 = vpop.f32.mrb[0].mxu0
      %v747 = vadd.f32 %v246, %v746
      %v748 = vpop.f32.mrb[0].mxu0
      %749 = vmatprep.mubr.bf16.mxu0 0
      %750 = vmatmul.mubr.bf16.gmra.mrb[0].mxu0 %v490
      %v751 = vpop.f32.mrb[0].mxu0
      %v752 = vadd.f32 %v246, %v751
      %v753 = vpop.f32.mrb[0].mxu0
      %v754 = vpop.f32.mrb[0].mxu0
      %v755 = vadd.f32 %v246, %v754
      %v756 = vpop.f32.mrb[0].mxu0
      %757 = vmatprep.mubr.bf16.mxu0 0
      %758 = vmatmul.mubr.bf16.gmra.mrb[0].mxu0 %v493
      %v759 = vpop.f32.mrb[0].mxu0
      %v760 = vadd.f32 %v246, %v759
      %v761 = vpop.f32.mrb[0].mxu0
      %v762 = vpop.f32.mrb[0].mxu0
      %v763 = vadd.f32 %v246, %v762
      %v764 = vpop.f32.mrb[0].mxu0
      %765 = vmatprep.mubr.bf16.mxu0 0
      %766 = vmatmul.mubr.bf16.gmra.mrb[0].mxu0 %v496
      %v767 = vpop.f32.mrb[0].mxu0
      %v768 = vadd.f32 %v246, %v767
      %v769 = vpop.f32.mrb[0].mxu0
      %v770 = vpop.f32.mrb[0].mxu0
      %v771 = vadd.f32 %v246, %v770
      %v772 = vpop.f32.mrb[0].mxu0
      %773 = vmatprep.mubr.bf16.mxu0 0
      %774 = vmatmul.mubr.bf16.gmra.mrb[0].mxu0 %v499
      %v775 = vpop.f32.mrb[0].mxu0
      %v776 = vadd.f32 %v246, %v775
      %v777 = vpop.f32.mrb[0].mxu0
      %v778 = vpop.f32.mrb[0].mxu0
      %v779 = vadd.f32 %v246, %v778
      %v780 = vpop.f32.mrb[0].mxu0
      %781 = vmatprep.mubr.bf16.mxu0 0
      %782 = vmatmul.mubr.bf16.gmra.mrb[0].mxu0 %v502
      %v783 = vpop.f32.mrb[0].mxu0
      %v784 = vadd.f32 %v246, %v783
      %v785 = vpop.f32.mrb[0].mxu0
      %v786 = vpop.f32.mrb[0].mxu0
      %v787 = vadd.f32 %v246, %v786
      %v788 = vpop.f32.mrb[0].mxu0
      %789 = vmatprep.mubr.bf16.mxu0 0
      %790 = vmatmul.mubr.bf16.gmra.mrb[0].mxu0 %v505
      %v791 = vpop.f32.mrb[0].mxu0
      %v792 = vadd.f32 %v246, %v791
      %v793 = vpop.f32.mrb[0].mxu0
      %v794 = vpop.f32.mrb[0].mxu0
      %v795 = vadd.f32 %v246, %v794
      %v796 = vpop.f32.mrb[0].mxu0
      %797 = vmatprep.mubr.bf16.mxu0 0
      %798 = vmatmul.mubr.bf16.gmra.mrb[0].mxu0 %v508
      %v799 = vpop.f32.mrb[0].mxu0
      %v800 = vadd.f32 %v246, %v799
      %v801 = vpop.f32.mrb[0].mxu0
      %v802 = vpop.f32.mrb[0].mxu0
      %v803 = vadd.f32 %v246, %v802
      %v804 = vpop.f32.mrb[0].mxu0
      %805 = vdwg.mxu0
      %v806 = vmax.f32 %v552, 0.0
      %v807 = vmax.f32 %v555, 0.0
      %v808 = vmax.f32 %v560, 0.0
      %v809 = vmax.f32 %v563, 0.0
      %v810 = vmax.f32 %v568, 0.0
      %v811 = vmax.f32 %v571, 0.0
      %v812 = vmax.f32 %v576, 0.0
      %v813 = vmax.f32 %v579, 0.0
      %v814 = vmax.f32 %v584, 0.0
      %v815 = vmax.f32 %v587, 0.0
      %v816 = vmax.f32 %v592, 0.0
      %v817 = vmax.f32 %v595, 0.0
      %v818 = vmax.f32 %v600, 0.0
      %v819 = vmax.f32 %v603, 0.0
      %v820 = vmax.f32 %v608, 0.0
      %v821 = vmax.f32 %v611, 0.0
      %v822 = vmax.f32 %v616, 0.0
      %v823 = vmax.f32 %v619, 0.0
      %v824 = vmax.f32 %v624, 0.0
      %v825 = vmax.f32 %v627, 0.0
      %v826 = vmax.f32 %v632, 0.0
      %v827 = vmax.f32 %v635, 0.0
      %v828 = vmax.f32 %v640, 0.0
      %v829 = vmax.f32 %v643, 0.0
      %v830 = vmax.f32 %v648, 0.0
      %v831 = vmax.f32 %v651, 0.0
      %v832 = vmax.f32 %v656, 0.0
      %v833 = vmax.f32 %v659, 0.0
      %v834 = vmax.f32 %v664, 0.0
      %v835 = vmax.f32 %v667, 0.0
      %v836 = vmax.f32 %v672, 0.0
      %v837 = vmax.f32 %v675, 0.0
      %v838 = vmax.f32 %v680, 0.0
      %v839 = vmax.f32 %v683, 0.0
      %v840 = vmax.f32 %v688, 0.0
      %v841 = vmax.f32 %v691, 0.0
      %v842 = vmax.f32 %v696, 0.0
      %v843 = vmax.f32 %v699, 0.0
      %v844 = vmax.f32 %v704, 0.0
      %v845 = vmax.f32 %v707, 0.0
      %v846 = vmax.f32 %v712, 0.0
      %v847 = vmax.f32 %v715, 0.0
      %v848 = vmax.f32 %v720, 0.0
      %v849 = vmax.f32 %v723, 0.0
      %v850 = vmax.f32 %v728, 0.0
      %v851 = vmax.f32 %v731, 0.0
      %v852 = vmax.f32 %v736, 0.0
      %v853 = vmax.f32 %v739, 0.0
      %v854 = vmax.f32 %v744, 0.0
      %v855 = vmax.f32 %v747, 0.0
      %v856 = vmax.f32 %v752, 0.0
      %v857 = vmax.f32 %v755, 0.0
      %v858 = vmax.f32 %v760, 0.0
      %v859 = vmax.f32 %v763, 0.0
      %v860 = vmax.f32 %v768, 0.0
      %v861 = vmax.f32 %v771, 0.0
      %v862 = vmax.f32 %v776, 0.0
      %v863 = vmax.f32 %v779, 0.0
      %v864 = vmax.f32 %v784, 0.0
      %v865 = vmax.f32 %v787, 0.0
      %v866 = vmax.f32 %v792, 0.0
      %v867 = vmax.f32 %v795, 0.0
      %v868 = vmax.f32 %v800, 0.0
      %v869 = vmax.f32 %v803, 0.0
      %v870 = vpack.c.bf16 %v807, %v806
      %v871 = vpack.c.bf16 %v809, %v808
      %v872 = vpack.c.bf16 %v811, %v810
      %v873 = vpack.c.bf16 %v813, %v812
      %v874 = vpack.c.bf16 %v815, %v814
      %v875 = vpack.c.bf16 %v817, %v816
      %v876 = vpack.c.bf16 %v819, %v818
      %v877 = vpack.c.bf16 %v821, %v820
      %v878 = vpack.c.bf16 %v823, %v822
      %v879 = vpack.c.bf16 %v825, %v824
      %v880 = vpack.c.bf16 %v827, %v826
      %v881 = vpack.c.bf16 %v829, %v828
      %v882 = vpack.c.bf16 %v831, %v830
      %v883 = vpack.c.bf16 %v833, %v832
      %v884 = vpack.c.bf16 %v835, %v834
      %v885 = vpack.c.bf16 %v837, %v836
      %v886 = vpack.c.bf16 %v839, %v838
      %v887 = vpack.c.bf16 %v841, %v840
      %v888 = vpack.c.bf16 %v843, %v842
      %v889 = vpack.c.bf16 %v845, %v844
      %v890 = vpack.c.bf16 %v847, %v846
      %v891 = vpack.c.bf16 %v849, %v848
      %v892 = vpack.c.bf16 %v851, %v850
      %v893 = vpack.c.bf16 %v853, %v852
      %v894 = vpack.c.bf16 %v855, %v854
      %v895 = vpack.c.bf16 %v857, %v856
      %v896 = vpack.c.bf16 %v859, %v858
      %v897 = vpack.c.bf16 %v861, %v860
      %v898 = vpack.c.bf16 %v863, %v862
      %v899 = vpack.c.bf16 %v865, %v864
      %v900 = vpack.c.bf16 %v867, %v866
      %v901 = vpack.c.bf16 %v869, %v868
      %v934 = vunpack.c.l.b16 %v870
      %v935 = vunpack.c.h.b16 %v870
      %v936 = vunpack.c.l.b16 %v871
      %v937 = vunpack.c.h.b16 %v871
      %v938 = vunpack.c.l.b16 %v872
      %v939 = vunpack.c.h.b16 %v872
      %v940 = vunpack.c.l.b16 %v873
      %v941 = vunpack.c.h.b16 %v873
      %v942 = vunpack.c.l.b16 %v874
      %v943 = vunpack.c.h.b16 %v874
      %v944 = vunpack.c.l.b16 %v875
      %v945 = vunpack.c.h.b16 %v875
      %v946 = vunpack.c.l.b16 %v876
      %v947 = vunpack.c.h.b16 %v876
      %v948 = vunpack.c.l.b16 %v877
      %v949 = vunpack.c.h.b16 %v877
      %v950 = vunpack.c.l.b16 %v878
      %v951 = vunpack.c.h.b16 %v878
      %v952 = vunpack.c.l.b16 %v879
      %v953 = vunpack.c.h.b16 %v879
      %v954 = vunpack.c.l.b16 %v880
      %v955 = vunpack.c.h.b16 %v880
      %v956 = vunpack.c.l.b16 %v881
      %v957 = vunpack.c.h.b16 %v881
      %v958 = vunpack.c.l.b16 %v882
      %v959 = vunpack.c.h.b16 %v882
      %v960 = vunpack.c.l.b16 %v883
      %v961 = vunpack.c.h.b16 %v883
      %v962 = vunpack.c.l.b16 %v884
      %v963 = vunpack.c.h.b16 %v884
      %v964 = vunpack.c.l.b16 %v885
      %v965 = vunpack.c.h.b16 %v885
      %v966 = vunpack.c.l.b16 %v886
      %v967 = vunpack.c.h.b16 %v886
      %v968 = vunpack.c.l.b16 %v887
      %v969 = vunpack.c.h.b16 %v887
      %v970 = vunpack.c.l.b16 %v888
      %v971 = vunpack.c.h.b16 %v888
      %v972 = vunpack.c.l.b16 %v889
      %v973 = vunpack.c.h.b16 %v889
      %v974 = vunpack.c.l.b16 %v890
      %v975 = vunpack.c.h.b16 %v890
      %v976 = vunpack.c.l.b16 %v891
      %v977 = vunpack.c.h.b16 %v891
      %v978 = vunpack.c.l.b16 %v892
      %v979 = vunpack.c.h.b16 %v892
      %v980 = vunpack.c.l.b16 %v893
      %v981 = vunpack.c.h.b16 %v893
      %v982 = vunpack.c.l.b16 %v894
      %v983 = vunpack.c.h.b16 %v894
      %v984 = vunpack.c.l.b16 %v895
      %v985 = vunpack.c.h.b16 %v895
      %v986 = vunpack.c.l.b16 %v896
      %v987 = vunpack.c.h.b16 %v896
      %v988 = vunpack.c.l.b16 %v897
      %v989 = vunpack.c.h.b16 %v897
      %v990 = vunpack.c.l.b16 %v898
      %v991 = vunpack.c.h.b16 %v898
      %v992 = vunpack.c.l.b16 %v899
      %v993 = vunpack.c.h.b16 %v899
      %v994 = vunpack.c.l.b16 %v900
      %v995 = vunpack.c.h.b16 %v900
      %v996 = vunpack.c.l.b16 %v901
      %v997 = vunpack.c.h.b16 %v901
      %v998 = vpack.c.b16 %v934, %v934
      %v999 = vpack.c.b16 %v935, %v935
      %v1000 = vpack.c.b16 %v936, %v936
      %v1001 = vpack.c.b16 %v937, %v937
      %v1002 = vpack.c.b16 %v938, %v938
      %v1003 = vpack.c.b16 %v939, %v939
      %v1004 = vpack.c.b16 %v940, %v940
      %v1005 = vpack.c.b16 %v941, %v941
      %v1006 = vpack.c.b16 %v942, %v942
      %v1007 = vpack.c.b16 %v943, %v943
      %v1008 = vpack.c.b16 %v944, %v944
      %v1009 = vpack.c.b16 %v945, %v945
      %v1010 = vpack.c.b16 %v946, %v946
      %v1011 = vpack.c.b16 %v947, %v947
      %v1012 = vpack.c.b16 %v948, %v948
      %v1013 = vpack.c.b16 %v949, %v949
      %v1014 = vpack.c.b16 %v950, %v950
      %v1015 = vpack.c.b16 %v951, %v951
      %v1016 = vpack.c.b16 %v952, %v952
      %v1017 = vpack.c.b16 %v953, %v953
      %v1018 = vpack.c.b16 %v954, %v954
      %v1019 = vpack.c.b16 %v955, %v955
      %v1020 = vpack.c.b16 %v956, %v956
      %v1021 = vpack.c.b16 %v957, %v957
      %v1022 = vpack.c.b16 %v958, %v958
      %v1023 = vpack.c.b16 %v959, %v959
      %v1024 = vpack.c.b16 %v960, %v960
      %v1025 = vpack.c.b16 %v961, %v961
      %v1026 = vpack.c.b16 %v962, %v962
      %v1027 = vpack.c.b16 %v963, %v963
      %v1028 = vpack.c.b16 %v964, %v964
      %v1029 = vpack.c.b16 %v965, %v965
      %v1030 = vpack.c.b16 %v966, %v966
      %v1031 = vpack.c.b16 %v967, %v967
      %v1032 = vpack.c.b16 %v968, %v968
      %v1033 = vpack.c.b16 %v969, %v969
      %v1034 = vpack.c.b16 %v970, %v970
      %v1035 = vpack.c.b16 %v971, %v971
      %v1036 = vpack.c.b16 %v972, %v972
      %v1037 = vpack.c.b16 %v973, %v973
      %v1038 = vpack.c.b16 %v974, %v974
      %v1039 = vpack.c.b16 %v975, %v975
      %v1040 = vpack.c.b16 %v976, %v976
      %v1041 = vpack.c.b16 %v977, %v977
      %v1042 = vpack.c.b16 %v978, %v978
      %v1043 = vpack.c.b16 %v979, %v979
      %v1044 = vpack.c.b16 %v980, %v980
      %v1045 = vpack.c.b16 %v981, %v981
      %v1046 = vpack.c.b16 %v982, %v982
      %v1047 = vpack.c.b16 %v983, %v983
      %v1048 = vpack.c.b16 %v984, %v984
      %v1049 = vpack.c.b16 %v985, %v985
      %v1050 = vpack.c.b16 %v986, %v986
      %v1051 = vpack.c.b16 %v987, %v987
      %v1052 = vpack.c.b16 %v988, %v988
      %v1053 = vpack.c.b16 %v989, %v989
      %v1054 = vpack.c.b16 %v990, %v990
      %v1055 = vpack.c.b16 %v991, %v991
      %v1056 = vpack.c.b16 %v992, %v992
      %v1057 = vpack.c.b16 %v993, %v993
      %v1058 = vpack.c.b16 %v994, %v994
      %v1059 = vpack.c.b16 %v995, %v995
      %v1060 = vpack.c.b16 %v996, %v996
      %v1061 = vpack.c.b16 %v997, %v997
      %vm1126 = vcmask 125952
      %1127 = vst.msk [vmem:[%s172] sm:$0xf] %vm1126, %v998
      %1128 = vst.msk [vmem:[%s172 + $0x4] sm:$0xf] %vm1126, %v999
      %1129 = vst.msk [vmem:[%s172 + $0x8] sm:$0xf] %vm1126, %v1000
      %1130 = vst.msk [vmem:[%s172 + $0xc] sm:$0xf] %vm1126, %v1001
      %1131 = vst.msk [vmem:[%s172 + $0x10] sm:$0xf] %vm1126, %v1002
      %1132 = vst.msk [vmem:[%s172 + $0x14] sm:$0xf] %vm1126, %v1003
      %1133 = vst.msk [vmem:[%s172 + $0x18] sm:$0xf] %vm1126, %v1004
      %1134 = vst.msk [vmem:[%s172 + $0x1c] sm:$0xf] %vm1126, %v1005
      %1135 = vst.msk [vmem:[%s172 + $0x20] sm:$0xf] %vm1126, %v1006
      %1136 = vst.msk [vmem:[%s172 + $0x24] sm:$0xf] %vm1126, %v1007
      %1137 = vst.msk [vmem:[%s172 + $0x28] sm:$0xf] %vm1126, %v1008
      %1138 = vst.msk [vmem:[%s172 + $0x2c] sm:$0xf] %vm1126, %v1009
      %1139 = vst.msk [vmem:[%s172 + $0x30] sm:$0xf] %vm1126, %v1010
      %1140 = vst.msk [vmem:[%s172 + $0x34] sm:$0xf] %vm1126, %v1011
      %1141 = vst.msk [vmem:[%s172 + $0x38] sm:$0xf] %vm1126, %v1012
      %1142 = vst.msk [vmem:[%s172 + $0x3c] sm:$0xf] %vm1126, %v1013
      %1143 = vst.msk [vmem:[%s172 + $0x40] sm:$0xf] %vm1126, %v1014
      %1144 = vst.msk [vmem:[%s172 + $0x44] sm:$0xf] %vm1126, %v1015
      %1145 = vst.msk [vmem:[%s172 + $0x48] sm:$0xf] %vm1126, %v1016
      %1146 = vst.msk [vmem:[%s172 + $0x4c] sm:$0xf] %vm1126, %v1017
      %1147 = vst.msk [vmem:[%s172 + $0x50] sm:$0xf] %vm1126, %v1018
      %1148 = vst.msk [vmem:[%s172 + $0x54] sm:$0xf] %vm1126, %v1019
      %1149 = vst.msk [vmem:[%s172 + $0x58] sm:$0xf] %vm1126, %v1020
      %1150 = vst.msk [vmem:[%s172 + $0x5c] sm:$0xf] %vm1126, %v1021
      %1151 = vst.msk [vmem:[%s172 + $0x60] sm:$0xf] %vm1126, %v1022
      %1152 = vst.msk [vmem:[%s172 + $0x64] sm:$0xf] %vm1126, %v1023
      %1153 = vst.msk [vmem:[%s172 + $0x68] sm:$0xf] %vm1126, %v1024
      %1154 = vst.msk [vmem:[%s172 + $0x6c] sm:$0xf] %vm1126, %v1025
      %1155 = vst.msk [vmem:[%s172 + $0x70] sm:$0xf] %vm1126, %v1026
      %1156 = vst.msk [vmem:[%s172 + $0x74] sm:$0xf] %vm1126, %v1027
      %1157 = vst.msk [vmem:[%s172 + $0x78] sm:$0xf] %vm1126, %v1028
      %1158 = vst.msk [vmem:[%s172 + $0x7c] sm:$0xf] %vm1126, %v1029
      %1159 = vst.msk [vmem:[%s172 + $0x80] sm:$0xf] %vm1126, %v1030
      %1160 = vst.msk [vmem:[%s172 + $0x84] sm:$0xf] %vm1126, %v1031
      %1161 = vst.msk [vmem:[%s172 + $0x88] sm:$0xf] %vm1126, %v1032
      %1162 = vst.msk [vmem:[%s172 + $0x8c] sm:$0xf] %vm1126, %v1033
      %1163 = vst.msk [vmem:[%s172 + $0x90] sm:$0xf] %vm1126, %v1034
      %1164 = vst.msk [vmem:[%s172 + $0x94] sm:$0xf] %vm1126, %v1035
      %1165 = vst.msk [vmem:[%s172 + $0x98] sm:$0xf] %vm1126, %v1036
      %1166 = vst.msk [vmem:[%s172 + $0x9c] sm:$0xf] %vm1126, %v1037
      %1167 = vst.msk [vmem:[%s172 + $0xa0] sm:$0xf] %vm1126, %v1038
      %1168 = vst.msk [vmem:[%s172 + $0xa4] sm:$0xf] %vm1126, %v1039
      %1169 = vst.msk [vmem:[%s172 + $0xa8] sm:$0xf] %vm1126, %v1040
      %1170 = vst.msk [vmem:[%s172 + $0xac] sm:$0xf] %vm1126, %v1041
      %1171 = vst.msk [vmem:[%s172 + $0xb0] sm:$0xf] %vm1126, %v1042
      %1172 = vst.msk [vmem:[%s172 + $0xb4] sm:$0xf] %vm1126, %v1043
      %1173 = vst.msk [vmem:[%s172 + $0xb8] sm:$0xf] %vm1126, %v1044
      %1174 = vst.msk [vmem:[%s172 + $0xbc] sm:$0xf] %vm1126, %v1045
      %1175 = vst.msk [vmem:[%s172 + $0xc0] sm:$0xf] %vm1126, %v1046
      %1176 = vst.msk [vmem:[%s172 + $0xc4] sm:$0xf] %vm1126, %v1047
      %1177 = vst.msk [vmem:[%s172 + $0xc8] sm:$0xf] %vm1126, %v1048
      %1178 = vst.msk [vmem:[%s172 + $0xcc] sm:$0xf] %vm1126, %v1049
      %1179 = vst.msk [vmem:[%s172 + $0xd0] sm:$0xf] %vm1126, %v1050
      %1180 = vst.msk [vmem:[%s172 + $0xd4] sm:$0xf] %vm1126, %v1051
      %1181 = vst.msk [vmem:[%s172 + $0xd8] sm:$0xf] %vm1126, %v1052
      %1182 = vst.msk [vmem:[%s172 + $0xdc] sm:$0xf] %vm1126, %v1053
      %1183 = vst.msk [vmem:[%s172 + $0xe0] sm:$0xf] %vm1126, %v1054
      %1184 = vst.msk [vmem:[%s172 + $0xe4] sm:$0xf] %vm1126, %v1055
      %1185 = vst.msk [vmem:[%s172 + $0xe8] sm:$0xf] %vm1126, %v1056
      %1186 = vst.msk [vmem:[%s172 + $0xec] sm:$0xf] %vm1126, %v1057
      %1187 = vst.msk [vmem:[%s172 + $0xf0] sm:$0xf] %vm1126, %v1058
      %1188 = vst.msk [vmem:[%s172 + $0xf4] sm:$0xf] %vm1126, %v1059
      %1189 = vst.msk [vmem:[%s172 + $0xf8] sm:$0xf] %vm1126, %v1060
      %1190 = vst.msk [vmem:[%s172 + $0xfc] sm:$0xf] %vm1126, %v1061
      %s1191 = smul.u32 64, %s14
      %p1192 = scmp.lt.s32.totalorder %s1191, 191
      %s1193 = scalar_select %p1192, %s1191, 191
      %s1194 = smul.addr %s1193, 4
      %s1195 = scalar_lea.vmem %s3, %s1194
      // Predicated region
      $region33: #{net2_forward.8} parent=31 // pred_check
        %p1196 = pneg %p100
      $region34: #{net2_forward.8} parent=31 // pred_check_branch
        %1198 = sbr.rel (%p1196) target = $region36
      $region35: #{net2_forward.8} parent=31 // pred_region
        %s1199 = smul.u32 64, %s14
      $region36: #{net2_forward.8} parent=31 // pred_fallthru
        _
    $region32: #{net2_forward.8} parent=5 // pred_fallthru
      _
    %p1200 = scmp.le.s32.totalorder 2, %s9
    // Predicated region
    $region37: #{net2_forward.8} parent=5 // pred_check
      %p1201 = pneg %p1200
    $region38: #{net2_forward.8} parent=5 // pred_check_branch
      %1203 = sbr.rel (%p1201) target = $region40
    $region39: #{net2_forward.8} parent=5 // pred_region
      %s1204 = ssub.s32 %s9, 2
      // Predicated region
      $region41: #{net2_forward.8} parent=39 // pred_check
        %p1205 = pneg %p106
      $region42: #{net2_forward.8} parent=39 // pred_check_branch
        %1207 = sbr.rel (%p1205) target = $region44
      $region43: #{net2_forward.8} parent=39 // pred_region
        %s1208 = smul.u32 64, %s15
        %p1209 = scmp.lt.s32.totalorder %s1208, 191
        %s1210 = scalar_select %p1209, %s1208, 191
        %s1211 = smul.addr %s1210, 4
        %s1212 = scalar_lea.vmem %s3, %s1211
      $region44: #{net2_forward.8} parent=39 // pred_fallthru
        _
    $region40: #{net2_forward.8} parent=5 // pred_fallthru
      _
  $region6: #{net2_forward.8} parent=0 // loop_footer
    %s13 = sadd.s32 1, %s9
  $region7: #{net2_forward.8} parent=0 // loop_footer_branch
    %8 = sbr.rel target = $region3
  $region8: #{net2_forward.8} parent=0 // loop_exit
    _

// kernel: net2_forward.9
$region0: #{net2_forward.9}
  #allocation0 [shape = 'u32[]', space=smem, size = 0x4, offset = 0x4, fixed_abs, tag = 'smem constant byte address 0x4 - core index']
  #allocation1 [shape = 'u32[144,128]{1,0:T(1,128)}', space=vmem, size = 0x12000, scoped, tag = 'internal scratch']
  %s0 = inlined_call_operand.vmem [shape: bf16[1536,144], index: 0, kind: input, shape index: {}]
  %s1 = inlined_call_operand.vmem [shape: bf16[144,32], index: 1, kind: input, shape index: {}]
  %s2 = inlined_call_operand.vmem [shape: f32[1,32], index: 2, kind: input, shape index: {}]
  %s3 = inlined_call_operand.vmem [shape: bf16[1536,32], index: 3, kind: output, shape index: {}]
  %s4 = sld [smem:[#allocation0]]
  $region45: #{net2_forward.9} parent=0
    _
  %s6 = ssub.s32 1, %s4
  %s7 = scalar_select 0, %s6, %s4
  loop: start=0, step=1, limit=5
  $region2: #{net2_forward.9} parent=0 // loop_pre_header
    _
  $region3: #{net2_forward.9} parent=0 // loop_header
    %s9 = sphi 0, %s13
    %p10 = scmp.ge.s32.totalorder %s9, 5
    %s19 = sphi 0, %s21
    %s22 = sphi 0, %s19
    %s23 = sphi 0, %s22
    %s39 = sphi 0, %s23
    %s43 = sphi 0, %s43
    %s45 = sphi 0, %s43
    %s46 = sphi 0, %s45
    %s60 = sphi 0, %s46
    %s64 = sphi 0, %s64
    %s66 = sphi 0, %s64
    %s67 = sphi 0, %s66
    %s81 = sphi 0, %s67
    %s87 = sphi 0, %s89
    %s90 = sphi 0, %s87
    %s91 = sphi 0, %s90
    %s107 = sphi 0, %s91
  $region4: #{net2_forward.9} parent=0 // loop_header_branch
    %12 = sbr.rel (%p10) target = $region8
  $region5: #{net2_forward.9} parent=0 // loop_body
    %s14 = ssub.s32 %s9, 1
    %s15 = ssub.s32 %s9, 2
    %s16 = sadd.s32 %s9, 1
    %s17 = ssub.s32 %s9, %s16
    %p18 = scmp.eq.s32.totalorder %s17, 0
    %s20 = sadd.s32 %s19, 1
    %s21 = scalar_select %p18, %s19, %s20
    %p24 = pneg %p18
    %p25 = scmp.eq.s32.totalorder %s9, 2
    %p26 = por %p24, %p25
    %p27 = scmp.ne.s32.totalorder %s19, %s22
    %p28 = scmp.eq.s32.totalorder %s9, 0
    %p29 = por %p27, %p28
    %p30 = scmp.ne.s32.totalorder %s19, %s22
    %p31 = scmp.eq.s32.totalorder %s14, 2
    %p32 = por %p30, %p31
    %p33 = scmp.ne.s32.totalorder %s22, %s23
    %p34 = scmp.eq.s32.totalorder %s14, 0
    %p35 = por %p33, %p34
    %p36 = scmp.ne.s32.totalorder %s22, %s23
    %p37 = scmp.eq.s32.totalorder %s15, 2
    %p38 = por %p36, %p37
    %p40 = scmp.ne.s32.totalorder %s23, %s39
    %p41 = scmp.eq.s32.totalorder %s15, 0
    %p42 = por %p40, %p41
    %s44 = sadd.s32 %s43, 1
    %p47 = scmp.eq.s32.totalorder %s9, 2
    %p48 = scmp.ne.s32.totalorder %s43, %s45
    %p49 = scmp.eq.s32.totalorder %s9, 0
    %p50 = por %p48, %p49
    %p51 = scmp.ne.s32.totalorder %s43, %s45
    %p52 = scmp.eq.s32.totalorder %s14, 2
    %p53 = por %p51, %p52
    %p54 = scmp.ne.s32.totalorder %s45, %s46
    %p55 = scmp.eq.s32.totalorder %s14, 0
    %p56 = por %p54, %p55
    %p57 = scmp.ne.s32.totalorder %s45, %s46
    %p58 = scmp.eq.s32.totalorder %s15, 2
    %p59 = por %p57, %p58
    %p61 = scmp.ne.s32.totalorder %s46, %s60
    %p62 = scmp.eq.s32.totalorder %s15, 0
    %p63 = por %p61, %p62
    %s65 = sadd.s32 %s64, 1
    %p68 = scmp.eq.s32.totalorder %s9, 2
    %p69 = scmp.ne.s32.totalorder %s64, %s66
    %p70 = scmp.eq.s32.totalorder %s9, 0
    %p71 = por %p69, %p70
    %p72 = scmp.ne.s32.totalorder %s64, %s66
    %p73 = scmp.eq.s32.totalorder %s14, 2
    %p74 = por %p72, %p73
    %p75 = scmp.ne.s32.totalorder %s66, %s67
    %p76 = scmp.eq.s32.totalorder %s14, 0
    %p77 = por %p75, %p76
    %p78 = scmp.ne.s32.totalorder %s66, %s67
    %p79 = scmp.eq.s32.totalorder %s15, 2
    %p80 = por %p78, %p79
    %p82 = scmp.ne.s32.totalorder %s67, %s81
    %p83 = scmp.eq.s32.totalorder %s15, 0
    %p84 = por %p82, %p83
    %s85 = ssub.s32 %s9, %s16
    %p86 = scmp.eq.s32.totalorder %s85, 0
    %s88 = sadd.s32 %s87, 1
    %s89 = scalar_select %p86, %s87, %s88
    %p92 = pneg %p86
    %p93 = scmp.eq.s32.totalorder %s9, 2
    %p94 = por %p92, %p93
    %p95 = scmp.ne.s32.totalorder %s87, %s90
    %p96 = scmp.eq.s32.totalorder %s9, 0
    %p97 = por %p95, %p96
    %p98 = scmp.ne.s32.totalorder %s87, %s90
    %p99 = scmp.eq.s32.totalorder %s14, 2
    %p100 = por %p98, %p99
    %p101 = scmp.ne.s32.totalorder %s90, %s91
    %p102 = scmp.eq.s32.totalorder %s14, 0
    %p103 = por %p101, %p102
    %p104 = scmp.ne.s32.totalorder %s90, %s91
    %p105 = scmp.eq.s32.totalorder %s15, 2
    %p106 = por %p104, %p105
    %p108 = scmp.ne.s32.totalorder %s91, %s107
    %p109 = scmp.eq.s32.totalorder %s15, 0
    %p110 = por %p108, %p109
    %p111 = scmp.le.s32.totalorder 1, %s9
    %p112 = scmp.lt.s32.totalorder %s9, 4
    %p113 = pnand %p111, %p112
    %p114 = pneg %p113
    // Predicated region
    $region9: #{net2_forward.9} parent=5 // pred_check
      _
    $region10: #{net2_forward.9} parent=5 // pred_check_branch
      %116 = sbr.rel (%p113) target = $region12
    $region11: #{net2_forward.9} parent=5 // pred_region
      %s117 = ssub.s32 %s9, 1
      // Predicated region
      $region13: #{net2_forward.9} parent=11 // pred_check
        %p118 = pneg %p56
      $region14: #{net2_forward.9} parent=11 // pred_check_branch
        %120 = sbr.rel (%p118) target = $region16
      $region15: #{net2_forward.9} parent=11 // pred_region
        _
      $region16: #{net2_forward.9} parent=11 // pred_fallthru
        _
      // Predicated region
      $region17: #{net2_forward.9} parent=11 // pred_check
        %p121 = pneg %p77
      $region18: #{net2_forward.9} parent=11 // pred_check_branch
        %123 = sbr.rel (%p121) target = $region20
      $region19: #{net2_forward.9} parent=11 // pred_region
        _
      $region20: #{net2_forward.9} parent=11 // pred_fallthru
        _
    $region12: #{net2_forward.9} parent=5 // pred_fallthru
      _
    %p124 = scmp.lt.s32.totalorder %s9, 3
    // Predicated region
    $region21: #{net2_forward.9} parent=5 // pred_check
      %p125 = pneg %p124
    $region22: #{net2_forward.9} parent=5 // pred_check_branch
      %127 = sbr.rel (%p125) target = $region24
    $region23: #{net2_forward.9} parent=5 // pred_region
      // Predicated region
      $region25: #{net2_forward.9} parent=23 // pred_check
        %p128 = pneg %p29
      $region26: #{net2_forward.9} parent=23 // pred_check_branch
        %130 = sbr.rel (%p128) target = $region28
      $region27: #{net2_forward.9} parent=23 // pred_region
        %s131 = smul.u32 64, %s9
        %p132 = scmp.lt.s32.totalorder %s131, 191
        %s133 = scalar_select %p132, %s131, 191
        %s134 = smul.addr %s133, 2
        %s135 = smul.addr %s134, 4
        %s136 = scalar_lea.vmem %s0, %s135
        %s137 = smul.u32 64, %s9
      $region28: #{net2_forward.9} parent=23 // pred_fallthru
        _
    $region24: #{net2_forward.9} parent=5 // pred_fallthru
      _
    %p138 = scmp.le.s32.totalorder 1, %s9
    %p139 = scmp.lt.s32.totalorder %s9, 4
    %p140 = pnand %p138, %p139
    %p141 = pneg %p140
    // Predicated region
    $region29: #{net2_forward.9} parent=5 // pred_check
      _
    $region30: #{net2_forward.9} parent=5 // pred_check_branch
      %143 = sbr.rel (%p140) target = $region32
    $region31: #{net2_forward.9} parent=5 // pred_region
      %s144 = ssub.s32 %s9, 1
      %s145 = smul.u32 64, %s14
      %p146 = scmp.lt.s32.totalorder %s145, 191
      %s147 = scalar_select %p146, %s145, 191
      %s148 = smul.addr %s147, 2
      %s149 = smul.addr %s148, 4
      %s150 = scalar_lea.vmem %s0, %s149
      %p151 = pneg %p35
      %p152 = pneg %p32
      %p153 = pneg %p56
      %p154 = pneg %p53
      %p155 = pneg %p77
      %p156 = pneg %p74
      %p157 = pneg %p103
      %p158 = pneg %p100
      %s159 = smul.u32 64, %s14
      %p160 = scmp.lt.s32.totalorder %s159, 191
      %s161 = scalar_select %p160, %s159, 191
      %s162 = smul.addr %s161, 4
      %s163 = scalar_lea.vmem %s3, %s162
      %s164 = smul.u32 64, %s14
      %p165 = scmp.lt.s32.totalorder %s164, 191
      %s166 = scalar_select %p165, %s164, 191
      %s167 = smul.addr %s166, 2
      %s168 = smul.addr %s167, 4
      %s169 = scalar_lea.vmem %s0, %s168
      %s170 = smul.u32 64, %s14
      %s171 = smul.u32 64, %s14
      %p172 = scmp.lt.s32.totalorder %s171, 191
      %s173 = scalar_select %p172, %s171, 191
      %s174 = smul.addr %s173, 4
      %s175 = scalar_lea.vmem %s3, %s174
      %s176 = smul.u32 64, %s14
      %v178 = vld [vmem:[%s169] sm:$0xff]
      %v179 = vld [vmem:[%s169 + $0x8] sm:$0xff]
      %v180 = vld [vmem:[%s169 + $0x10] sm:$0xff]
      %v181 = vld [vmem:[%s169 + $0x18] sm:$0xff]
      %v182 = vld [vmem:[%s169 + $0x20] sm:$0xff]
      %v183 = vld [vmem:[%s169 + $0x28] sm:$0xff]
      %v184 = vld [vmem:[%s169 + $0x30] sm:$0xff]
      %v185 = vld [vmem:[%s169 + $0x38] sm:$0xff]
      %v186 = vld [vmem:[%s169 + $0x40] sm:$0xff]
      %v187 = vld [vmem:[%s169 + $0x48] sm:$0xff]
      %v188 = vld [vmem:[%s169 + $0x50] sm:$0xff]
      %v189 = vld [vmem:[%s169 + $0x58] sm:$0xff]
      %v190 = vld [vmem:[%s169 + $0x60] sm:$0xff]
      %v191 = vld [vmem:[%s169 + $0x68] sm:$0xff]
      %v192 = vld [vmem:[%s169 + $0x70] sm:$0xff]
      %v193 = vld [vmem:[%s169 + $0x78] sm:$0xff]
      %v194 = vld [vmem:[%s169 + $0x80] sm:$0xff]
      %v195 = vld [vmem:[%s169 + $0x88] sm:$0xff]
      %v196 = vld [vmem:[%s169 + $0x90] sm:$0xff]
      %v197 = vld [vmem:[%s169 + $0x98] sm:$0xff]
      %v198 = vld [vmem:[%s169 + $0xa0] sm:$0xff]
      %v199 = vld [vmem:[%s169 + $0xa8] sm:$0xff]
      %v200 = vld [vmem:[%s169 + $0xb0] sm:$0xff]
      %v201 = vld [vmem:[%s169 + $0xb8] sm:$0xff]
      %v202 = vld [vmem:[%s169 + $0xc0] sm:$0xff]
      %v203 = vld [vmem:[%s169 + $0xc8] sm:$0xff]
      %v204 = vld [vmem:[%s169 + $0xd0] sm:$0xff]
      %v205 = vld [vmem:[%s169 + $0xd8] sm:$0xff]
      %v206 = vld [vmem:[%s169 + $0xe0] sm:$0xff]
      %v207 = vld [vmem:[%s169 + $0xe8] sm:$0xff]
      %v208 = vld [vmem:[%s169 + $0xf0] sm:$0xff]
      %v209 = vld [vmem:[%s169 + $0xf8] sm:$0xff]
      %v210 = vld [vmem:[%s169 + $0x100] sm:$0xff]
      %v211 = vld [vmem:[%s169 + $0x108] sm:$0xff]
      %v212 = vld [vmem:[%s169 + $0x110] sm:$0xff]
      %v213 = vld [vmem:[%s169 + $0x118] sm:$0xff]
      %v214 = vld [vmem:[%s169 + $0x120] sm:$0xff]
      %v215 = vld [vmem:[%s169 + $0x128] sm:$0xff]
      %v216 = vld [vmem:[%s169 + $0x130] sm:$0xff]
      %v217 = vld [vmem:[%s169 + $0x138] sm:$0xff]
      %v218 = vld [vmem:[%s169 + $0x140] sm:$0xff]
      %v219 = vld [vmem:[%s169 + $0x148] sm:$0xff]
      %v220 = vld [vmem:[%s169 + $0x150] sm:$0xff]
      %v221 = vld [vmem:[%s169 + $0x158] sm:$0xff]
      %v222 = vld [vmem:[%s169 + $0x160] sm:$0xff]
      %v223 = vld [vmem:[%s169 + $0x168] sm:$0xff]
      %v224 = vld [vmem:[%s169 + $0x170] sm:$0xff]
      %v225 = vld [vmem:[%s169 + $0x178] sm:$0xff]
      %v226 = vld [vmem:[%s169 + $0x180] sm:$0xff]
      %v227 = vld [vmem:[%s169 + $0x188] sm:$0xff]
      %v228 = vld [vmem:[%s169 + $0x190] sm:$0xff]
      %v229 = vld [vmem:[%s169 + $0x198] sm:$0xff]
      %v230 = vld [vmem:[%s169 + $0x1a0] sm:$0xff]
      %v231 = vld [vmem:[%s169 + $0x1a8] sm:$0xff]
      %v232 = vld [vmem:[%s169 + $0x1b0] sm:$0xff]
      %v233 = vld [vmem:[%s169 + $0x1b8] sm:$0xff]
      %v234 = vld [vmem:[%s169 + $0x1c0] sm:$0xff]
      %v235 = vld [vmem:[%s169 + $0x1c8] sm:$0xff]
      %v236 = vld [vmem:[%s169 + $0x1d0] sm:$0xff]
      %v237 = vld [vmem:[%s169 + $0x1d8] sm:$0xff]
      %v238 = vld [vmem:[%s169 + $0x1e0] sm:$0xff]
      %v239 = vld [vmem:[%s169 + $0x1e8] sm:$0xff]
      %v240 = vld [vmem:[%s169 + $0x1f0] sm:$0xff]
      %v241 = vld [vmem:[%s169 + $0x1f8] sm:$0xff]
      %v242 = vld [vmem:[%s1] sm:$0xf]
      %v243 = vld [vmem:[%s1 + $0x4] sm:$0xf]
      %v244 = vld [vmem:[%s1 + $0x8] sm:$0xf]
      %v245 = vld [vmem:[%s1 + $0xc] sm:$0xf]
      %v246 = vld [vmem:[%s1 + $0x10] sm:$0xf]
      %v247 = vld [vmem:[%s1 + $0x14] sm:$0xf]
      %v248 = vld [vmem:[%s1 + $0x18] sm:$0xf]
      %v249 = vld [vmem:[%s1 + $0x1c] sm:$0xf]
      %v250 = vld [vmem:[%s1 + $0x20] sm:$0xf]
      %v251 = vld [vmem:[%s1 + $0x24] sm:$0xf]
      %v252 = vld [vmem:[%s1 + $0x28] sm:$0xf]
      %v253 = vld [vmem:[%s1 + $0x2c] sm:$0xf]
      %v254 = vld [vmem:[%s1 + $0x30] sm:$0xf]
      %v255 = vld [vmem:[%s1 + $0x34] sm:$0xf]
      %v256 = vld [vmem:[%s1 + $0x38] sm:$0xf]
      %v257 = vld [vmem:[%s1 + $0x3c] sm:$0xf]
      %v258 = vld [vmem:[%s1 + $0x40] sm:$0xf]
      %v259 = vld [vmem:[%s1 + $0x44] sm:$0xf]
      %v260 = vld [vmem:[%s2] sm:$0x1]
      %v262 = vlaneseq
      %v263 = vshrl.u32 %v262, 7
      %v264 = vsub.s32 0, %v263
      %v265 = vrot.slane %v260, %v264
      %v331 = vunpack.c.l.b16 %v178
      %v332 = vunpack.c.h.b16 %v178
      %v333 = vunpack.c.l.b16 %v179
      %v334 = vunpack.c.h.b16 %v179
      %v335 = vunpack.c.l.b16 %v180
      %v336 = vunpack.c.h.b16 %v180
      %v337 = vunpack.c.l.b16 %v181
      %v338 = vunpack.c.h.b16 %v181
      %v339 = vunpack.c.l.b16 %v182
      %v340 = vunpack.c.h.b16 %v182
      %v341 = vunpack.c.l.b16 %v183
      %v342 = vunpack.c.h.b16 %v183
      %v343 = vunpack.c.l.b16 %v184
      %v344 = vunpack.c.h.b16 %v184
      %v345 = vunpack.c.l.b16 %v185
      %v346 = vunpack.c.h.b16 %v185
      %v347 = vunpack.c.l.b16 %v186
      %v348 = vunpack.c.h.b16 %v186
      %v349 = vunpack.c.l.b16 %v187
      %v350 = vunpack.c.h.b16 %v187
      %v351 = vunpack.c.l.b16 %v188
      %v352 = vunpack.c.h.b16 %v188
      %v353 = vunpack.c.l.b16 %v189
      %v354 = vunpack.c.h.b16 %v189
      %v355 = vunpack.c.l.b16 %v190
      %v356 = vunpack.c.h.b16 %v190
      %v357 = vunpack.c.l.b16 %v191
      %v358 = vunpack.c.h.b16 %v191
      %v359 = vunpack.c.l.b16 %v192
      %v360 = vunpack.c.h.b16 %v192
      %v361 = vunpack.c.l.b16 %v193
      %v362 = vunpack.c.h.b16 %v193
      %v363 = vunpack.c.l.b16 %v194
      %v364 = vunpack.c.h.b16 %v194
      %v365 = vunpack.c.l.b16 %v195
      %v366 = vunpack.c.h.b16 %v195
      %v367 = vunpack.c.l.b16 %v196
      %v368 = vunpack.c.h.b16 %v196
      %v369 = vunpack.c.l.b16 %v197
      %v370 = vunpack.c.h.b16 %v197
      %v371 = vunpack.c.l.b16 %v198
      %v372 = vunpack.c.h.b16 %v198
      %v373 = vunpack.c.l.b16 %v199
      %v374 = vunpack.c.h.b16 %v199
      %v375 = vunpack.c.l.b16 %v200
      %v376 = vunpack.c.h.b16 %v200
      %v377 = vunpack.c.l.b16 %v201
      %v378 = vunpack.c.h.b16 %v201
      %v379 = vunpack.c.l.b16 %v202
      %v380 = vunpack.c.h.b16 %v202
      %v381 = vunpack.c.l.b16 %v203
      %v382 = vunpack.c.h.b16 %v203
      %v383 = vunpack.c.l.b16 %v204
      %v384 = vunpack.c.h.b16 %v204
      %v385 = vunpack.c.l.b16 %v205
      %v386 = vunpack.c.h.b16 %v205
      %v387 = vunpack.c.l.b16 %v206
      %v388 = vunpack.c.h.b16 %v206
      %v389 = vunpack.c.l.b16 %v207
      %v390 = vunpack.c.h.b16 %v207
      %v391 = vunpack.c.l.b16 %v208
      %v392 = vunpack.c.h.b16 %v208
      %v393 = vunpack.c.l.b16 %v209
      %v394 = vunpack.c.h.b16 %v209
      %v395 = vunpack.c.l.b16 %v210
      %v396 = vunpack.c.h.b16 %v210
      %v397 = vunpack.c.l.b16 %v211
      %v398 = vunpack.c.h.b16 %v211
      %v399 = vunpack.c.l.b16 %v212
      %v400 = vunpack.c.h.b16 %v212
      %v401 = vunpack.c.l.b16 %v213
      %v402 = vunpack.c.h.b16 %v213
      %v403 = vunpack.c.l.b16 %v214
      %v404 = vunpack.c.h.b16 %v214
      %v405 = vunpack.c.l.b16 %v215
      %v406 = vunpack.c.h.b16 %v215
      %v407 = vunpack.c.l.b16 %v216
      %v408 = vunpack.c.h.b16 %v216
      %v409 = vunpack.c.l.b16 %v217
      %v410 = vunpack.c.h.b16 %v217
      %v411 = vunpack.c.l.b16 %v218
      %v412 = vunpack.c.h.b16 %v218
      %v413 = vunpack.c.l.b16 %v219
      %v414 = vunpack.c.h.b16 %v219
      %v415 = vunpack.c.l.b16 %v220
      %v416 = vunpack.c.h.b16 %v220
      %v417 = vunpack.c.l.b16 %v221
      %v418 = vunpack.c.h.b16 %v221
      %v419 = vunpack.c.l.b16 %v222
      %v420 = vunpack.c.h.b16 %v222
      %v421 = vunpack.c.l.b16 %v223
      %v422 = vunpack.c.h.b16 %v223
      %v423 = vunpack.c.l.b16 %v224
      %v424 = vunpack.c.h.b16 %v224
      %v425 = vunpack.c.l.b16 %v225
      %v426 = vunpack.c.h.b16 %v225
      %v427 = vunpack.c.l.b16 %v226
      %v428 = vunpack.c.h.b16 %v226
      %v429 = vunpack.c.l.b16 %v227
      %v430 = vunpack.c.h.b16 %v227
      %v431 = vunpack.c.l.b16 %v228
      %v432 = vunpack.c.h.b16 %v228
      %v433 = vunpack.c.l.b16 %v229
      %v434 = vunpack.c.h.b16 %v229
      %v435 = vunpack.c.l.b16 %v230
      %v436 = vunpack.c.h.b16 %v230
      %v437 = vunpack.c.l.b16 %v231
      %v438 = vunpack.c.h.b16 %v231
      %v439 = vunpack.c.l.b16 %v232
      %v440 = vunpack.c.h.b16 %v232
      %v441 = vunpack.c.l.b16 %v233
      %v442 = vunpack.c.h.b16 %v233
      %v443 = vunpack.c.l.b16 %v234
      %v444 = vunpack.c.h.b16 %v234
      %v445 = vunpack.c.l.b16 %v235
      %v446 = vunpack.c.h.b16 %v235
      %v447 = vunpack.c.l.b16 %v236
      %v448 = vunpack.c.h.b16 %v236
      %v449 = vunpack.c.l.b16 %v237
      %v450 = vunpack.c.h.b16 %v237
      %v451 = vunpack.c.l.b16 %v238
      %v452 = vunpack.c.h.b16 %v238
      %v453 = vunpack.c.l.b16 %v239
      %v454 = vunpack.c.h.b16 %v239
      %v455 = vunpack.c.l.b16 %v240
      %v456 = vunpack.c.h.b16 %v240
      %v457 = vunpack.c.l.b16 %v241
      %v458 = vunpack.c.h.b16 %v241
      %v459 = vpack.c.b16 %v333, %v331
      %v460 = vpack.c.b16 %v334, %v332
      %v461 = vpack.c.b16 %v337, %v335
      %v462 = vpack.c.b16 %v338, %v336
      %v463 = vpack.c.b16 %v341, %v339
      %v464 = vpack.c.b16 %v342, %v340
      %v465 = vpack.c.b16 %v345, %v343
      %v466 = vpack.c.b16 %v346, %v344
      %v467 = vpack.c.b16 %v349, %v347
      %v468 = vpack.c.b16 %v350, %v348
      %v469 = vpack.c.b16 %v353, %v351
      %v470 = vpack.c.b16 %v354, %v352
      %v471 = vpack.c.b16 %v357, %v355
      %v472 = vpack.c.b16 %v358, %v356
      %v473 = vpack.c.b16 %v361, %v359
      %v474 = vpack.c.b16 %v362, %v360
      %v475 = vpack.c.b16 %v365, %v363
      %v476 = vpack.c.b16 %v366, %v364
      %v477 = vpack.c.b16 %v369, %v367
      %v478 = vpack.c.b16 %v370, %v368
      %v479 = vpack.c.b16 %v373, %v371
      %v480 = vpack.c.b16 %v374, %v372
      %v481 = vpack.c.b16 %v377, %v375
      %v482 = vpack.c.b16 %v378, %v376
      %v483 = vpack.c.b16 %v381, %v379
      %v484 = vpack.c.b16 %v382, %v380
      %v485 = vpack.c.b16 %v385, %v383
      %v486 = vpack.c.b16 %v386, %v384
      %v487 = vpack.c.b16 %v389, %v387
      %v488 = vpack.c.b16 %v390, %v388
      %v489 = vpack.c.b16 %v393, %v391
      %v490 = vpack.c.b16 %v394, %v392
      %v491 = vpack.c.b16 %v397, %v395
      %v492 = vpack.c.b16 %v398, %v396
      %v493 = vpack.c.b16 %v401, %v399
      %v494 = vpack.c.b16 %v402, %v400
      %v495 = vpack.c.b16 %v405, %v403
      %v496 = vpack.c.b16 %v406, %v404
      %v497 = vpack.c.b16 %v409, %v407
      %v498 = vpack.c.b16 %v410, %v408
      %v499 = vpack.c.b16 %v413, %v411
      %v500 = vpack.c.b16 %v414, %v412
      %v501 = vpack.c.b16 %v417, %v415
      %v502 = vpack.c.b16 %v418, %v416
      %v503 = vpack.c.b16 %v421, %v419
      %v504 = vpack.c.b16 %v422, %v420
      %v505 = vpack.c.b16 %v425, %v423
      %v506 = vpack.c.b16 %v426, %v424
      %v507 = vpack.c.b16 %v429, %v427
      %v508 = vpack.c.b16 %v430, %v428
      %v509 = vpack.c.b16 %v433, %v431
      %v510 = vpack.c.b16 %v434, %v432
      %v511 = vpack.c.b16 %v437, %v435
      %v512 = vpack.c.b16 %v438, %v436
      %v513 = vpack.c.b16 %v441, %v439
      %v514 = vpack.c.b16 %v442, %v440
      %v515 = vpack.c.b16 %v445, %v443
      %v516 = vpack.c.b16 %v446, %v444
      %v517 = vpack.c.b16 %v449, %v447
      %v518 = vpack.c.b16 %v450, %v448
      %v519 = vpack.c.b16 %v453, %v451
      %v520 = vpack.c.b16 %v454, %v452
      %v521 = vpack.c.b16 %v457, %v455
      %v522 = vpack.c.b16 %v458, %v456
      %v573 = vunpack.c.l.b16 %v242
      %v574 = vunpack.c.l.b16 %v243
      %v575 = vunpack.c.l.b16 %v244
      %v576 = vunpack.c.l.b16 %v245
      %v577 = vunpack.c.l.b16 %v246
      %v578 = vunpack.c.l.b16 %v247
      %v579 = vunpack.c.l.b16 %v248
      %v580 = vunpack.c.l.b16 %v249
      %v581 = vunpack.c.l.b16 %v250
      %v582 = vunpack.c.l.b16 %v251
      %v583 = vunpack.c.l.b16 %v252
      %v584 = vunpack.c.l.b16 %v253
      %v585 = vunpack.c.l.b16 %v254
      %v586 = vunpack.c.l.b16 %v255
      %v587 = vunpack.c.l.b16 %v256
      %v588 = vunpack.c.l.b16 %v257
      %v589 = vunpack.c.l.b16 %v258
      %v590 = vunpack.c.l.b16 %v259
      %v591 = vpack.c.b16 %v574, %v573
      %v592 = vpack.c.b16 %v576, %v575
      %v593 = vpack.c.b16 %v578, %v577
      %v594 = vpack.c.b16 %v580, %v579
      %v595 = vpack.c.b16 %v582, %v581
      %v596 = vpack.c.b16 %v584, %v583
      %v597 = vpack.c.b16 %v586, %v585
      %v598 = vpack.c.b16 %v588, %v587
      %v599 = vpack.c.b16 %v590, %v589
      %vm609 = vcmask 130048
      %v611 = vsel %vm609, %v460, 0
      %v614 = vsel %vm609, %v462, 0
      %v617 = vsel %vm609, %v464, 0
      %v620 = vsel %vm609, %v466, 0
      %v623 = vsel %vm609, %v468, 0
      %v626 = vsel %vm609, %v470, 0
      %v629 = vsel %vm609, %v472, 0
      %v632 = vsel %vm609, %v474, 0
      %v635 = vsel %vm609, %v476, 0
      %v638 = vsel %vm609, %v478, 0
      %v641 = vsel %vm609, %v480, 0
      %v644 = vsel %vm609, %v482, 0
      %v647 = vsel %vm609, %v484, 0
      %v650 = vsel %vm609, %v486, 0
      %v653 = vsel %vm609, %v488, 0
      %v656 = vsel %vm609, %v490, 0
      %v659 = vsel %vm609, %v492, 0
      %v662 = vsel %vm609, %v494, 0
      %v665 = vsel %vm609, %v496, 0
      %v668 = vsel %vm609, %v498, 0
      %v671 = vsel %vm609, %v500, 0
      %v674 = vsel %vm609, %v502, 0
      %v677 = vsel %vm609, %v504, 0
      %v680 = vsel %vm609, %v506, 0
      %v683 = vsel %vm609, %v508, 0
      %v686 = vsel %vm609, %v510, 0
      %v689 = vsel %vm609, %v512, 0
      %v692 = vsel %vm609, %v514, 0
      %v695 = vsel %vm609, %v516, 0
      %v698 = vsel %vm609, %v518, 0
      %v701 = vsel %vm609, %v520, 0
      %v704 = vsel %vm609, %v522, 0
      %706 = vmatprep.subr.bf16.mxu0 0
      %707 = vmatpush1.bf16.msra.mxu0 %v591
      %708 = vmatprep.subr.bf16.mxu0 0
      %709 = vmatpush1.bf16.msra.mxu0 %v592
      %710 = vmatprep.subr.bf16.mxu0 0
      %711 = vmatpush1.bf16.msra.mxu0 %v593
      %712 = vmatprep.subr.bf16.mxu0 0
      %713 = vmatpush1.bf16.msra.mxu0 %v594
      %714 = vmatprep.subr.bf16.mxu0 0
      %715 = vmatpush1.bf16.msra.mxu0 %v595
      %716 = vmatprep.subr.bf16.mxu0 0
      %717 = vmatpush1.bf16.msra.mxu0 %v596
      %718 = vmatprep.subr.bf16.mxu0 0
      %719 = vmatpush1.bf16.msra.mxu0 %v597
      %720 = vmatprep.subr.bf16.mxu0 0
      %721 = vmatpush1.bf16.msra.mxu0 %v598
      %722 = vmatprep.subr.bf16.mxu0 0
      %723 = vmatpush1.bf16.msra.mxu0 %v599
      %724 = vmatprep.subr.bf16.mxu0 0
      %725 = vmatpush1.bf16.msra.mxu0 0
      %726 = vmatprep.subr.bf16.mxu0 0
      %727 = vmatpush1.bf16.msra.mxu0 0
      %728 = vmatprep.subr.bf16.mxu0 0
      %729 = vmatpush1.bf16.msra.mxu0 0
      %730 = vmatprep.subr.bf16.mxu0 0
      %731 = vmatpush1.bf16.msra.mxu0 0
      %732 = vmatprep.subr.bf16.mxu0 0
      %733 = vmatpush1.bf16.msra.mxu0 0
      %734 = vmatprep.subr.bf16.mxu0 0
      %735 = vmatpush1.bf16.msra.mxu0 0
      %736 = vmatprep.subr.bf16.mxu0 0
      %737 = vmatpush1.bf16.msra.mxu0 0
      %738 = vmatprep.mubr.bf16.mxu0 %v611
      %739 = vmatmul.mubr.bf16.gmra.mrb[0].mxu0 %v459
      %v740 = vpop.f32.mrb[0].mxu0
      %v741 = vadd.f32 %v265, %v740
      %v742 = vpop.f32.mrb[0].mxu0
      %v743 = vpop.f32.mrb[0].mxu0
      %v744 = vadd.f32 %v265, %v743
      %v745 = vpop.f32.mrb[0].mxu0
      %746 = vmatprep.mubr.bf16.mxu0 %v614
      %747 = vmatmul.mubr.bf16.gmra.mrb[0].mxu0 %v461
      %v748 = vpop.f32.mrb[0].mxu0
      %v749 = vadd.f32 %v265, %v748
      %v750 = vpop.f32.mrb[0].mxu0
      %v751 = vpop.f32.mrb[0].mxu0
      %v752 = vadd.f32 %v265, %v751
      %v753 = vpop.f32.mrb[0].mxu0
      %754 = vmatprep.mubr.bf16.mxu0 %v617
      %755 = vmatmul.mubr.bf16.gmra.mrb[0].mxu0 %v463
      %v756 = vpop.f32.mrb[0].mxu0
      %v757 = vadd.f32 %v265, %v756
      %v758 = vpop.f32.mrb[0].mxu0
      %v759 = vpop.f32.mrb[0].mxu0
      %v760 = vadd.f32 %v265, %v759
      %v761 = vpop.f32.mrb[0].mxu0
      %762 = vmatprep.mubr.bf16.mxu0 %v620
      %763 = vmatmul.mubr.bf16.gmra.mrb[0].mxu0 %v465
      %v764 = vpop.f32.mrb[0].mxu0
      %v765 = vadd.f32 %v265, %v764
      %v766 = vpop.f32.mrb[0].mxu0
      %v767 = vpop.f32.mrb[0].mxu0
      %v768 = vadd.f32 %v265, %v767
      %v769 = vpop.f32.mrb[0].mxu0
      %770 = vmatprep.mubr.bf16.mxu0 %v623
      %771 = vmatmul.mubr.bf16.gmra.mrb[0].mxu0 %v467
      %v772 = vpop.f32.mrb[0].mxu0
      %v773 = vadd.f32 %v265, %v772
      %v774 = vpop.f32.mrb[0].mxu0
      %v775 = vpop.f32.mrb[0].mxu0
      %v776 = vadd.f32 %v265, %v775
      %v777 = vpop.f32.mrb[0].mxu0
      %778 = vmatprep.mubr.bf16.mxu0 %v626
      %779 = vmatmul.mubr.bf16.gmra.mrb[0].mxu0 %v469
      %v780 = vpop.f32.mrb[0].mxu0
      %v781 = vadd.f32 %v265, %v780
      %v782 = vpop.f32.mrb[0].mxu0
      %v783 = vpop.f32.mrb[0].mxu0
      %v784 = vadd.f32 %v265, %v783
      %v785 = vpop.f32.mrb[0].mxu0
      %786 = vmatprep.mubr.bf16.mxu0 %v629
      %787 = vmatmul.mubr.bf16.gmra.mrb[0].mxu0 %v471
      %v788 = vpop.f32.mrb[0].mxu0
      %v789 = vadd.f32 %v265, %v788
      %v790 = vpop.f32.mrb[0].mxu0
      %v791 = vpop.f32.mrb[0].mxu0
      %v792 = vadd.f32 %v265, %v791
      %v793 = vpop.f32.mrb[0].mxu0
      %794 = vmatprep.mubr.bf16.mxu0 %v632
      %795 = vmatmul.mubr.bf16.gmra.mrb[0].mxu0 %v473
      %v796 = vpop.f32.mrb[0].mxu0
      %v797 = vadd.f32 %v265, %v796
      %v798 = vpop.f32.mrb[0].mxu0
      %v799 = vpop.f32.mrb[0].mxu0
      %v800 = vadd.f32 %v265, %v799
      %v801 = vpop.f32.mrb[0].mxu0
      %802 = vmatprep.mubr.bf16.mxu0 %v635
      %803 = vmatmul.mubr.bf16.gmra.mrb[0].mxu0 %v475
      %v804 = vpop.f32.mrb[0].mxu0
      %v805 = vadd.f32 %v265, %v804
      %v806 = vpop.f32.mrb[0].mxu0
      %v807 = vpop.f32.mrb[0].mxu0
      %v808 = vadd.f32 %v265, %v807
      %v809 = vpop.f32.mrb[0].mxu0
      %810 = vmatprep.mubr.bf16.mxu0 %v638
      %811 = vmatmul.mubr.bf16.gmra.mrb[0].mxu0 %v477
      %v812 = vpop.f32.mrb[0].mxu0
      %v813 = vadd.f32 %v265, %v812
      %v814 = vpop.f32.mrb[0].mxu0
      %v815 = vpop.f32.mrb[0].mxu0
      %v816 = vadd.f32 %v265, %v815
      %v817 = vpop.f32.mrb[0].mxu0
      %818 = vmatprep.mubr.bf16.mxu0 %v641
      %819 = vmatmul.mubr.bf16.gmra.mrb[0].mxu0 %v479
      %v820 = vpop.f32.mrb[0].mxu0
      %v821 = vadd.f32 %v265, %v820
      %v822 = vpop.f32.mrb[0].mxu0
      %v823 = vpop.f32.mrb[0].mxu0
      %v824 = vadd.f32 %v265, %v823
      %v825 = vpop.f32.mrb[0].mxu0
      %826 = vmatprep.mubr.bf16.mxu0 %v644
      %827 = vmatmul.mubr.bf16.gmra.mrb[0].mxu0 %v481
      %v828 = vpop.f32.mrb[0].mxu0
      %v829 = vadd.f32 %v265, %v828
      %v830 = vpop.f32.mrb[0].mxu0
      %v831 = vpop.f32.mrb[0].mxu0
      %v832 = vadd.f32 %v265, %v831
      %v833 = vpop.f32.mrb[0].mxu0
      %834 = vmatprep.mubr.bf16.mxu0 %v647
      %835 = vmatmul.mubr.bf16.gmra.mrb[0].mxu0 %v483
      %v836 = vpop.f32.mrb[0].mxu0
      %v837 = vadd.f32 %v265, %v836
      %v838 = vpop.f32.mrb[0].mxu0
      %v839 = vpop.f32.mrb[0].mxu0
      %v840 = vadd.f32 %v265, %v839
      %v841 = vpop.f32.mrb[0].mxu0
      %842 = vmatprep.mubr.bf16.mxu0 %v650
      %843 = vmatmul.mubr.bf16.gmra.mrb[0].mxu0 %v485
      %v844 = vpop.f32.mrb[0].mxu0
      %v845 = vadd.f32 %v265, %v844
      %v846 = vpop.f32.mrb[0].mxu0
      %v847 = vpop.f32.mrb[0].mxu0
      %v848 = vadd.f32 %v265, %v847
      %v849 = vpop.f32.mrb[0].mxu0
      %850 = vmatprep.mubr.bf16.mxu0 %v653
      %851 = vmatmul.mubr.bf16.gmra.mrb[0].mxu0 %v487
      %v852 = vpop.f32.mrb[0].mxu0
      %v853 = vadd.f32 %v265, %v852
      %v854 = vpop.f32.mrb[0].mxu0
      %v855 = vpop.f32.mrb[0].mxu0
      %v856 = vadd.f32 %v265, %v855
      %v857 = vpop.f32.mrb[0].mxu0
      %858 = vmatprep.mubr.bf16.mxu0 %v656
      %859 = vmatmul.mubr.bf16.gmra.mrb[0].mxu0 %v489
      %v860 = vpop.f32.mrb[0].mxu0
      %v861 = vadd.f32 %v265, %v860
      %v862 = vpop.f32.mrb[0].mxu0
      %v863 = vpop.f32.mrb[0].mxu0
      %v864 = vadd.f32 %v265, %v863
      %v865 = vpop.f32.mrb[0].mxu0
      %866 = vmatprep.mubr.bf16.mxu0 %v659
      %867 = vmatmul.mubr.bf16.gmra.mrb[0].mxu0 %v491
      %v868 = vpop.f32.mrb[0].mxu0
      %v869 = vadd.f32 %v265, %v868
      %v870 = vpop.f32.mrb[0].mxu0
      %v871 = vpop.f32.mrb[0].mxu0
      %v872 = vadd.f32 %v265, %v871
      %v873 = vpop.f32.mrb[0].mxu0
      %874 = vmatprep.mubr.bf16.mxu0 %v662
      %875 = vmatmul.mubr.bf16.gmra.mrb[0].mxu0 %v493
      %v876 = vpop.f32.mrb[0].mxu0
      %v877 = vadd.f32 %v265, %v876
      %v878 = vpop.f32.mrb[0].mxu0
      %v879 = vpop.f32.mrb[0].mxu0
      %v880 = vadd.f32 %v265, %v879
      %v881 = vpop.f32.mrb[0].mxu0
      %882 = vmatprep.mubr.bf16.mxu0 %v665
      %883 = vmatmul.mubr.bf16.gmra.mrb[0].mxu0 %v495
      %v884 = vpop.f32.mrb[0].mxu0
      %v885 = vadd.f32 %v265, %v884
      %v886 = vpop.f32.mrb[0].mxu0
      %v887 = vpop.f32.mrb[0].mxu0
      %v888 = vadd.f32 %v265, %v887
      %v889 = vpop.f32.mrb[0].mxu0
      %890 = vmatprep.mubr.bf16.mxu0 %v668
      %891 = vmatmul.mubr.bf16.gmra.mrb[0].mxu0 %v497
      %v892 = vpop.f32.mrb[0].mxu0
      %v893 = vadd.f32 %v265, %v892
      %v894 = vpop.f32.mrb[0].mxu0
      %v895 = vpop.f32.mrb[0].mxu0
      %v896 = vadd.f32 %v265, %v895
      %v897 = vpop.f32.mrb[0].mxu0
      %898 = vmatprep.mubr.bf16.mxu0 %v671
      %899 = vmatmul.mubr.bf16.gmra.mrb[0].mxu0 %v499
      %v900 = vpop.f32.mrb[0].mxu0
      %v901 = vadd.f32 %v265, %v900
      %v902 = vpop.f32.mrb[0].mxu0
      %v903 = vpop.f32.mrb[0].mxu0
      %v904 = vadd.f32 %v265, %v903
      %v905 = vpop.f32.mrb[0].mxu0
      %906 = vmatprep.mubr.bf16.mxu0 %v674
      %907 = vmatmul.mubr.bf16.gmra.mrb[0].mxu0 %v501
      %v908 = vpop.f32.mrb[0].mxu0
      %v909 = vadd.f32 %v265, %v908
      %v910 = vpop.f32.mrb[0].mxu0
      %v911 = vpop.f32.mrb[0].mxu0
      %v912 = vadd.f32 %v265, %v911
      %v913 = vpop.f32.mrb[0].mxu0
      %914 = vmatprep.mubr.bf16.mxu0 %v677
      %915 = vmatmul.mubr.bf16.gmra.mrb[0].mxu0 %v503
      %v916 = vpop.f32.mrb[0].mxu0
      %v917 = vadd.f32 %v265, %v916
      %v918 = vpop.f32.mrb[0].mxu0
      %v919 = vpop.f32.mrb[0].mxu0
      %v920 = vadd.f32 %v265, %v919
      %v921 = vpop.f32.mrb[0].mxu0
      %922 = vmatprep.mubr.bf16.mxu0 %v680
      %923 = vmatmul.mubr.bf16.gmra.mrb[0].mxu0 %v505
      %v924 = vpop.f32.mrb[0].mxu0
      %v925 = vadd.f32 %v265, %v924
      %v926 = vpop.f32.mrb[0].mxu0
      %v927 = vpop.f32.mrb[0].mxu0
      %v928 = vadd.f32 %v265, %v927
      %v929 = vpop.f32.mrb[0].mxu0
      %930 = vmatprep.mubr.bf16.mxu0 %v683
      %931 = vmatmul.mubr.bf16.gmra.mrb[0].mxu0 %v507
      %v932 = vpop.f32.mrb[0].mxu0
      %v933 = vadd.f32 %v265, %v932
      %v934 = vpop.f32.mrb[0].mxu0
      %v935 = vpop.f32.mrb[0].mxu0
      %v936 = vadd.f32 %v265, %v935
      %v937 = vpop.f32.mrb[0].mxu0
      %938 = vmatprep.mubr.bf16.mxu0 %v686
      %939 = vmatmul.mubr.bf16.gmra.mrb[0].mxu0 %v509
      %v940 = vpop.f32.mrb[0].mxu0
      %v941 = vadd.f32 %v265, %v940
      %v942 = vpop.f32.mrb[0].mxu0
      %v943 = vpop.f32.mrb[0].mxu0
      %v944 = vadd.f32 %v265, %v943
      %v945 = vpop.f32.mrb[0].mxu0
      %946 = vmatprep.mubr.bf16.mxu0 %v689
      %947 = vmatmul.mubr.bf16.gmra.mrb[0].mxu0 %v511
      %v948 = vpop.f32.mrb[0].mxu0
      %v949 = vadd.f32 %v265, %v948
      %v950 = vpop.f32.mrb[0].mxu0
      %v951 = vpop.f32.mrb[0].mxu0
      %v952 = vadd.f32 %v265, %v951
      %v953 = vpop.f32.mrb[0].mxu0
      %954 = vmatprep.mubr.bf16.mxu0 %v692
      %955 = vmatmul.mubr.bf16.gmra.mrb[0].mxu0 %v513
      %v956 = vpop.f32.mrb[0].mxu0
      %v957 = vadd.f32 %v265, %v956
      %v958 = vpop.f32.mrb[0].mxu0
      %v959 = vpop.f32.mrb[0].mxu0
      %v960 = vadd.f32 %v265, %v959
      %v961 = vpop.f32.mrb[0].mxu0
      %962 = vmatprep.mubr.bf16.mxu0 %v695
      %963 = vmatmul.mubr.bf16.gmra.mrb[0].mxu0 %v515
      %v964 = vpop.f32.mrb[0].mxu0
      %v965 = vadd.f32 %v265, %v964
      %v966 = vpop.f32.mrb[0].mxu0
      %v967 = vpop.f32.mrb[0].mxu0
      %v968 = vadd.f32 %v265, %v967
      %v969 = vpop.f32.mrb[0].mxu0
      %970 = vmatprep.mubr.bf16.mxu0 %v698
      %971 = vmatmul.mubr.bf16.gmra.mrb[0].mxu0 %v517
      %v972 = vpop.f32.mrb[0].mxu0
      %v973 = vadd.f32 %v265, %v972
      %v974 = vpop.f32.mrb[0].mxu0
      %v975 = vpop.f32.mrb[0].mxu0
      %v976 = vadd.f32 %v265, %v975
      %v977 = vpop.f32.mrb[0].mxu0
      %978 = vmatprep.mubr.bf16.mxu0 %v701
      %979 = vmatmul.mubr.bf16.gmra.mrb[0].mxu0 %v519
      %v980 = vpop.f32.mrb[0].mxu0
      %v981 = vadd.f32 %v265, %v980
      %v982 = vpop.f32.mrb[0].mxu0
      %v983 = vpop.f32.mrb[0].mxu0
      %v984 = vadd.f32 %v265, %v983
      %v985 = vpop.f32.mrb[0].mxu0
      %986 = vmatprep.mubr.bf16.mxu0 %v704
      %987 = vmatmul.mubr.bf16.gmra.mrb[0].mxu0 %v521
      %v988 = vpop.f32.mrb[0].mxu0
      %v989 = vadd.f32 %v265, %v988
      %v990 = vpop.f32.mrb[0].mxu0
      %v991 = vpop.f32.mrb[0].mxu0
      %v992 = vadd.f32 %v265, %v991
      %v993 = vpop.f32.mrb[0].mxu0
      %994 = vdwg.mxu0
      %v995 = vmax.f32 %v741, 0.0
      %v996 = vmax.f32 %v744, 0.0
      %v997 = vmax.f32 %v749, 0.0
      %v998 = vmax.f32 %v752, 0.0
      %v999 = vmax.f32 %v757, 0.0
      %v1000 = vmax.f32 %v760, 0.0
      %v1001 = vmax.f32 %v765, 0.0
      %v1002 = vmax.f32 %v768, 0.0
      %v1003 = vmax.f32 %v773, 0.0
      %v1004 = vmax.f32 %v776, 0.0
      %v1005 = vmax.f32 %v781, 0.0
      %v1006 = vmax.f32 %v784, 0.0
      %v1007 = vmax.f32 %v789, 0.0
      %v1008 = vmax.f32 %v792, 0.0
      %v1009 = vmax.f32 %v797, 0.0
      %v1010 = vmax.f32 %v800, 0.0
      %v1011 = vmax.f32 %v805, 0.0
      %v1012 = vmax.f32 %v808, 0.0
      %v1013 = vmax.f32 %v813, 0.0
      %v1014 = vmax.f32 %v816, 0.0
      %v1015 = vmax.f32 %v821, 0.0
      %v1016 = vmax.f32 %v824, 0.0
      %v1017 = vmax.f32 %v829, 0.0
      %v1018 = vmax.f32 %v832, 0.0
      %v1019 = vmax.f32 %v837, 0.0
      %v1020 = vmax.f32 %v840, 0.0
      %v1021 = vmax.f32 %v845, 0.0
      %v1022 = vmax.f32 %v848, 0.0
      %v1023 = vmax.f32 %v853, 0.0
      %v1024 = vmax.f32 %v856, 0.0
      %v1025 = vmax.f32 %v861, 0.0
      %v1026 = vmax.f32 %v864, 0.0
      %v1027 = vmax.f32 %v869, 0.0
      %v1028 = vmax.f32 %v872, 0.0
      %v1029 = vmax.f32 %v877, 0.0
      %v1030 = vmax.f32 %v880, 0.0
      %v1031 = vmax.f32 %v885, 0.0
      %v1032 = vmax.f32 %v888, 0.0
      %v1033 = vmax.f32 %v893, 0.0
      %v1034 = vmax.f32 %v896, 0.0
      %v1035 = vmax.f32 %v901, 0.0
      %v1036 = vmax.f32 %v904, 0.0
      %v1037 = vmax.f32 %v909, 0.0
      %v1038 = vmax.f32 %v912, 0.0
      %v1039 = vmax.f32 %v917, 0.0
      %v1040 = vmax.f32 %v920, 0.0
      %v1041 = vmax.f32 %v925, 0.0
      %v1042 = vmax.f32 %v928, 0.0
      %v1043 = vmax.f32 %v933, 0.0
      %v1044 = vmax.f32 %v936, 0.0
      %v1045 = vmax.f32 %v941, 0.0
      %v1046 = vmax.f32 %v944, 0.0
      %v1047 = vmax.f32 %v949, 0.0
      %v1048 = vmax.f32 %v952, 0.0
      %v1049 = vmax.f32 %v957, 0.0
      %v1050 = vmax.f32 %v960, 0.0
      %v1051 = vmax.f32 %v965, 0.0
      %v1052 = vmax.f32 %v968, 0.0
      %v1053 = vmax.f32 %v973, 0.0
      %v1054 = vmax.f32 %v976, 0.0
      %v1055 = vmax.f32 %v981, 0.0
      %v1056 = vmax.f32 %v984, 0.0
      %v1057 = vmax.f32 %v989, 0.0
      %v1058 = vmax.f32 %v992, 0.0
      %v1059 = vpack.c.bf16 %v996, %v995
      %v1060 = vpack.c.bf16 %v998, %v997
      %v1061 = vpack.c.bf16 %v1000, %v999
      %v1062 = vpack.c.bf16 %v1002, %v1001
      %v1063 = vpack.c.bf16 %v1004, %v1003
      %v1064 = vpack.c.bf16 %v1006, %v1005
      %v1065 = vpack.c.bf16 %v1008, %v1007
      %v1066 = vpack.c.bf16 %v1010, %v1009
      %v1067 = vpack.c.bf16 %v1012, %v1011
      %v1068 = vpack.c.bf16 %v1014, %v1013
      %v1069 = vpack.c.bf16 %v1016, %v1015
      %v1070 = vpack.c.bf16 %v1018, %v1017
      %v1071 = vpack.c.bf16 %v1020, %v1019
      %v1072 = vpack.c.bf16 %v1022, %v1021
      %v1073 = vpack.c.bf16 %v1024, %v1023
      %v1074 = vpack.c.bf16 %v1026, %v1025
      %v1075 = vpack.c.bf16 %v1028, %v1027
      %v1076 = vpack.c.bf16 %v1030, %v1029
      %v1077 = vpack.c.bf16 %v1032, %v1031
      %v1078 = vpack.c.bf16 %v1034, %v1033
      %v1079 = vpack.c.bf16 %v1036, %v1035
      %v1080 = vpack.c.bf16 %v1038, %v1037
      %v1081 = vpack.c.bf16 %v1040, %v1039
      %v1082 = vpack.c.bf16 %v1042, %v1041
      %v1083 = vpack.c.bf16 %v1044, %v1043
      %v1084 = vpack.c.bf16 %v1046, %v1045
      %v1085 = vpack.c.bf16 %v1048, %v1047
      %v1086 = vpack.c.bf16 %v1050, %v1049
      %v1087 = vpack.c.bf16 %v1052, %v1051
      %v1088 = vpack.c.bf16 %v1054, %v1053
      %v1089 = vpack.c.bf16 %v1056, %v1055
      %v1090 = vpack.c.bf16 %v1058, %v1057
      %v1123 = vunpack.c.l.b16 %v1059
      %v1124 = vunpack.c.h.b16 %v1059
      %v1125 = vunpack.c.l.b16 %v1060
      %v1126 = vunpack.c.h.b16 %v1060
      %v1127 = vunpack.c.l.b16 %v1061
      %v1128 = vunpack.c.h.b16 %v1061
      %v1129 = vunpack.c.l.b16 %v1062
      %v1130 = vunpack.c.h.b16 %v1062
      %v1131 = vunpack.c.l.b16 %v1063
      %v1132 = vunpack.c.h.b16 %v1063
      %v1133 = vunpack.c.l.b16 %v1064
      %v1134 = vunpack.c.h.b16 %v1064
      %v1135 = vunpack.c.l.b16 %v1065
      %v1136 = vunpack.c.h.b16 %v1065
      %v1137 = vunpack.c.l.b16 %v1066
      %v1138 = vunpack.c.h.b16 %v1066
      %v1139 = vunpack.c.l.b16 %v1067
      %v1140 = vunpack.c.h.b16 %v1067
      %v1141 = vunpack.c.l.b16 %v1068
      %v1142 = vunpack.c.h.b16 %v1068
      %v1143 = vunpack.c.l.b16 %v1069
      %v1144 = vunpack.c.h.b16 %v1069
      %v1145 = vunpack.c.l.b16 %v1070
      %v1146 = vunpack.c.h.b16 %v1070
      %v1147 = vunpack.c.l.b16 %v1071
      %v1148 = vunpack.c.h.b16 %v1071
      %v1149 = vunpack.c.l.b16 %v1072
      %v1150 = vunpack.c.h.b16 %v1072
      %v1151 = vunpack.c.l.b16 %v1073
      %v1152 = vunpack.c.h.b16 %v1073
      %v1153 = vunpack.c.l.b16 %v1074
      %v1154 = vunpack.c.h.b16 %v1074
      %v1155 = vunpack.c.l.b16 %v1075
      %v1156 = vunpack.c.h.b16 %v1075
      %v1157 = vunpack.c.l.b16 %v1076
      %v1158 = vunpack.c.h.b16 %v1076
      %v1159 = vunpack.c.l.b16 %v1077
      %v1160 = vunpack.c.h.b16 %v1077
      %v1161 = vunpack.c.l.b16 %v1078
      %v1162 = vunpack.c.h.b16 %v1078
      %v1163 = vunpack.c.l.b16 %v1079
      %v1164 = vunpack.c.h.b16 %v1079
      %v1165 = vunpack.c.l.b16 %v1080
      %v1166 = vunpack.c.h.b16 %v1080
      %v1167 = vunpack.c.l.b16 %v1081
      %v1168 = vunpack.c.h.b16 %v1081
      %v1169 = vunpack.c.l.b16 %v1082
      %v1170 = vunpack.c.h.b16 %v1082
      %v1171 = vunpack.c.l.b16 %v1083
      %v1172 = vunpack.c.h.b16 %v1083
      %v1173 = vunpack.c.l.b16 %v1084
      %v1174 = vunpack.c.h.b16 %v1084
      %v1175 = vunpack.c.l.b16 %v1085
      %v1176 = vunpack.c.h.b16 %v1085
      %v1177 = vunpack.c.l.b16 %v1086
      %v1178 = vunpack.c.h.b16 %v1086
      %v1179 = vunpack.c.l.b16 %v1087
      %v1180 = vunpack.c.h.b16 %v1087
      %v1181 = vunpack.c.l.b16 %v1088
      %v1182 = vunpack.c.h.b16 %v1088
      %v1183 = vunpack.c.l.b16 %v1089
      %v1184 = vunpack.c.h.b16 %v1089
      %v1185 = vunpack.c.l.b16 %v1090
      %v1186 = vunpack.c.h.b16 %v1090
      %v1187 = vpack.c.b16 %v1123, %v1123
      %v1188 = vpack.c.b16 %v1124, %v1124
      %v1189 = vpack.c.b16 %v1125, %v1125
      %v1190 = vpack.c.b16 %v1126, %v1126
      %v1191 = vpack.c.b16 %v1127, %v1127
      %v1192 = vpack.c.b16 %v1128, %v1128
      %v1193 = vpack.c.b16 %v1129, %v1129
      %v1194 = vpack.c.b16 %v1130, %v1130
      %v1195 = vpack.c.b16 %v1131, %v1131
      %v1196 = vpack.c.b16 %v1132, %v1132
      %v1197 = vpack.c.b16 %v1133, %v1133
      %v1198 = vpack.c.b16 %v1134, %v1134
      %v1199 = vpack.c.b16 %v1135, %v1135
      %v1200 = vpack.c.b16 %v1136, %v1136
      %v1201 = vpack.c.b16 %v1137, %v1137
      %v1202 = vpack.c.b16 %v1138, %v1138
      %v1203 = vpack.c.b16 %v1139, %v1139
      %v1204 = vpack.c.b16 %v1140, %v1140
      %v1205 = vpack.c.b16 %v1141, %v1141
      %v1206 = vpack.c.b16 %v1142, %v1142
      %v1207 = vpack.c.b16 %v1143, %v1143
      %v1208 = vpack.c.b16 %v1144, %v1144
      %v1209 = vpack.c.b16 %v1145, %v1145
      %v1210 = vpack.c.b16 %v1146, %v1146
      %v1211 = vpack.c.b16 %v1147, %v1147
      %v1212 = vpack.c.b16 %v1148, %v1148
      %v1213 = vpack.c.b16 %v1149, %v1149
      %v1214 = vpack.c.b16 %v1150, %v1150
      %v1215 = vpack.c.b16 %v1151, %v1151
      %v1216 = vpack.c.b16 %v1152, %v1152
      %v1217 = vpack.c.b16 %v1153, %v1153
      %v1218 = vpack.c.b16 %v1154, %v1154
      %v1219 = vpack.c.b16 %v1155, %v1155
      %v1220 = vpack.c.b16 %v1156, %v1156
      %v1221 = vpack.c.b16 %v1157, %v1157
      %v1222 = vpack.c.b16 %v1158, %v1158
      %v1223 = vpack.c.b16 %v1159, %v1159
      %v1224 = vpack.c.b16 %v1160, %v1160
      %v1225 = vpack.c.b16 %v1161, %v1161
      %v1226 = vpack.c.b16 %v1162, %v1162
      %v1227 = vpack.c.b16 %v1163, %v1163
      %v1228 = vpack.c.b16 %v1164, %v1164
      %v1229 = vpack.c.b16 %v1165, %v1165
      %v1230 = vpack.c.b16 %v1166, %v1166
      %v1231 = vpack.c.b16 %v1167, %v1167
      %v1232 = vpack.c.b16 %v1168, %v1168
      %v1233 = vpack.c.b16 %v1169, %v1169
      %v1234 = vpack.c.b16 %v1170, %v1170
      %v1235 = vpack.c.b16 %v1171, %v1171
      %v1236 = vpack.c.b16 %v1172, %v1172
      %v1237 = vpack.c.b16 %v1173, %v1173
      %v1238 = vpack.c.b16 %v1174, %v1174
      %v1239 = vpack.c.b16 %v1175, %v1175
      %v1240 = vpack.c.b16 %v1176, %v1176
      %v1241 = vpack.c.b16 %v1177, %v1177
      %v1242 = vpack.c.b16 %v1178, %v1178
      %v1243 = vpack.c.b16 %v1179, %v1179
      %v1244 = vpack.c.b16 %v1180, %v1180
      %v1245 = vpack.c.b16 %v1181, %v1181
      %v1246 = vpack.c.b16 %v1182, %v1182
      %v1247 = vpack.c.b16 %v1183, %v1183
      %v1248 = vpack.c.b16 %v1184, %v1184
      %v1249 = vpack.c.b16 %v1185, %v1185
      %v1250 = vpack.c.b16 %v1186, %v1186
      %vm1315 = vcmask 257024
      %1316 = vst.msk [vmem:[%s175] sm:$0xf] %vm1315, %v1187
      %1317 = vst.msk [vmem:[%s175 + $0x4] sm:$0xf] %vm1315, %v1188
      %1318 = vst.msk [vmem:[%s175 + $0x8] sm:$0xf] %vm1315, %v1189
      %1319 = vst.msk [vmem:[%s175 + $0xc] sm:$0xf] %vm1315, %v1190
      %1320 = vst.msk [vmem:[%s175 + $0x10] sm:$0xf] %vm1315, %v1191
      %1321 = vst.msk [vmem:[%s175 + $0x14] sm:$0xf] %vm1315, %v1192
      %1322 = vst.msk [vmem:[%s175 + $0x18] sm:$0xf] %vm1315, %v1193
      %1323 = vst.msk [vmem:[%s175 + $0x1c] sm:$0xf] %vm1315, %v1194
      %1324 = vst.msk [vmem:[%s175 + $0x20] sm:$0xf] %vm1315, %v1195
      %1325 = vst.msk [vmem:[%s175 + $0x24] sm:$0xf] %vm1315, %v1196
      %1326 = vst.msk [vmem:[%s175 + $0x28] sm:$0xf] %vm1315, %v1197
      %1327 = vst.msk [vmem:[%s175 + $0x2c] sm:$0xf] %vm1315, %v1198
      %1328 = vst.msk [vmem:[%s175 + $0x30] sm:$0xf] %vm1315, %v1199
      %1329 = vst.msk [vmem:[%s175 + $0x34] sm:$0xf] %vm1315, %v1200
      %1330 = vst.msk [vmem:[%s175 + $0x38] sm:$0xf] %vm1315, %v1201
      %1331 = vst.msk [vmem:[%s175 + $0x3c] sm:$0xf] %vm1315, %v1202
      %1332 = vst.msk [vmem:[%s175 + $0x40] sm:$0xf] %vm1315, %v1203
      %1333 = vst.msk [vmem:[%s175 + $0x44] sm:$0xf] %vm1315, %v1204
      %1334 = vst.msk [vmem:[%s175 + $0x48] sm:$0xf] %vm1315, %v1205
      %1335 = vst.msk [vmem:[%s175 + $0x4c] sm:$0xf] %vm1315, %v1206
      %1336 = vst.msk [vmem:[%s175 + $0x50] sm:$0xf] %vm1315, %v1207
      %1337 = vst.msk [vmem:[%s175 + $0x54] sm:$0xf] %vm1315, %v1208
      %1338 = vst.msk [vmem:[%s175 + $0x58] sm:$0xf] %vm1315, %v1209
      %1339 = vst.msk [vmem:[%s175 + $0x5c] sm:$0xf] %vm1315, %v1210
      %1340 = vst.msk [vmem:[%s175 + $0x60] sm:$0xf] %vm1315, %v1211
      %1341 = vst.msk [vmem:[%s175 + $0x64] sm:$0xf] %vm1315, %v1212
      %1342 = vst.msk [vmem:[%s175 + $0x68] sm:$0xf] %vm1315, %v1213
      %1343 = vst.msk [vmem:[%s175 + $0x6c] sm:$0xf] %vm1315, %v1214
      %1344 = vst.msk [vmem:[%s175 + $0x70] sm:$0xf] %vm1315, %v1215
      %1345 = vst.msk [vmem:[%s175 + $0x74] sm:$0xf] %vm1315, %v1216
      %1346 = vst.msk [vmem:[%s175 + $0x78] sm:$0xf] %vm1315, %v1217
      %1347 = vst.msk [vmem:[%s175 + $0x7c] sm:$0xf] %vm1315, %v1218
      %1348 = vst.msk [vmem:[%s175 + $0x80] sm:$0xf] %vm1315, %v1219
      %1349 = vst.msk [vmem:[%s175 + $0x84] sm:$0xf] %vm1315, %v1220
      %1350 = vst.msk [vmem:[%s175 + $0x88] sm:$0xf] %vm1315, %v1221
      %1351 = vst.msk [vmem:[%s175 + $0x8c] sm:$0xf] %vm1315, %v1222
      %1352 = vst.msk [vmem:[%s175 + $0x90] sm:$0xf] %vm1315, %v1223
      %1353 = vst.msk [vmem:[%s175 + $0x94] sm:$0xf] %vm1315, %v1224
      %1354 = vst.msk [vmem:[%s175 + $0x98] sm:$0xf] %vm1315, %v1225
      %1355 = vst.msk [vmem:[%s175 + $0x9c] sm:$0xf] %vm1315, %v1226
      %1356 = vst.msk [vmem:[%s175 + $0xa0] sm:$0xf] %vm1315, %v1227
      %1357 = vst.msk [vmem:[%s175 + $0xa4] sm:$0xf] %vm1315, %v1228
      %1358 = vst.msk [vmem:[%s175 + $0xa8] sm:$0xf] %vm1315, %v1229
      %1359 = vst.msk [vmem:[%s175 + $0xac] sm:$0xf] %vm1315, %v1230
      %1360 = vst.msk [vmem:[%s175 + $0xb0] sm:$0xf] %vm1315, %v1231
      %1361 = vst.msk [vmem:[%s175 + $0xb4] sm:$0xf] %vm1315, %v1232
      %1362 = vst.msk [vmem:[%s175 + $0xb8] sm:$0xf] %vm1315, %v1233
      %1363 = vst.msk [vmem:[%s175 + $0xbc] sm:$0xf] %vm1315, %v1234
      %1364 = vst.msk [vmem:[%s175 + $0xc0] sm:$0xf] %vm1315, %v1235
      %1365 = vst.msk [vmem:[%s175 + $0xc4] sm:$0xf] %vm1315, %v1236
      %1366 = vst.msk [vmem:[%s175 + $0xc8] sm:$0xf] %vm1315, %v1237
      %1367 = vst.msk [vmem:[%s175 + $0xcc] sm:$0xf] %vm1315, %v1238
      %1368 = vst.msk [vmem:[%s175 + $0xd0] sm:$0xf] %vm1315, %v1239
      %1369 = vst.msk [vmem:[%s175 + $0xd4] sm:$0xf] %vm1315, %v1240
      %1370 = vst.msk [vmem:[%s175 + $0xd8] sm:$0xf] %vm1315, %v1241
      %1371 = vst.msk [vmem:[%s175 + $0xdc] sm:$0xf] %vm1315, %v1242
      %1372 = vst.msk [vmem:[%s175 + $0xe0] sm:$0xf] %vm1315, %v1243
      %1373 = vst.msk [vmem:[%s175 + $0xe4] sm:$0xf] %vm1315, %v1244
      %1374 = vst.msk [vmem:[%s175 + $0xe8] sm:$0xf] %vm1315, %v1245
      %1375 = vst.msk [vmem:[%s175 + $0xec] sm:$0xf] %vm1315, %v1246
      %1376 = vst.msk [vmem:[%s175 + $0xf0] sm:$0xf] %vm1315, %v1247
      %1377 = vst.msk [vmem:[%s175 + $0xf4] sm:$0xf] %vm1315, %v1248
      %1378 = vst.msk [vmem:[%s175 + $0xf8] sm:$0xf] %vm1315, %v1249
      %1379 = vst.msk [vmem:[%s175 + $0xfc] sm:$0xf] %vm1315, %v1250
      %s1380 = smul.u32 64, %s14
      %p1381 = scmp.lt.s32.totalorder %s1380, 191
      %s1382 = scalar_select %p1381, %s1380, 191
      %s1383 = smul.addr %s1382, 4
      %s1384 = scalar_lea.vmem %s3, %s1383
      // Predicated region
      $region33: #{net2_forward.9} parent=31 // pred_check
        %p1385 = pneg %p100
      $region34: #{net2_forward.9} parent=31 // pred_check_branch
        %1387 = sbr.rel (%p1385) target = $region36
      $region35: #{net2_forward.9} parent=31 // pred_region
        %s1388 = smul.u32 64, %s14
      $region36: #{net2_forward.9} parent=31 // pred_fallthru
        _
    $region32: #{net2_forward.9} parent=5 // pred_fallthru
      _
    %p1389 = scmp.le.s32.totalorder 2, %s9
    // Predicated region
    $region37: #{net2_forward.9} parent=5 // pred_check
      %p1390 = pneg %p1389
    $region38: #{net2_forward.9} parent=5 // pred_check_branch
      %1392 = sbr.rel (%p1390) target = $region40
    $region39: #{net2_forward.9} parent=5 // pred_region
      %s1393 = ssub.s32 %s9, 2
      // Predicated region
      $region41: #{net2_forward.9} parent=39 // pred_check
        %p1394 = pneg %p106
      $region42: #{net2_forward.9} parent=39 // pred_check_branch
        %1396 = sbr.rel (%p1394) target = $region44
      $region43: #{net2_forward.9} parent=39 // pred_region
        %s1397 = smul.u32 64, %s15
        %p1398 = scmp.lt.s32.totalorder %s1397, 191
        %s1399 = scalar_select %p1398, %s1397, 191
        %s1400 = smul.addr %s1399, 4
        %s1401 = scalar_lea.vmem %s3, %s1400
      $region44: #{net2_forward.9} parent=39 // pred_fallthru
        _
    $region40: #{net2_forward.9} parent=5 // pred_fallthru
      _
  $region6: #{net2_forward.9} parent=0 // loop_footer
    %s13 = sadd.s32 1, %s9
  $region7: #{net2_forward.9} parent=0 // loop_footer_branch
    %8 = sbr.rel target = $region3
  $region8: #{net2_forward.9} parent=0 // loop_exit
    _

// kernel: net2_forward.10
$region0: #{net2_forward.10}
  #allocation0 [shape = 'u32[]', space=smem, size = 0x4, offset = 0x4, fixed_abs, tag = 'smem constant byte address 0x4 - core index']
  #allocation1 [shape = 'u32[144,128]{1,0:T(1,128)}', space=vmem, size = 0x12000, scoped, tag = 'internal scratch']
  %s0 = inlined_call_operand.vmem [shape: bf16[32,1536], index: 0, kind: input, shape index: {}]
  %s1 = inlined_call_operand.vmem [shape: bf16[32,384], index: 1, kind: output, shape index: {}]
  %s2 = sld [smem:[#allocation0]]
  $region14: #{net2_forward.10} parent=0
    _
  %s4 = ssub.s32 1, %s2
  %s5 = scalar_select 0, %s4, %s2
  // Predicated region
  $region2: #{net2_forward.10} parent=0 // pred_check
    _
  $region3: #{net2_forward.10} parent=0 // pred_check_branch
    %7 = sbr.rel (0) target = $region5
  $region4: #{net2_forward.10} parent=0 // pred_region
    _
  $region5: #{net2_forward.10} parent=0 // pred_fallthru
    _
  %v8 = vld [vmem:[%s0] sm:$0xff]
  %v9 = vld [vmem:[%s0 + $0x8] sm:$0xff]
  %v10 = vld [vmem:[%s0 + $0x10] sm:$0xff]
  %v11 = vld [vmem:[%s0 + $0x18] sm:$0xff]
  %v12 = vld [vmem:[%s0 + $0x20] sm:$0xff]
  %v13 = vld [vmem:[%s0 + $0x28] sm:$0xff]
  %v14 = vld [vmem:[%s0 + $0x30] sm:$0xff]
  %v15 = vld [vmem:[%s0 + $0x38] sm:$0xff]
  %v16 = vld [vmem:[%s0 + $0x40] sm:$0xff]
  %v17 = vld [vmem:[%s0 + $0x48] sm:$0xff]
  %v18 = vld [vmem:[%s0 + $0x50] sm:$0xff]
  %v19 = vld [vmem:[%s0 + $0x58] sm:$0xff]
  %v20 = vld [vmem:[%s0 + $0x60] sm:$0xff]
  %v21 = vld [vmem:[%s0 + $0x68] sm:$0xff]
  %v22 = vld [vmem:[%s0 + $0x70] sm:$0xff]
  %v23 = vld [vmem:[%s0 + $0x78] sm:$0xff]
  %v24 = vld [vmem:[%s0 + $0x80] sm:$0xff]
  %v25 = vld [vmem:[%s0 + $0x88] sm:$0xff]
  %v26 = vld [vmem:[%s0 + $0x90] sm:$0xff]
  %v27 = vld [vmem:[%s0 + $0x98] sm:$0xff]
  %v28 = vld [vmem:[%s0 + $0xa0] sm:$0xff]
  %v29 = vld [vmem:[%s0 + $0xa8] sm:$0xff]
  %v30 = vld [vmem:[%s0 + $0xb0] sm:$0xff]
  %v31 = vld [vmem:[%s0 + $0xb8] sm:$0xff]
  %v32 = vmax.bf16 %v8, %v11
  %v33 = vmax.bf16 %v9, %v12
  %v34 = vmax.bf16 %v10, %v13
  %v35 = vmax.bf16 %v14, %v17
  %v36 = vmax.bf16 %v15, %v18
  %v37 = vmax.bf16 %v16, %v19
  %v38 = vmax.bf16 %v20, %v23
  %v39 = vmax.bf16 %v21, %v24
  %v40 = vmax.bf16 %v22, %v25
  %v41 = vmax.bf16 %v26, %v29
  %v42 = vmax.bf16 %v27, %v30
  %v43 = vmax.bf16 %v28, %v31
  %48 = vrot.lane.b32.xlu0 %v32, 96
  %v49 = vpop.permute.xlu0 %48
  %50 = vrot.lane.b32.xlu0 %v35, 96
  %v51 = vpop.permute.xlu0 %50
  %52 = vrot.lane.b32.xlu0 %v38, 96
  %v53 = vpop.permute.xlu0 %52
  %54 = vrot.lane.b32.xlu0 %v41, 96
  %v55 = vpop.permute.xlu0 %54
  %v60 = vmax.bf16 %v32, %v49
  %v61 = vmax.bf16 %v35, %v51
  %v62 = vmax.bf16 %v38, %v53
  %v63 = vmax.bf16 %v41, %v55
  %v64 = vrot.slane %v32, 4
  %v65 = vrot.slane %v35, 4
  %v66 = vrot.slane %v38, 4
  %v67 = vrot.slane %v41, 4
  %v72 = vrot.slane %v49, 4
  %v73 = vrot.slane %v51, 4
  %v74 = vrot.slane %v53, 4
  %v75 = vrot.slane %v55, 4
  %v80 = vmax.bf16 %v64, %v72
  %v81 = vmax.bf16 %v65, %v73
  %v82 = vmax.bf16 %v66, %v74
  %v83 = vmax.bf16 %v67, %v75
  %84 = vrot.lane.b32.xlu0 %v32, 64
  %v85 = vpop.permute.xlu0 %84
  %86 = vrot.lane.b32.xlu0 %v35, 64
  %v87 = vpop.permute.xlu0 %86
  %88 = vrot.lane.b32.xlu0 %v38, 64
  %v89 = vpop.permute.xlu0 %88
  %90 = vrot.lane.b32.xlu0 %v41, 64
  %v91 = vpop.permute.xlu0 %90
  %v92 = vrot.slane %v85, 4
  %v93 = vrot.slane %v87, 4
  %v94 = vrot.slane %v89, 4
  %v95 = vrot.slane %v91, 4
  %100 = vrot.lane.b32.xlu0 %v32, 32
  %v101 = vpop.permute.xlu0 %100
  %102 = vrot.lane.b32.xlu0 %v35, 32
  %v103 = vpop.permute.xlu0 %102
  %104 = vrot.lane.b32.xlu0 %v38, 32
  %v105 = vpop.permute.xlu0 %104
  %106 = vrot.lane.b32.xlu0 %v41, 32
  %v107 = vpop.permute.xlu0 %106
  %v108 = vrot.slane %v101, 4
  %v109 = vrot.slane %v103, 4
  %v110 = vrot.slane %v105, 4
  %v111 = vrot.slane %v107, 4
  %v116 = vmax.bf16 %v92, %v108
  %v117 = vmax.bf16 %v93, %v109
  %v118 = vmax.bf16 %v94, %v110
  %v119 = vmax.bf16 %v95, %v111
  %124 = vrot.lane.b32.xlu0 %v33, 96
  %v125 = vpop.permute.xlu0 %124
  %126 = vrot.lane.b32.xlu0 %v36, 96
  %v127 = vpop.permute.xlu0 %126
  %128 = vrot.lane.b32.xlu0 %v39, 96
  %v129 = vpop.permute.xlu0 %128
  %130 = vrot.lane.b32.xlu0 %v42, 96
  %v131 = vpop.permute.xlu0 %130
  %v136 = vmax.bf16 %v33, %v125
  %v137 = vmax.bf16 %v36, %v127
  %v138 = vmax.bf16 %v39, %v129
  %v139 = vmax.bf16 %v42, %v131
  %v140 = vrot.slane %v33, 4
  %v141 = vrot.slane %v36, 4
  %v142 = vrot.slane %v39, 4
  %v143 = vrot.slane %v42, 4
  %v148 = vrot.slane %v125, 4
  %v149 = vrot.slane %v127, 4
  %v150 = vrot.slane %v129, 4
  %v151 = vrot.slane %v131, 4
  %v156 = vmax.bf16 %v140, %v148
  %v157 = vmax.bf16 %v141, %v149
  %v158 = vmax.bf16 %v142, %v150
  %v159 = vmax.bf16 %v143, %v151
  %160 = vrot.lane.b32.xlu0 %v33, 64
  %v161 = vpop.permute.xlu0 %160
  %162 = vrot.lane.b32.xlu0 %v36, 64
  %v163 = vpop.permute.xlu0 %162
  %164 = vrot.lane.b32.xlu0 %v39, 64
  %v165 = vpop.permute.xlu0 %164
  %166 = vrot.lane.b32.xlu0 %v42, 64
  %v167 = vpop.permute.xlu0 %166
  %v168 = vrot.slane %v161, 4
  %v169 = vrot.slane %v163, 4
  %v170 = vrot.slane %v165, 4
  %v171 = vrot.slane %v167, 4
  %176 = vrot.lane.b32.xlu0 %v33, 32
  %v177 = vpop.permute.xlu0 %176
  %178 = vrot.lane.b32.xlu0 %v36, 32
  %v179 = vpop.permute.xlu0 %178
  %180 = vrot.lane.b32.xlu0 %v39, 32
  %v181 = vpop.permute.xlu0 %180
  %182 = vrot.lane.b32.xlu0 %v42, 32
  %v183 = vpop.permute.xlu0 %182
  %v184 = vrot.slane %v177, 4
  %v185 = vrot.slane %v179, 4
  %v186 = vrot.slane %v181, 4
  %v187 = vrot.slane %v183, 4
  %v192 = vmax.bf16 %v168, %v184
  %v193 = vmax.bf16 %v169, %v185
  %v194 = vmax.bf16 %v170, %v186
  %v195 = vmax.bf16 %v171, %v187
  %200 = vrot.lane.b32.xlu0 %v34, 96
  %v201 = vpop.permute.xlu0 %200
  %202 = vrot.lane.b32.xlu0 %v37, 96
  %v203 = vpop.permute.xlu0 %202
  %204 = vrot.lane.b32.xlu0 %v40, 96
  %v205 = vpop.permute.xlu0 %204
  %206 = vrot.lane.b32.xlu0 %v43, 96
  %v207 = vpop.permute.xlu0 %206
  %v212 = vmax.bf16 %v34, %v201
  %v213 = vmax.bf16 %v37, %v203
  %v214 = vmax.bf16 %v40, %v205
  %v215 = vmax.bf16 %v43, %v207
  %v216 = vrot.slane %v34, 4
  %v217 = vrot.slane %v37, 4
  %v218 = vrot.slane %v40, 4
  %v219 = vrot.slane %v43, 4
  %v224 = vrot.slane %v201, 4
  %v225 = vrot.slane %v203, 4
  %v226 = vrot.slane %v205, 4
  %v227 = vrot.slane %v207, 4
  %v232 = vmax.bf16 %v216, %v224
  %v233 = vmax.bf16 %v217, %v225
  %v234 = vmax.bf16 %v218, %v226
  %v235 = vmax.bf16 %v219, %v227
  %236 = vrot.lane.b32.xlu0 %v34, 64
  %v237 = vpop.permute.xlu0 %236
  %238 = vrot.lane.b32.xlu0 %v37, 64
  %v239 = vpop.permute.xlu0 %238
  %240 = vrot.lane.b32.xlu0 %v40, 64
  %v241 = vpop.permute.xlu0 %240
  %242 = vrot.lane.b32.xlu0 %v43, 64
  %v243 = vpop.permute.xlu0 %242
  %v244 = vrot.slane %v237, 4
  %v245 = vrot.slane %v239, 4
  %v246 = vrot.slane %v241, 4
  %v247 = vrot.slane %v243, 4
  %252 = vrot.lane.b32.xlu0 %v34, 32
  %v253 = vpop.permute.xlu0 %252
  %254 = vrot.lane.b32.xlu0 %v37, 32
  %v255 = vpop.permute.xlu0 %254
  %256 = vrot.lane.b32.xlu0 %v40, 32
  %v257 = vpop.permute.xlu0 %256
  %258 = vrot.lane.b32.xlu0 %v43, 32
  %v259 = vpop.permute.xlu0 %258
  %v260 = vrot.slane %v253, 4
  %v261 = vrot.slane %v255, 4
  %v262 = vrot.slane %v257, 4
  %v263 = vrot.slane %v259, 4
  %v268 = vmax.bf16 %v244, %v260
  %v269 = vmax.bf16 %v245, %v261
  %v270 = vmax.bf16 %v246, %v262
  %v271 = vmax.bf16 %v247, %v263
  %v276 = vunpack.c.l.b16 %v60
  %v277 = vunpack.c.l.b16 %v61
  %v278 = vunpack.c.l.b16 %v62
  %v279 = vunpack.c.l.b16 %v63
  %v280 = vpack.c.b16 %v277, %v276
  %v281 = vpack.c.b16 %v279, %v278
  %282 = vrot.lane.b32.xlu0 %v280, 96
  %v283 = vpop.permute.xlu0 %282
  %284 = vrot.lane.b32.xlu0 %v281, 96
  %v285 = vpop.permute.xlu0 %284
  %v290 = vunpack.c.l.b16 %v80
  %v291 = vunpack.c.l.b16 %v81
  %v292 = vunpack.c.l.b16 %v82
  %v293 = vunpack.c.l.b16 %v83
  %v294 = vpack.c.b16 %v291, %v290
  %v295 = vpack.c.b16 %v293, %v292
  %296 = vrot.lane.b32.xlu0 %v294, 64
  %v297 = vpop.permute.xlu0 %296
  %298 = vrot.lane.b32.xlu0 %v295, 64
  %v299 = vpop.permute.xlu0 %298
  %v304 = vunpack.c.l.b16 %v116
  %v305 = vunpack.c.l.b16 %v117
  %v306 = vunpack.c.l.b16 %v118
  %v307 = vunpack.c.l.b16 %v119
  %v308 = vpack.c.b16 %v305, %v304
  %v309 = vpack.c.b16 %v307, %v306
  %310 = vrot.lane.b32.xlu0 %v308, 96
  %v311 = vpop.permute.xlu0 %310
  %312 = vrot.lane.b32.xlu0 %v309, 96
  %v313 = vpop.permute.xlu0 %312
  %v318 = vunpack.c.l.b16 %v136
  %v319 = vunpack.c.l.b16 %v137
  %v320 = vunpack.c.l.b16 %v138
  %v321 = vunpack.c.l.b16 %v139
  %v322 = vpack.c.b16 %v319, %v318
  %v323 = vpack.c.b16 %v321, %v320
  %324 = vrot.lane.b32.xlu0 %v322, 96
  %v325 = vpop.permute.xlu0 %324
  %326 = vrot.lane.b32.xlu0 %v323, 96
  %v327 = vpop.permute.xlu0 %326
  %v332 = vunpack.c.l.b16 %v156
  %v333 = vunpack.c.l.b16 %v157
  %v334 = vunpack.c.l.b16 %v158
  %v335 = vunpack.c.l.b16 %v159
  %v336 = vpack.c.b16 %v333, %v332
  %v337 = vpack.c.b16 %v335, %v334
  %338 = vrot.lane.b32.xlu0 %v336, 64
  %v339 = vpop.permute.xlu0 %338
  %340 = vrot.lane.b32.xlu0 %v337, 64
  %v341 = vpop.permute.xlu0 %340
  %v346 = vunpack.c.l.b16 %v192
  %v347 = vunpack.c.l.b16 %v193
  %v348 = vunpack.c.l.b16 %v194
  %v349 = vunpack.c.l.b16 %v195
  %v350 = vpack.c.b16 %v347, %v346
  %v351 = vpack.c.b16 %v349, %v348
  %352 = vrot.lane.b32.xlu0 %v350, 96
  %v353 = vpop.permute.xlu0 %352
  %354 = vrot.lane.b32.xlu0 %v351, 96
  %v355 = vpop.permute.xlu0 %354
  %v360 = vunpack.c.l.b16 %v212
  %v361 = vunpack.c.l.b16 %v213
  %v362 = vunpack.c.l.b16 %v214
  %v363 = vunpack.c.l.b16 %v215
  %v364 = vpack.c.b16 %v361, %v360
  %v365 = vpack.c.b16 %v363, %v362
  %366 = vrot.lane.b32.xlu0 %v364, 96
  %v367 = vpop.permute.xlu0 %366
  %368 = vrot.lane.b32.xlu0 %v365, 96
  %v369 = vpop.permute.xlu0 %368
  %v374 = vunpack.c.l.b16 %v232
  %v375 = vunpack.c.l.b16 %v233
  %v376 = vunpack.c.l.b16 %v234
  %v377 = vunpack.c.l.b16 %v235
  %v378 = vpack.c.b16 %v375, %v374
  %v379 = vpack.c.b16 %v377, %v376
  %380 = vrot.lane.b32.xlu0 %v378, 64
  %v381 = vpop.permute.xlu0 %380
  %382 = vrot.lane.b32.xlu0 %v379, 64
  %v383 = vpop.permute.xlu0 %382
  %v388 = vunpack.c.l.b16 %v268
  %v389 = vunpack.c.l.b16 %v269
  %v390 = vunpack.c.l.b16 %v270
  %v391 = vunpack.c.l.b16 %v271
  %v392 = vpack.c.b16 %v389, %v388
  %v393 = vpack.c.b16 %v391, %v390
  %394 = vrot.lane.b32.xlu0 %v392, 96
  %v395 = vpop.permute.xlu0 %394
  %396 = vrot.lane.b32.xlu0 %v393, 96
  %v397 = vpop.permute.xlu0 %396
  %vm398 = vcmask 261120
  %v401 = vsel %vm398, %v280, %v283
  %v404 = vsel %vm398, %v281, %v285
  %vm405 = vcmask 523264
  %v407 = vsel %vm405, %v401, %v297
  %v409 = vsel %vm405, %v404, %v299
  %vm410 = vcmask 785408
  %v412 = vsel %vm410, %v407, %v311
  %v414 = vsel %vm410, %v409, %v313
  %v417 = vsel %vm398, %v322, %v325
  %v420 = vsel %vm398, %v323, %v327
  %v422 = vsel %vm405, %v417, %v339
  %v424 = vsel %vm405, %v420, %v341
  %v426 = vsel %vm410, %v422, %v353
  %v428 = vsel %vm410, %v424, %v355
  %v431 = vsel %vm398, %v364, %v367
  %v434 = vsel %vm398, %v365, %v369
  %v436 = vsel %vm405, %v431, %v381
  %v438 = vsel %vm405, %v434, %v383
  %v440 = vsel %vm410, %v436, %v395
  %v442 = vsel %vm410, %v438, %v397
  %v449 = vunpack.c.l.b16 %v412
  %v450 = vunpack.c.l.b16 %v426
  %v451 = vunpack.c.l.b16 %v440
  %v452 = vunpack.c.h.b16 %v412
  %v453 = vunpack.c.h.b16 %v426
  %v454 = vunpack.c.h.b16 %v440
  %v455 = vunpack.c.l.b16 %v414
  %v456 = vunpack.c.l.b16 %v428
  %v457 = vunpack.c.l.b16 %v442
  %v458 = vunpack.c.h.b16 %v414
  %v459 = vunpack.c.h.b16 %v428
  %v460 = vunpack.c.h.b16 %v442
  %v461 = vpack.c.b16 %v450, %v449
  %v462 = vpack.c.b16 %v451, %v451
  %v463 = vpack.c.b16 %v453, %v452
  %v464 = vpack.c.b16 %v454, %v454
  %v465 = vpack.c.b16 %v456, %v455
  %v466 = vpack.c.b16 %v457, %v457
  %v467 = vpack.c.b16 %v459, %v458
  %v468 = vpack.c.b16 %v460, %v460
  %477 = vst [vmem:[%s1] sm:$0xff] %v461
  %478 = vst [vmem:[%s1 + $0x8] sm:$0xf] %v462
  %479 = vst [vmem:[%s1 + $0xc] sm:$0xff] %v463
  %480 = vst [vmem:[%s1 + $0x14] sm:$0xf] %v464
  %481 = vst [vmem:[%s1 + $0x18] sm:$0xff] %v465
  %482 = vst [vmem:[%s1 + $0x20] sm:$0xf] %v466
  %483 = vst [vmem:[%s1 + $0x24] sm:$0xff] %v467
  %484 = vst [vmem:[%s1 + $0x2c] sm:$0xf] %v468
  // Predicated region
  $region6: #{net2_forward.10} parent=0 // pred_check
    _
  $region7: #{net2_forward.10} parent=0 // pred_check_branch
    %486 = sbr.rel (0) target = $region9
  $region8: #{net2_forward.10} parent=0 // pred_region
    _
  $region9: #{net2_forward.10} parent=0 // pred_fallthru
    _
  // Predicated region
  $region10: #{net2_forward.10} parent=0 // pred_check
    _
  $region11: #{net2_forward.10} parent=0 // pred_check_branch
    %488 = sbr.rel (0) target = $region13
  $region12: #{net2_forward.10} parent=0 // pred_region
    _
  $region13: #{net2_forward.10} parent=0 // pred_fallthru
    _

// kernel: net2_forward.11
$region0: #{net2_forward.11}
  #allocation0 [shape = 'u32[]', space=smem, size = 0x4, offset = 0x4, fixed_abs, tag = 'smem constant byte address 0x4 - core index']
  #allocation1 [shape = 'u32[144,128]{1,0:T(1,128)}', space=vmem, size = 0x12000, scoped, tag = 'internal scratch']
  %s0 = inlined_call_operand.vmem [shape: bf16[208,288], index: 0, kind: input, shape index: {}]
  %s1 = inlined_call_operand.vmem [shape: bf16[288,64], index: 1, kind: input, shape index: {}]
  %s2 = inlined_call_operand.vmem [shape: f32[1,64], index: 2, kind: input, shape index: {}]
  %s3 = inlined_call_operand.vmem [shape: bf16[208,64], index: 3, kind: output, shape index: {}]
  %s4 = sld [smem:[#allocation0]]
  $region22: #{net2_forward.11} parent=0
    _
  %s6 = ssub.s32 1, %s4
  %s7 = scalar_select 0, %s6, %s4
  // Predicated region
  $region2: #{net2_forward.11} parent=0 // pred_check
    _
  $region3: #{net2_forward.11} parent=0 // pred_check_branch
    %9 = sbr.rel (0) target = $region5
  $region4: #{net2_forward.11} parent=0 // pred_region
    _
  $region5: #{net2_forward.11} parent=0 // pred_fallthru
    _
  // Predicated region
  $region6: #{net2_forward.11} parent=0 // pred_check
    _
  $region7: #{net2_forward.11} parent=0 // pred_check_branch
    %11 = sbr.rel (0) target = $region9
  $region8: #{net2_forward.11} parent=0 // pred_region
    _
  $region9: #{net2_forward.11} parent=0 // pred_fallthru
    _
  // Predicated region
  $region10: #{net2_forward.11} parent=0 // pred_check
    _
  $region11: #{net2_forward.11} parent=0 // pred_check_branch
    %13 = sbr.rel (0) target = $region13
  $region12: #{net2_forward.11} parent=0 // pred_region
    _
  $region13: #{net2_forward.11} parent=0 // pred_fallthru
    _
  %v15 = vld [vmem:[%s0] sm:$0xff]
  %v16 = vld [vmem:[%s0 + $0x8] sm:$0xf]
  %v17 = vld [vmem:[%s0 + $0xc] sm:$0xff]
  %v18 = vld [vmem:[%s0 + $0x14] sm:$0xf]
  %v19 = vld [vmem:[%s0 + $0x18] sm:$0xff]
  %v20 = vld [vmem:[%s0 + $0x20] sm:$0xf]
  %v21 = vld [vmem:[%s0 + $0x24] sm:$0xff]
  %v22 = vld [vmem:[%s0 + $0x2c] sm:$0xf]
  %v23 = vld [vmem:[%s0 + $0x30] sm:$0xff]
  %v24 = vld [vmem:[%s0 + $0x38] sm:$0xf]
  %v25 = vld [vmem:[%s0 + $0x3c] sm:$0xff]
  %v26 = vld [vmem:[%s0 + $0x44] sm:$0xf]
  %v27 = vld [vmem:[%s0 + $0x48] sm:$0xff]
  %v28 = vld [vmem:[%s0 + $0x50] sm:$0xf]
  %v29 = vld [vmem:[%s0 + $0x54] sm:$0xff]
  %v30 = vld [vmem:[%s0 + $0x5c] sm:$0xf]
  %v31 = vld [vmem:[%s0 + $0x60] sm:$0xff]
  %v32 = vld [vmem:[%s0 + $0x68] sm:$0xf]
  %v33 = vld [vmem:[%s0 + $0x6c] sm:$0xff]
  %v34 = vld [vmem:[%s0 + $0x74] sm:$0xf]
  %v35 = vld [vmem:[%s0 + $0x78] sm:$0xff]
  %v36 = vld [vmem:[%s0 + $0x80] sm:$0xf]
  %v37 = vld [vmem:[%s0 + $0x84] sm:$0xff]
  %v38 = vld [vmem:[%s0 + $0x8c] sm:$0xf]
  %v39 = vld [vmem:[%s0 + $0x90] sm:$0xff]
  %v40 = vld [vmem:[%s0 + $0x98] sm:$0xf]
  %v41 = vld [vmem:[%s0 + $0x9c] sm:$0xff]
  %v42 = vld [vmem:[%s0 + $0xa4] sm:$0xf]
  %v43 = vld [vmem:[%s0 + $0xa8] sm:$0xff]
  %v44 = vld [vmem:[%s0 + $0xb0] sm:$0xf]
  %v45 = vld [vmem:[%s0 + $0xb4] sm:$0xff]
  %v46 = vld [vmem:[%s0 + $0xbc] sm:$0xf]
  %v47 = vld [vmem:[%s0 + $0xc0] sm:$0xff]
  %v48 = vld [vmem:[%s0 + $0xc8] sm:$0xf]
  %v49 = vld [vmem:[%s0 + $0xcc] sm:$0xff]
  %v50 = vld [vmem:[%s0 + $0xd4] sm:$0xf]
  %v51 = vld [vmem:[%s0 + $0xd8] sm:$0xff]
  %v52 = vld [vmem:[%s0 + $0xe0] sm:$0xf]
  %v53 = vld [vmem:[%s0 + $0xe4] sm:$0xff]
  %v54 = vld [vmem:[%s0 + $0xec] sm:$0xf]
  %v55 = vld [vmem:[%s0 + $0xf0] sm:$0xff]
  %v56 = vld [vmem:[%s0 + $0xf8] sm:$0xf]
  %v57 = vld [vmem:[%s0 + $0xfc] sm:$0xff]
  %v58 = vld [vmem:[%s0 + $0x104] sm:$0xf]
  %v59 = vld [vmem:[%s0 + $0x108] sm:$0xff]
  %v60 = vld [vmem:[%s0 + $0x110] sm:$0xf]
  %v61 = vld [vmem:[%s0 + $0x114] sm:$0xff]
  %v62 = vld [vmem:[%s0 + $0x11c] sm:$0xf]
  %v63 = vld [vmem:[%s0 + $0x120] sm:$0xff]
  %v64 = vld [vmem:[%s0 + $0x128] sm:$0xf]
  %v65 = vld [vmem:[%s0 + $0x12c] sm:$0xff]
  %v66 = vld [vmem:[%s0 + $0x134] sm:$0xf]
  %v67 = vld [vmem:[%s1] sm:$0xf]
  %v68 = vld [vmem:[%s1 + $0x4] sm:$0xf]
  %v69 = vld [vmem:[%s1 + $0x8] sm:$0xf]
  %v70 = vld [vmem:[%s1 + $0xc] sm:$0xf]
  %v71 = vld [vmem:[%s1 + $0x10] sm:$0xf]
  %v72 = vld [vmem:[%s1 + $0x14] sm:$0xf]
  %v73 = vld [vmem:[%s1 + $0x18] sm:$0xf]
  %v74 = vld [vmem:[%s1 + $0x1c] sm:$0xf]
  %v75 = vld [vmem:[%s1 + $0x20] sm:$0xf]
  %v76 = vld [vmem:[%s1 + $0x24] sm:$0xf]
  %v77 = vld [vmem:[%s1 + $0x28] sm:$0xf]
  %v78 = vld [vmem:[%s1 + $0x2c] sm:$0xf]
  %v79 = vld [vmem:[%s1 + $0x30] sm:$0xf]
  %v80 = vld [vmem:[%s1 + $0x34] sm:$0xf]
  %v81 = vld [vmem:[%s1 + $0x38] sm:$0xf]
  %v82 = vld [vmem:[%s1 + $0x3c] sm:$0xf]
  %v83 = vld [vmem:[%s1 + $0x40] sm:$0xf]
  %v84 = vld [vmem:[%s1 + $0x44] sm:$0xf]
  %v85 = vld [vmem:[%s1 + $0x48] sm:$0xf]
  %v86 = vld [vmem:[%s1 + $0x4c] sm:$0xf]
  %v87 = vld [vmem:[%s1 + $0x50] sm:$0xf]
  %v88 = vld [vmem:[%s1 + $0x54] sm:$0xf]
  %v89 = vld [vmem:[%s1 + $0x58] sm:$0xf]
  %v90 = vld [vmem:[%s1 + $0x5c] sm:$0xf]
  %v91 = vld [vmem:[%s1 + $0x60] sm:$0xf]
  %v92 = vld [vmem:[%s1 + $0x64] sm:$0xf]
  %v93 = vld [vmem:[%s1 + $0x68] sm:$0xf]
  %v94 = vld [vmem:[%s1 + $0x6c] sm:$0xf]
  %v95 = vld [vmem:[%s1 + $0x70] sm:$0xf]
  %v96 = vld [vmem:[%s1 + $0x74] sm:$0xf]
  %v97 = vld [vmem:[%s1 + $0x78] sm:$0xf]
  %v98 = vld [vmem:[%s1 + $0x7c] sm:$0xf]
  %v99 = vld [vmem:[%s1 + $0x80] sm:$0xf]
  %v100 = vld [vmem:[%s1 + $0x84] sm:$0xf]
  %v101 = vld [vmem:[%s1 + $0x88] sm:$0xf]
  %v102 = vld [vmem:[%s1 + $0x8c] sm:$0xf]
  %v103 = vld [vmem:[%s2] sm:$0x1]
  %v105 = vlaneseq
  %v106 = vshrl.u32 %v105, 7
  %v107 = vsub.s32 0, %v106
  %v108 = vrot.slane %v103, %v107
  %v162 = vunpack.c.l.b16 %v15
  %v163 = vunpack.c.h.b16 %v15
  %v164 = vunpack.c.l.b16 %v16
  %v165 = vunpack.c.l.b16 %v17
  %v166 = vunpack.c.h.b16 %v17
  %v167 = vunpack.c.l.b16 %v18
  %v168 = vunpack.c.l.b16 %v19
  %v169 = vunpack.c.h.b16 %v19
  %v170 = vunpack.c.l.b16 %v20
  %v171 = vunpack.c.l.b16 %v21
  %v172 = vunpack.c.h.b16 %v21
  %v173 = vunpack.c.l.b16 %v22
  %v174 = vunpack.c.l.b16 %v23
  %v175 = vunpack.c.h.b16 %v23
  %v176 = vunpack.c.l.b16 %v24
  %v177 = vunpack.c.l.b16 %v25
  %v178 = vunpack.c.h.b16 %v25
  %v179 = vunpack.c.l.b16 %v26
  %v180 = vunpack.c.l.b16 %v27
  %v181 = vunpack.c.h.b16 %v27
  %v182 = vunpack.c.l.b16 %v28
  %v183 = vunpack.c.l.b16 %v29
  %v184 = vunpack.c.h.b16 %v29
  %v185 = vunpack.c.l.b16 %v30
  %v186 = vunpack.c.l.b16 %v31
  %v187 = vunpack.c.h.b16 %v31
  %v188 = vunpack.c.l.b16 %v32
  %v189 = vunpack.c.l.b16 %v33
  %v190 = vunpack.c.h.b16 %v33
  %v191 = vunpack.c.l.b16 %v34
  %v192 = vunpack.c.l.b16 %v35
  %v193 = vunpack.c.h.b16 %v35
  %v194 = vunpack.c.l.b16 %v36
  %v195 = vunpack.c.l.b16 %v37
  %v196 = vunpack.c.h.b16 %v37
  %v197 = vunpack.c.l.b16 %v38
  %v198 = vunpack.c.l.b16 %v39
  %v199 = vunpack.c.h.b16 %v39
  %v200 = vunpack.c.l.b16 %v40
  %v201 = vunpack.c.l.b16 %v41
  %v202 = vunpack.c.h.b16 %v41
  %v203 = vunpack.c.l.b16 %v42
  %v204 = vunpack.c.l.b16 %v43
  %v205 = vunpack.c.h.b16 %v43
  %v206 = vunpack.c.l.b16 %v44
  %v207 = vunpack.c.l.b16 %v45
  %v208 = vunpack.c.h.b16 %v45
  %v209 = vunpack.c.l.b16 %v46
  %v210 = vunpack.c.l.b16 %v47
  %v211 = vunpack.c.h.b16 %v47
  %v212 = vunpack.c.l.b16 %v48
  %v213 = vunpack.c.l.b16 %v49
  %v214 = vunpack.c.h.b16 %v49
  %v215 = vunpack.c.l.b16 %v50
  %v216 = vunpack.c.l.b16 %v51
  %v217 = vunpack.c.h.b16 %v51
  %v218 = vunpack.c.l.b16 %v52
  %v219 = vunpack.c.l.b16 %v53
  %v220 = vunpack.c.h.b16 %v53
  %v221 = vunpack.c.l.b16 %v54
  %v222 = vunpack.c.l.b16 %v55
  %v223 = vunpack.c.h.b16 %v55
  %v224 = vunpack.c.l.b16 %v56
  %v225 = vunpack.c.l.b16 %v57
  %v226 = vunpack.c.h.b16 %v57
  %v227 = vunpack.c.l.b16 %v58
  %v228 = vunpack.c.l.b16 %v59
  %v229 = vunpack.c.h.b16 %v59
  %v230 = vunpack.c.l.b16 %v60
  %v231 = vunpack.c.l.b16 %v61
  %v232 = vunpack.c.h.b16 %v61
  %v233 = vunpack.c.l.b16 %v62
  %v234 = vunpack.c.l.b16 %v63
  %v235 = vunpack.c.h.b16 %v63
  %v236 = vunpack.c.l.b16 %v64
  %v237 = vunpack.c.l.b16 %v65
  %v238 = vunpack.c.h.b16 %v65
  %v239 = vunpack.c.l.b16 %v66
  %v240 = vpack.c.b16 %v165, %v162
  %v241 = vpack.c.b16 %v166, %v163
  %v242 = vpack.c.b16 %v167, %v164
  %v243 = vpack.c.b16 %v171, %v168
  %v244 = vpack.c.b16 %v172, %v169
  %v245 = vpack.c.b16 %v173, %v170
  %v246 = vpack.c.b16 %v177, %v174
  %v247 = vpack.c.b16 %v178, %v175
  %v248 = vpack.c.b16 %v179, %v176
  %v249 = vpack.c.b16 %v183, %v180
  %v250 = vpack.c.b16 %v184, %v181
  %v251 = vpack.c.b16 %v185, %v182
  %v252 = vpack.c.b16 %v189, %v186
  %v253 = vpack.c.b16 %v190, %v187
  %v254 = vpack.c.b16 %v191, %v188
  %v255 = vpack.c.b16 %v195, %v192
  %v256 = vpack.c.b16 %v196, %v193
  %v257 = vpack.c.b16 %v197, %v194
  %v258 = vpack.c.b16 %v201, %v198
  %v259 = vpack.c.b16 %v202, %v199
  %v260 = vpack.c.b16 %v203, %v200
  %v261 = vpack.c.b16 %v207, %v204
  %v262 = vpack.c.b16 %v208, %v205
  %v263 = vpack.c.b16 %v209, %v206
  %v264 = vpack.c.b16 %v213, %v210
  %v265 = vpack.c.b16 %v214, %v211
  %v266 = vpack.c.b16 %v215, %v212
  %v267 = vpack.c.b16 %v219, %v216
  %v268 = vpack.c.b16 %v220, %v217
  %v269 = vpack.c.b16 %v221, %v218
  %v270 = vpack.c.b16 %v225, %v222
  %v271 = vpack.c.b16 %v226, %v223
  %v272 = vpack.c.b16 %v227, %v224
  %v273 = vpack.c.b16 %v231, %v228
  %v274 = vpack.c.b16 %v232, %v229
  %v275 = vpack.c.b16 %v233, %v230
  %v276 = vpack.c.b16 %v237, %v234
  %v277 = vpack.c.b16 %v238, %v235
  %v278 = vpack.c.b16 %v239, %v236
  %v341 = vunpack.c.l.b16 %v67
  %v342 = vunpack.c.l.b16 %v68
  %v343 = vunpack.c.l.b16 %v69
  %v344 = vunpack.c.l.b16 %v70
  %v345 = vunpack.c.l.b16 %v71
  %v346 = vunpack.c.l.b16 %v72
  %v347 = vunpack.c.l.b16 %v73
  %v348 = vunpack.c.l.b16 %v74
  %v349 = vunpack.c.l.b16 %v75
  %v350 = vunpack.c.l.b16 %v76
  %v351 = vunpack.c.l.b16 %v77
  %v352 = vunpack.c.l.b16 %v78
  %v353 = vunpack.c.l.b16 %v79
  %v354 = vunpack.c.l.b16 %v80
  %v355 = vunpack.c.l.b16 %v81
  %v356 = vunpack.c.l.b16 %v82
  %v357 = vunpack.c.l.b16 %v83
  %v358 = vunpack.c.l.b16 %v84
  %v359 = vunpack.c.l.b16 %v85
  %v360 = vunpack.c.l.b16 %v86
  %v361 = vunpack.c.l.b16 %v87
  %v362 = vunpack.c.l.b16 %v88
  %v363 = vunpack.c.l.b16 %v89
  %v364 = vunpack.c.l.b16 %v90
  %v365 = vunpack.c.l.b16 %v91
  %v366 = vunpack.c.l.b16 %v92
  %v367 = vunpack.c.l.b16 %v93
  %v368 = vunpack.c.l.b16 %v94
  %v369 = vunpack.c.l.b16 %v95
  %v370 = vunpack.c.l.b16 %v96
  %v371 = vunpack.c.l.b16 %v97
  %v372 = vunpack.c.l.b16 %v98
  %v373 = vunpack.c.l.b16 %v99
  %v374 = vunpack.c.l.b16 %v100
  %v375 = vunpack.c.l.b16 %v101
  %v376 = vunpack.c.l.b16 %v102
  %v377 = vpack.c.b16 %v342, %v341
  %v378 = vpack.c.b16 %v344, %v343
  %v379 = vpack.c.b16 %v346, %v345
  %v380 = vpack.c.b16 %v348, %v347
  %v381 = vpack.c.b16 %v350, %v349
  %v382 = vpack.c.b16 %v352, %v351
  %v383 = vpack.c.b16 %v354, %v353
  %v384 = vpack.c.b16 %v356, %v355
  %v385 = vpack.c.b16 %v358, %v357
  %v386 = vpack.c.b16 %v360, %v359
  %v387 = vpack.c.b16 %v362, %v361
  %v388 = vpack.c.b16 %v364, %v363
  %v389 = vpack.c.b16 %v366, %v365
  %v390 = vpack.c.b16 %v368, %v367
  %v391 = vpack.c.b16 %v370, %v369
  %v392 = vpack.c.b16 %v372, %v371
  %v393 = vpack.c.b16 %v374, %v373
  %v394 = vpack.c.b16 %v376, %v375
  %vm413 = vcmask 261120
  %v415 = vsel %vm413, %v242, 0
  %v418 = vsel %vm413, %v245, 0
  %v421 = vsel %vm413, %v248, 0
  %v424 = vsel %vm413, %v251, 0
  %v427 = vsel %vm413, %v254, 0
  %v430 = vsel %vm413, %v257, 0
  %v433 = vsel %vm413, %v260, 0
  %v436 = vsel %vm413, %v263, 0
  %v439 = vsel %vm413, %v266, 0
  %v442 = vsel %vm413, %v269, 0
  %v445 = vsel %vm413, %v272, 0
  %v448 = vsel %vm413, %v275, 0
  %v451 = vsel %vm413, %v278, 0
  %453 = vmatprep.subr.bf16.mxu0 0
  %454 = vmatpush1.bf16.msra.mxu0 %v377
  %455 = vmatprep.subr.bf16.mxu0 0
  %456 = vmatpush1.bf16.msra.mxu0 %v378
  %457 = vmatprep.subr.bf16.mxu0 0
  %458 = vmatpush1.bf16.msra.mxu0 %v379
  %459 = vmatprep.subr.bf16.mxu0 0
  %460 = vmatpush1.bf16.msra.mxu0 %v380
  %461 = vmatprep.subr.bf16.mxu0 0
  %462 = vmatpush1.bf16.msra.mxu0 %v381
  %463 = vmatprep.subr.bf16.mxu0 0
  %464 = vmatpush1.bf16.msra.mxu0 %v382
  %465 = vmatprep.subr.bf16.mxu0 0
  %466 = vmatpush1.bf16.msra.mxu0 %v383
  %467 = vmatprep.subr.bf16.mxu0 0
  %468 = vmatpush1.bf16.msra.mxu0 %v384
  %469 = vmatprep.subr.bf16.mxu0 0
  %470 = vmatpush1.bf16.msra.mxu0 %v385
  %471 = vmatprep.subr.bf16.mxu0 0
  %472 = vmatpush1.bf16.msra.mxu0 %v386
  %473 = vmatprep.subr.bf16.mxu0 0
  %474 = vmatpush1.bf16.msra.mxu0 %v387
  %475 = vmatprep.subr.bf16.mxu0 0
  %476 = vmatpush1.bf16.msra.mxu0 %v388
  %477 = vmatprep.subr.bf16.mxu0 0
  %478 = vmatpush1.bf16.msra.mxu0 %v389
  %479 = vmatprep.subr.bf16.mxu0 0
  %480 = vmatpush1.bf16.msra.mxu0 %v390
  %481 = vmatprep.subr.bf16.mxu0 0
  %482 = vmatpush1.bf16.msra.mxu0 %v391
  %483 = vmatprep.subr.bf16.mxu0 0
  %484 = vmatpush1.bf16.msra.mxu0 %v392
  %485 = vmatprep.mubr.bf16.mxu0 %v241
  %486 = vmatmul.mubr.bf16.gmra.mrb[0].mxu0 %v240
  %v487 = vpop.f32.mrb[0].mxu0
  %v488 = vadd.f32 %v108, %v487
  %v489 = vpop.f32.mrb[0].mxu0
  %v490 = vpop.f32.mrb[0].mxu0
  %v491 = vadd.f32 %v108, %v490
  %v492 = vpop.f32.mrb[0].mxu0
  %493 = vmatprep.mubr.bf16.mxu0 %v244
  %494 = vmatmul.mubr.bf16.gmra.mrb[0].mxu0 %v243
  %v495 = vpop.f32.mrb[0].mxu0
  %v496 = vadd.f32 %v108, %v495
  %v497 = vpop.f32.mrb[0].mxu0
  %v498 = vpop.f32.mrb[0].mxu0
  %v499 = vadd.f32 %v108, %v498
  %v500 = vpop.f32.mrb[0].mxu0
  %501 = vmatprep.mubr.bf16.mxu0 %v247
  %502 = vmatmul.mubr.bf16.gmra.mrb[0].mxu0 %v246
  %v503 = vpop.f32.mrb[0].mxu0
  %v504 = vadd.f32 %v108, %v503
  %v505 = vpop.f32.mrb[0].mxu0
  %v506 = vpop.f32.mrb[0].mxu0
  %v507 = vadd.f32 %v108, %v506
  %v508 = vpop.f32.mrb[0].mxu0
  %509 = vmatprep.mubr.bf16.mxu0 %v250
  %510 = vmatmul.mubr.bf16.gmra.mrb[0].mxu0 %v249
  %v511 = vpop.f32.mrb[0].mxu0
  %v512 = vadd.f32 %v108, %v511
  %v513 = vpop.f32.mrb[0].mxu0
  %v514 = vpop.f32.mrb[0].mxu0
  %v515 = vadd.f32 %v108, %v514
  %v516 = vpop.f32.mrb[0].mxu0
  %517 = vmatprep.mubr.bf16.mxu0 %v253
  %518 = vmatmul.mubr.bf16.gmra.mrb[0].mxu0 %v252
  %v519 = vpop.f32.mrb[0].mxu0
  %v520 = vadd.f32 %v108, %v519
  %v521 = vpop.f32.mrb[0].mxu0
  %v522 = vpop.f32.mrb[0].mxu0
  %v523 = vadd.f32 %v108, %v522
  %v524 = vpop.f32.mrb[0].mxu0
  %525 = vmatprep.mubr.bf16.mxu0 %v256
  %526 = vmatmul.mubr.bf16.gmra.mrb[0].mxu0 %v255
  %v527 = vpop.f32.mrb[0].mxu0
  %v528 = vadd.f32 %v108, %v527
  %v529 = vpop.f32.mrb[0].mxu0
  %v530 = vpop.f32.mrb[0].mxu0
  %v531 = vadd.f32 %v108, %v530
  %v532 = vpop.f32.mrb[0].mxu0
  %533 = vmatprep.mubr.bf16.mxu0 %v259
  %534 = vmatmul.mubr.bf16.gmra.mrb[0].mxu0 %v258
  %v535 = vpop.f32.mrb[0].mxu0
  %v536 = vadd.f32 %v108, %v535
  %v537 = vpop.f32.mrb[0].mxu0
  %v538 = vpop.f32.mrb[0].mxu0
  %v539 = vadd.f32 %v108, %v538
  %v540 = vpop.f32.mrb[0].mxu0
  %541 = vmatprep.mubr.bf16.mxu0 %v262
  %542 = vmatmul.mubr.bf16.gmra.mrb[0].mxu0 %v261
  %v543 = vpop.f32.mrb[0].mxu0
  %v544 = vadd.f32 %v108, %v543
  %v545 = vpop.f32.mrb[0].mxu0
  %v546 = vpop.f32.mrb[0].mxu0
  %v547 = vadd.f32 %v108, %v546
  %v548 = vpop.f32.mrb[0].mxu0
  %549 = vmatprep.mubr.bf16.mxu0 %v265
  %550 = vmatmul.mubr.bf16.gmra.mrb[0].mxu0 %v264
  %v551 = vpop.f32.mrb[0].mxu0
  %v552 = vadd.f32 %v108, %v551
  %v553 = vpop.f32.mrb[0].mxu0
  %v554 = vpop.f32.mrb[0].mxu0
  %v555 = vadd.f32 %v108, %v554
  %v556 = vpop.f32.mrb[0].mxu0
  %557 = vmatprep.mubr.bf16.mxu0 %v268
  %558 = vmatmul.mubr.bf16.gmra.mrb[0].mxu0 %v267
  %v559 = vpop.f32.mrb[0].mxu0
  %v560 = vadd.f32 %v108, %v559
  %v561 = vpop.f32.mrb[0].mxu0
  %v562 = vpop.f32.mrb[0].mxu0
  %v563 = vadd.f32 %v108, %v562
  %v564 = vpop.f32.mrb[0].mxu0
  %565 = vmatprep.mubr.bf16.mxu0 %v271
  %566 = vmatmul.mubr.bf16.gmra.mrb[0].mxu0 %v270
  %v567 = vpop.f32.mrb[0].mxu0
  %v568 = vadd.f32 %v108, %v567
  %v569 = vpop.f32.mrb[0].mxu0
  %v570 = vpop.f32.mrb[0].mxu0
  %v571 = vadd.f32 %v108, %v570
  %v572 = vpop.f32.mrb[0].mxu0
  %573 = vmatprep.mubr.bf16.mxu0 %v274
  %574 = vmatmul.mubr.bf16.gmra.mrb[0].mxu0 %v273
  %v575 = vpop.f32.mrb[0].mxu0
  %v576 = vadd.f32 %v108, %v575
  %v577 = vpop.f32.mrb[0].mxu0
  %v578 = vpop.f32.mrb[0].mxu0
  %v579 = vadd.f32 %v108, %v578
  %v580 = vpop.f32.mrb[0].mxu0
  %581 = vmatprep.mubr.bf16.mxu0 %v277
  %582 = vmatmul.mubr.bf16.gmra.mrb[0].mxu0 %v276
  %v583 = vpop.f32.mrb[0].mxu0
  %v584 = vadd.f32 %v108, %v583
  %v585 = vpop.f32.mrb[0].mxu0
  %v586 = vpop.f32.mrb[0].mxu0
  %v587 = vadd.f32 %v108, %v586
  %v588 = vpop.f32.mrb[0].mxu0
  %589 = vdwg.mxu0
  %590 = vmatprep.subr.bf16.mxu0 0
  %591 = vmatpush1.bf16.msra.mxu0 %v393
  %592 = vmatprep.subr.bf16.mxu0 0
  %593 = vmatpush1.bf16.msra.mxu0 %v394
  %594 = vmatprep.subr.bf16.mxu0 0
  %595 = vmatpush1.bf16.msra.mxu0 0
  %596 = vmatprep.subr.bf16.mxu0 0
  %597 = vmatpush1.bf16.msra.mxu0 0
  %598 = vmatprep.subr.bf16.mxu0 0
  %599 = vmatpush1.bf16.msra.mxu0 0
  %600 = vmatprep.subr.bf16.mxu0 0
  %601 = vmatpush1.bf16.msra.mxu0 0
  %602 = vmatprep.subr.bf16.mxu0 0
  %603 = vmatpush1.bf16.msra.mxu0 0
  %604 = vmatprep.subr.bf16.mxu0 0
  %605 = vmatpush1.bf16.msra.mxu0 0
  %606 = vmatprep.subr.bf16.mxu0 0
  %607 = vmatpush1.bf16.msra.mxu0 0
  %608 = vmatprep.subr.bf16.mxu0 0
  %609 = vmatpush1.bf16.msra.mxu0 0
  %610 = vmatprep.subr.bf16.mxu0 0
  %611 = vmatpush1.bf16.msra.mxu0 0
  %612 = vmatprep.subr.bf16.mxu0 0
  %613 = vmatpush1.bf16.msra.mxu0 0
  %614 = vmatprep.subr.bf16.mxu0 0
  %615 = vmatpush1.bf16.msra.mxu0 0
  %616 = vmatprep.subr.bf16.mxu0 0
  %617 = vmatpush1.bf16.msra.mxu0 0
  %618 = vmatprep.subr.bf16.mxu0 0
  %619 = vmatpush1.bf16.msra.mxu0 0
  %620 = vmatprep.subr.bf16.mxu0 0
  %621 = vmatpush1.bf16.msra.mxu0 0
  %622 = vmatprep.mubr.bf16.mxu0 0
  %623 = vmatmul.mubr.bf16.gmra.mrb[0].mxu0 %v415
  %v624 = vpop.f32.mrb[0].mxu0
  %v625 = vadd.f32 %v488, %v624
  %v626 = vpop.f32.mrb[0].mxu0
  %v627 = vpop.f32.mrb[0].mxu0
  %v628 = vadd.f32 %v491, %v627
  %v629 = vpop.f32.mrb[0].mxu0
  %630 = vmatprep.mubr.bf16.mxu0 0
  %631 = vmatmul.mubr.bf16.gmra.mrb[0].mxu0 %v418
  %v632 = vpop.f32.mrb[0].mxu0
  %v633 = vadd.f32 %v496, %v632
  %v634 = vpop.f32.mrb[0].mxu0
  %v635 = vpop.f32.mrb[0].mxu0
  %v636 = vadd.f32 %v499, %v635
  %v637 = vpop.f32.mrb[0].mxu0
  %638 = vmatprep.mubr.bf16.mxu0 0
  %639 = vmatmul.mubr.bf16.gmra.mrb[0].mxu0 %v421
  %v640 = vpop.f32.mrb[0].mxu0
  %v641 = vadd.f32 %v504, %v640
  %v642 = vpop.f32.mrb[0].mxu0
  %v643 = vpop.f32.mrb[0].mxu0
  %v644 = vadd.f32 %v507, %v643
  %v645 = vpop.f32.mrb[0].mxu0
  %646 = vmatprep.mubr.bf16.mxu0 0
  %647 = vmatmul.mubr.bf16.gmra.mrb[0].mxu0 %v424
  %v648 = vpop.f32.mrb[0].mxu0
  %v649 = vadd.f32 %v512, %v648
  %v650 = vpop.f32.mrb[0].mxu0
  %v651 = vpop.f32.mrb[0].mxu0
  %v652 = vadd.f32 %v515, %v651
  %v653 = vpop.f32.mrb[0].mxu0
  %654 = vmatprep.mubr.bf16.mxu0 0
  %655 = vmatmul.mubr.bf16.gmra.mrb[0].mxu0 %v427
  %v656 = vpop.f32.mrb[0].mxu0
  %v657 = vadd.f32 %v520, %v656
  %v658 = vpop.f32.mrb[0].mxu0
  %v659 = vpop.f32.mrb[0].mxu0
  %v660 = vadd.f32 %v523, %v659
  %v661 = vpop.f32.mrb[0].mxu0
  %662 = vmatprep.mubr.bf16.mxu0 0
  %663 = vmatmul.mubr.bf16.gmra.mrb[0].mxu0 %v430
  %v664 = vpop.f32.mrb[0].mxu0
  %v665 = vadd.f32 %v528, %v664
  %v666 = vpop.f32.mrb[0].mxu0
  %v667 = vpop.f32.mrb[0].mxu0
  %v668 = vadd.f32 %v531, %v667
  %v669 = vpop.f32.mrb[0].mxu0
  %670 = vmatprep.mubr.bf16.mxu0 0
  %671 = vmatmul.mubr.bf16.gmra.mrb[0].mxu0 %v433
  %v672 = vpop.f32.mrb[0].mxu0
  %v673 = vadd.f32 %v536, %v672
  %v674 = vpop.f32.mrb[0].mxu0
  %v675 = vpop.f32.mrb[0].mxu0
  %v676 = vadd.f32 %v539, %v675
  %v677 = vpop.f32.mrb[0].mxu0
  %678 = vmatprep.mubr.bf16.mxu0 0
  %679 = vmatmul.mubr.bf16.gmra.mrb[0].mxu0 %v436
  %v680 = vpop.f32.mrb[0].mxu0
  %v681 = vadd.f32 %v544, %v680
  %v682 = vpop.f32.mrb[0].mxu0
  %v683 = vpop.f32.mrb[0].mxu0
  %v684 = vadd.f32 %v547, %v683
  %v685 = vpop.f32.mrb[0].mxu0
  %686 = vmatprep.mubr.bf16.mxu0 0
  %687 = vmatmul.mubr.bf16.gmra.mrb[0].mxu0 %v439
  %v688 = vpop.f32.mrb[0].mxu0
  %v689 = vadd.f32 %v552, %v688
  %v690 = vpop.f32.mrb[0].mxu0
  %v691 = vpop.f32.mrb[0].mxu0
  %v692 = vadd.f32 %v555, %v691
  %v693 = vpop.f32.mrb[0].mxu0
  %694 = vmatprep.mubr.bf16.mxu0 0
  %695 = vmatmul.mubr.bf16.gmra.mrb[0].mxu0 %v442
  %v696 = vpop.f32.mrb[0].mxu0
  %v697 = vadd.f32 %v560, %v696
  %v698 = vpop.f32.mrb[0].mxu0
  %v699 = vpop.f32.mrb[0].mxu0
  %v700 = vadd.f32 %v563, %v699
  %v701 = vpop.f32.mrb[0].mxu0
  %702 = vmatprep.mubr.bf16.mxu0 0
  %703 = vmatmul.mubr.bf16.gmra.mrb[0].mxu0 %v445
  %v704 = vpop.f32.mrb[0].mxu0
  %v705 = vadd.f32 %v568, %v704
  %v706 = vpop.f32.mrb[0].mxu0
  %v707 = vpop.f32.mrb[0].mxu0
  %v708 = vadd.f32 %v571, %v707
  %v709 = vpop.f32.mrb[0].mxu0
  %710 = vmatprep.mubr.bf16.mxu0 0
  %711 = vmatmul.mubr.bf16.gmra.mrb[0].mxu0 %v448
  %v712 = vpop.f32.mrb[0].mxu0
  %v713 = vadd.f32 %v576, %v712
  %v714 = vpop.f32.mrb[0].mxu0
  %v715 = vpop.f32.mrb[0].mxu0
  %v716 = vadd.f32 %v579, %v715
  %v717 = vpop.f32.mrb[0].mxu0
  %718 = vmatprep.mubr.bf16.mxu0 0
  %719 = vmatmul.mubr.bf16.gmra.mrb[0].mxu0 %v451
  %v720 = vpop.f32.mrb[0].mxu0
  %v721 = vadd.f32 %v584, %v720
  %v722 = vpop.f32.mrb[0].mxu0
  %v723 = vpop.f32.mrb[0].mxu0
  %v724 = vadd.f32 %v587, %v723
  %v725 = vpop.f32.mrb[0].mxu0
  %726 = vdwg.mxu0
  %v727 = vmax.f32 %v625, 0.0
  %v728 = vmax.f32 %v628, 0.0
  %v729 = vmax.f32 %v633, 0.0
  %v730 = vmax.f32 %v636, 0.0
  %v731 = vmax.f32 %v641, 0.0
  %v732 = vmax.f32 %v644, 0.0
  %v733 = vmax.f32 %v649, 0.0
  %v734 = vmax.f32 %v652, 0.0
  %v735 = vmax.f32 %v657, 0.0
  %v736 = vmax.f32 %v660, 0.0
  %v737 = vmax.f32 %v665, 0.0
  %v738 = vmax.f32 %v668, 0.0
  %v739 = vmax.f32 %v673, 0.0
  %v740 = vmax.f32 %v676, 0.0
  %v741 = vmax.f32 %v681, 0.0
  %v742 = vmax.f32 %v684, 0.0
  %v743 = vmax.f32 %v689, 0.0
  %v744 = vmax.f32 %v692, 0.0
  %v745 = vmax.f32 %v697, 0.0
  %v746 = vmax.f32 %v700, 0.0
  %v747 = vmax.f32 %v705, 0.0
  %v748 = vmax.f32 %v708, 0.0
  %v749 = vmax.f32 %v713, 0.0
  %v750 = vmax.f32 %v716, 0.0
  %v751 = vmax.f32 %v721, 0.0
  %v752 = vmax.f32 %v724, 0.0
  %v753 = vpack.c.bf16 %v728, %v727
  %v754 = vpack.c.bf16 %v730, %v729
  %v755 = vpack.c.bf16 %v732, %v731
  %v756 = vpack.c.bf16 %v734, %v733
  %v757 = vpack.c.bf16 %v736, %v735
  %v758 = vpack.c.bf16 %v738, %v737
  %v759 = vpack.c.bf16 %v740, %v739
  %v760 = vpack.c.bf16 %v742, %v741
  %v761 = vpack.c.bf16 %v744, %v743
  %v762 = vpack.c.bf16 %v746, %v745
  %v763 = vpack.c.bf16 %v748, %v747
  %v764 = vpack.c.bf16 %v750, %v749
  %v765 = vpack.c.bf16 %v752, %v751
  %v779 = vunpack.c.l.b16 %v753
  %v780 = vunpack.c.h.b16 %v753
  %v781 = vunpack.c.l.b16 %v754
  %v782 = vunpack.c.h.b16 %v754
  %v783 = vunpack.c.l.b16 %v755
  %v784 = vunpack.c.h.b16 %v755
  %v785 = vunpack.c.l.b16 %v756
  %v786 = vunpack.c.h.b16 %v756
  %v787 = vunpack.c.l.b16 %v757
  %v788 = vunpack.c.h.b16 %v757
  %v789 = vunpack.c.l.b16 %v758
  %v790 = vunpack.c.h.b16 %v758
  %v791 = vunpack.c.l.b16 %v759
  %v792 = vunpack.c.h.b16 %v759
  %v793 = vunpack.c.l.b16 %v760
  %v794 = vunpack.c.h.b16 %v760
  %v795 = vunpack.c.l.b16 %v761
  %v796 = vunpack.c.h.b16 %v761
  %v797 = vunpack.c.l.b16 %v762
  %v798 = vunpack.c.h.b16 %v762
  %v799 = vunpack.c.l.b16 %v763
  %v800 = vunpack.c.h.b16 %v763
  %v801 = vunpack.c.l.b16 %v764
  %v802 = vunpack.c.h.b16 %v764
  %v803 = vunpack.c.l.b16 %v765
  %v804 = vunpack.c.h.b16 %v765
  %v805 = vpack.c.b16 %v779, %v779
  %v806 = vpack.c.b16 %v780, %v780
  %v807 = vpack.c.b16 %v781, %v781
  %v808 = vpack.c.b16 %v782, %v782
  %v809 = vpack.c.b16 %v783, %v783
  %v810 = vpack.c.b16 %v784, %v784
  %v811 = vpack.c.b16 %v785, %v785
  %v812 = vpack.c.b16 %v786, %v786
  %v813 = vpack.c.b16 %v787, %v787
  %v814 = vpack.c.b16 %v788, %v788
  %v815 = vpack.c.b16 %v789, %v789
  %v816 = vpack.c.b16 %v790, %v790
  %v817 = vpack.c.b16 %v791, %v791
  %v818 = vpack.c.b16 %v792, %v792
  %v819 = vpack.c.b16 %v793, %v793
  %v820 = vpack.c.b16 %v794, %v794
  %v821 = vpack.c.b16 %v795, %v795
  %v822 = vpack.c.b16 %v796, %v796
  %v823 = vpack.c.b16 %v797, %v797
  %v824 = vpack.c.b16 %v798, %v798
  %v825 = vpack.c.b16 %v799, %v799
  %v826 = vpack.c.b16 %v800, %v800
  %v827 = vpack.c.b16 %v801, %v801
  %v828 = vpack.c.b16 %v802, %v802
  %v829 = vpack.c.b16 %v803, %v803
  %v830 = vpack.c.b16 %v804, %v804
  %vm857 = vcmask 519168
  %858 = vst.msk [vmem:[%s3] sm:$0xf] %vm857, %v805
  %859 = vst.msk [vmem:[%s3 + $0x4] sm:$0xf] %vm857, %v806
  %860 = vst.msk [vmem:[%s3 + $0x8] sm:$0xf] %vm857, %v807
  %861 = vst.msk [vmem:[%s3 + $0xc] sm:$0xf] %vm857, %v808
  %862 = vst.msk [vmem:[%s3 + $0x10] sm:$0xf] %vm857, %v809
  %863 = vst.msk [vmem:[%s3 + $0x14] sm:$0xf] %vm857, %v810
  %864 = vst.msk [vmem:[%s3 + $0x18] sm:$0xf] %vm857, %v811
  %865 = vst.msk [vmem:[%s3 + $0x1c] sm:$0xf] %vm857, %v812
  %866 = vst.msk [vmem:[%s3 + $0x20] sm:$0xf] %vm857, %v813
  %867 = vst.msk [vmem:[%s3 + $0x24] sm:$0xf] %vm857, %v814
  %868 = vst.msk [vmem:[%s3 + $0x28] sm:$0xf] %vm857, %v815
  %869 = vst.msk [vmem:[%s3 + $0x2c] sm:$0xf] %vm857, %v816
  %870 = vst.msk [vmem:[%s3 + $0x30] sm:$0xf] %vm857, %v817
  %871 = vst.msk [vmem:[%s3 + $0x34] sm:$0xf] %vm857, %v818
  %872 = vst.msk [vmem:[%s3 + $0x38] sm:$0xf] %vm857, %v819
  %873 = vst.msk [vmem:[%s3 + $0x3c] sm:$0xf] %vm857, %v820
  %874 = vst.msk [vmem:[%s3 + $0x40] sm:$0xf] %vm857, %v821
  %875 = vst.msk [vmem:[%s3 + $0x44] sm:$0xf] %vm857, %v822
  %876 = vst.msk [vmem:[%s3 + $0x48] sm:$0xf] %vm857, %v823
  %877 = vst.msk [vmem:[%s3 + $0x4c] sm:$0xf] %vm857, %v824
  %878 = vst.msk [vmem:[%s3 + $0x50] sm:$0xf] %vm857, %v825
  %879 = vst.msk [vmem:[%s3 + $0x54] sm:$0xf] %vm857, %v826
  %880 = vst.msk [vmem:[%s3 + $0x58] sm:$0xf] %vm857, %v827
  %881 = vst.msk [vmem:[%s3 + $0x5c] sm:$0xf] %vm857, %v828
  %882 = vst.msk [vmem:[%s3 + $0x60] sm:$0xf] %vm857, %v829
  %883 = vst.msk [vmem:[%s3 + $0x64] sm:$0xf] %vm857, %v830
  // Predicated region
  $region14: #{net2_forward.11} parent=0 // pred_check
    _
  $region15: #{net2_forward.11} parent=0 // pred_check_branch
    %885 = sbr.rel (0) target = $region17
  $region16: #{net2_forward.11} parent=0 // pred_region
    _
  $region17: #{net2_forward.11} parent=0 // pred_fallthru
    _
  // Predicated region
  $region18: #{net2_forward.11} parent=0 // pred_check
    _
  $region19: #{net2_forward.11} parent=0 // pred_check_branch
    %887 = sbr.rel (0) target = $region21
  $region20: #{net2_forward.11} parent=0 // pred_region
    _
  $region21: #{net2_forward.11} parent=0 // pred_fallthru
    _

// kernel: net2_forward.12
$region0: #{net2_forward.12}
  #allocation0 [shape = 'u32[]', space=smem, size = 0x4, offset = 0x4, fixed_abs, tag = 'smem constant byte address 0x4 - core index']
  #allocation1 [shape = 'u32[144,128]{1,0:T(1,128)}', space=vmem, size = 0x12000, scoped, tag = 'internal scratch']
  %s0 = inlined_call_operand.vmem [shape: bf16[128,576], index: 0, kind: input, shape index: {}]
  %s1 = inlined_call_operand.vmem [shape: bf16[576,128], index: 1, kind: input, shape index: {}]
  %s2 = inlined_call_operand.vmem [shape: f32[1,128], index: 2, kind: input, shape index: {}]
  %s3 = inlined_call_operand.vmem [shape: bf16[128,128], index: 3, kind: output, shape index: {}]
  %s4 = sld [smem:[#allocation0]]
  $region22: #{net2_forward.12} parent=0
    _
  %s6 = ssub.s32 1, %s4
  %s7 = scalar_select 0, %s6, %s4
  // Predicated region
  $region2: #{net2_forward.12} parent=0 // pred_check
    _
  $region3: #{net2_forward.12} parent=0 // pred_check_branch
    %9 = sbr.rel (0) target = $region5
  $region4: #{net2_forward.12} parent=0 // pred_region
    _
  $region5: #{net2_forward.12} parent=0 // pred_fallthru
    _
  // Predicated region
  $region6: #{net2_forward.12} parent=0 // pred_check
    _
  $region7: #{net2_forward.12} parent=0 // pred_check_branch
    %11 = sbr.rel (0) target = $region9
  $region8: #{net2_forward.12} parent=0 // pred_region
    _
  $region9: #{net2_forward.12} parent=0 // pred_fallthru
    _
  // Predicated region
  $region10: #{net2_forward.12} parent=0 // pred_check
    _
  $region11: #{net2_forward.12} parent=0 // pred_check_branch
    %13 = sbr.rel (0) target = $region13
  $region12: #{net2_forward.12} parent=0 // pred_region
    _
  $region13: #{net2_forward.12} parent=0 // pred_fallthru
    _
  %v15 = vld [vmem:[%s0] sm:$0xff]
  %v16 = vld [vmem:[%s0 + $0x8] sm:$0xff]
  %v17 = vld [vmem:[%s0 + $0x10] sm:$0xf]
  %v18 = vld [vmem:[%s0 + $0x14] sm:$0xff]
  %v19 = vld [vmem:[%s0 + $0x1c] sm:$0xff]
  %v20 = vld [vmem:[%s0 + $0x24] sm:$0xf]
  %v21 = vld [vmem:[%s0 + $0x28] sm:$0xff]
  %v22 = vld [vmem:[%s0 + $0x30] sm:$0xff]
  %v23 = vld [vmem:[%s0 + $0x38] sm:$0xf]
  %v24 = vld [vmem:[%s0 + $0x3c] sm:$0xff]
  %v25 = vld [vmem:[%s0 + $0x44] sm:$0xff]
  %v26 = vld [vmem:[%s0 + $0x4c] sm:$0xf]
  %v27 = vld [vmem:[%s0 + $0x50] sm:$0xff]
  %v28 = vld [vmem:[%s0 + $0x58] sm:$0xff]
  %v29 = vld [vmem:[%s0 + $0x60] sm:$0xf]
  %v30 = vld [vmem:[%s0 + $0x64] sm:$0xff]
  %v31 = vld [vmem:[%s0 + $0x6c] sm:$0xff]
  %v32 = vld [vmem:[%s0 + $0x74] sm:$0xf]
  %v33 = vld [vmem:[%s0 + $0x78] sm:$0xff]
  %v34 = vld [vmem:[%s0 + $0x80] sm:$0xff]
  %v35 = vld [vmem:[%s0 + $0x88] sm:$0xf]
  %v36 = vld [vmem:[%s0 + $0x8c] sm:$0xff]
  %v37 = vld [vmem:[%s0 + $0x94] sm:$0xff]
  %v38 = vld [vmem:[%s0 + $0x9c] sm:$0xf]
  %v39 = vld [vmem:[%s0 + $0xa0] sm:$0xff]
  %v40 = vld [vmem:[%s0 + $0xa8] sm:$0xff]
  %v41 = vld [vmem:[%s0 + $0xb0] sm:$0xf]
  %v42 = vld [vmem:[%s0 + $0xb4] sm:$0xff]
  %v43 = vld [vmem:[%s0 + $0xbc] sm:$0xff]
  %v44 = vld [vmem:[%s0 + $0xc4] sm:$0xf]
  %v45 = vld [vmem:[%s0 + $0xc8] sm:$0xff]
  %v46 = vld [vmem:[%s0 + $0xd0] sm:$0xff]
  %v47 = vld [vmem:[%s0 + $0xd8] sm:$0xf]
  %v48 = vld [vmem:[%s0 + $0xdc] sm:$0xff]
  %v49 = vld [vmem:[%s0 + $0xe4] sm:$0xff]
  %v50 = vld [vmem:[%s0 + $0xec] sm:$0xf]
  %v51 = vld [vmem:[%s0 + $0xf0] sm:$0xff]
  %v52 = vld [vmem:[%s0 + $0xf8] sm:$0xff]
  %v53 = vld [vmem:[%s0 + $0x100] sm:$0xf]
  %v54 = vld [vmem:[%s0 + $0x104] sm:$0xff]
  %v55 = vld [vmem:[%s0 + $0x10c] sm:$0xff]
  %v56 = vld [vmem:[%s0 + $0x114] sm:$0xf]
  %v57 = vld [vmem:[%s0 + $0x118] sm:$0xff]
  %v58 = vld [vmem:[%s0 + $0x120] sm:$0xff]
  %v59 = vld [vmem:[%s0 + $0x128] sm:$0xf]
  %v60 = vld [vmem:[%s0 + $0x12c] sm:$0xff]
  %v61 = vld [vmem:[%s0 + $0x134] sm:$0xff]
  %v62 = vld [vmem:[%s0 + $0x13c] sm:$0xf]
  %v63 = vld [vmem:[%s1] sm:$0xf]
  %v64 = vld [vmem:[%s1 + $0x4] sm:$0xf]
  %v65 = vld [vmem:[%s1 + $0x8] sm:$0xf]
  %v66 = vld [vmem:[%s1 + $0xc] sm:$0xf]
  %v67 = vld [vmem:[%s1 + $0x10] sm:$0xf]
  %v68 = vld [vmem:[%s1 + $0x14] sm:$0xf]
  %v69 = vld [vmem:[%s1 + $0x18] sm:$0xf]
  %v70 = vld [vmem:[%s1 + $0x1c] sm:$0xf]
  %v71 = vld [vmem:[%s1 + $0x20] sm:$0xf]
  %v72 = vld [vmem:[%s1 + $0x24] sm:$0xf]
  %v73 = vld [vmem:[%s1 + $0x28] sm:$0xf]
  %v74 = vld [vmem:[%s1 + $0x2c] sm:$0xf]
  %v75 = vld [vmem:[%s1 + $0x30] sm:$0xf]
  %v76 = vld [vmem:[%s1 + $0x34] sm:$0xf]
  %v77 = vld [vmem:[%s1 + $0x38] sm:$0xf]
  %v78 = vld [vmem:[%s1 + $0x3c] sm:$0xf]
  %v79 = vld [vmem:[%s1 + $0x40] sm:$0xf]
  %v80 = vld [vmem:[%s1 + $0x44] sm:$0xf]
  %v81 = vld [vmem:[%s1 + $0x48] sm:$0xf]
  %v82 = vld [vmem:[%s1 + $0x4c] sm:$0xf]
  %v83 = vld [vmem:[%s1 + $0x50] sm:$0xf]
  %v84 = vld [vmem:[%s1 + $0x54] sm:$0xf]
  %v85 = vld [vmem:[%s1 + $0x58] sm:$0xf]
  %v86 = vld [vmem:[%s1 + $0x5c] sm:$0xf]
  %v87 = vld [vmem:[%s1 + $0x60] sm:$0xf]
  %v88 = vld [vmem:[%s1 + $0x64] sm:$0xf]
  %v89 = vld [vmem:[%s1 + $0x68] sm:$0xf]
  %v90 = vld [vmem:[%s1 + $0x6c] sm:$0xf]
  %v91 = vld [vmem:[%s1 + $0x70] sm:$0xf]
  %v92 = vld [vmem:[%s1 + $0x74] sm:$0xf]
  %v93 = vld [vmem:[%s1 + $0x78] sm:$0xf]
  %v94 = vld [vmem:[%s1 + $0x7c] sm:$0xf]
  %v95 = vld [vmem:[%s1 + $0x80] sm:$0xf]
  %v96 = vld [vmem:[%s1 + $0x84] sm:$0xf]
  %v97 = vld [vmem:[%s1 + $0x88] sm:$0xf]
  %v98 = vld [vmem:[%s1 + $0x8c] sm:$0xf]
  %v99 = vld [vmem:[%s1 + $0x90] sm:$0xf]
  %v100 = vld [vmem:[%s1 + $0x94] sm:$0xf]
  %v101 = vld [vmem:[%s1 + $0x98] sm:$0xf]
  %v102 = vld [vmem:[%s1 + $0x9c] sm:$0xf]
  %v103 = vld [vmem:[%s1 + $0xa0] sm:$0xf]
  %v104 = vld [vmem:[%s1 + $0xa4] sm:$0xf]
  %v105 = vld [vmem:[%s1 + $0xa8] sm:$0xf]
  %v106 = vld [vmem:[%s1 + $0xac] sm:$0xf]
  %v107 = vld [vmem:[%s1 + $0xb0] sm:$0xf]
  %v108 = vld [vmem:[%s1 + $0xb4] sm:$0xf]
  %v109 = vld [vmem:[%s1 + $0xb8] sm:$0xf]
  %v110 = vld [vmem:[%s1 + $0xbc] sm:$0xf]
  %v111 = vld [vmem:[%s1 + $0xc0] sm:$0xf]
  %v112 = vld [vmem:[%s1 + $0xc4] sm:$0xf]
  %v113 = vld [vmem:[%s1 + $0xc8] sm:$0xf]
  %v114 = vld [vmem:[%s1 + $0xcc] sm:$0xf]
  %v115 = vld [vmem:[%s1 + $0xd0] sm:$0xf]
  %v116 = vld [vmem:[%s1 + $0xd4] sm:$0xf]
  %v117 = vld [vmem:[%s1 + $0xd8] sm:$0xf]
  %v118 = vld [vmem:[%s1 + $0xdc] sm:$0xf]
  %v119 = vld [vmem:[%s1 + $0xe0] sm:$0xf]
  %v120 = vld [vmem:[%s1 + $0xe4] sm:$0xf]
  %v121 = vld [vmem:[%s1 + $0xe8] sm:$0xf]
  %v122 = vld [vmem:[%s1 + $0xec] sm:$0xf]
  %v123 = vld [vmem:[%s1 + $0xf0] sm:$0xf]
  %v124 = vld [vmem:[%s1 + $0xf4] sm:$0xf]
  %v125 = vld [vmem:[%s1 + $0xf8] sm:$0xf]
  %v126 = vld [vmem:[%s1 + $0xfc] sm:$0xf]
  %v127 = vld [vmem:[%s1 + $0x100] sm:$0xf]
  %v128 = vld [vmem:[%s1 + $0x104] sm:$0xf]
  %v129 = vld [vmem:[%s1 + $0x108] sm:$0xf]
  %v130 = vld [vmem:[%s1 + $0x10c] sm:$0xf]
  %v131 = vld [vmem:[%s1 + $0x110] sm:$0xf]
  %v132 = vld [vmem:[%s1 + $0x114] sm:$0xf]
  %v133 = vld [vmem:[%s1 + $0x118] sm:$0xf]
  %v134 = vld [vmem:[%s1 + $0x11c] sm:$0xf]
  %v135 = vld [vmem:[%s2] sm:$0x1]
  %v137 = vlaneseq
  %v138 = vshrl.u32 %v137, 7
  %v139 = vsub.s32 0, %v138
  %v140 = vrot.slane %v135, %v139
  %v190 = vunpack.c.l.b16 %v15
  %v191 = vunpack.c.h.b16 %v15
  %v192 = vunpack.c.l.b16 %v16
  %v193 = vunpack.c.h.b16 %v16
  %v194 = vunpack.c.l.b16 %v17
  %v195 = vunpack.c.l.b16 %v18
  %v196 = vunpack.c.h.b16 %v18
  %v197 = vunpack.c.l.b16 %v19
  %v198 = vunpack.c.h.b16 %v19
  %v199 = vunpack.c.l.b16 %v20
  %v200 = vunpack.c.l.b16 %v21
  %v201 = vunpack.c.h.b16 %v21
  %v202 = vunpack.c.l.b16 %v22
  %v203 = vunpack.c.h.b16 %v22
  %v204 = vunpack.c.l.b16 %v23
  %v205 = vunpack.c.l.b16 %v24
  %v206 = vunpack.c.h.b16 %v24
  %v207 = vunpack.c.l.b16 %v25
  %v208 = vunpack.c.h.b16 %v25
  %v209 = vunpack.c.l.b16 %v26
  %v210 = vunpack.c.l.b16 %v27
  %v211 = vunpack.c.h.b16 %v27
  %v212 = vunpack.c.l.b16 %v28
  %v213 = vunpack.c.h.b16 %v28
  %v214 = vunpack.c.l.b16 %v29
  %v215 = vunpack.c.l.b16 %v30
  %v216 = vunpack.c.h.b16 %v30
  %v217 = vunpack.c.l.b16 %v31
  %v218 = vunpack.c.h.b16 %v31
  %v219 = vunpack.c.l.b16 %v32
  %v220 = vunpack.c.l.b16 %v33
  %v221 = vunpack.c.h.b16 %v33
  %v222 = vunpack.c.l.b16 %v34
  %v223 = vunpack.c.h.b16 %v34
  %v224 = vunpack.c.l.b16 %v35
  %v225 = vunpack.c.l.b16 %v36
  %v226 = vunpack.c.h.b16 %v36
  %v227 = vunpack.c.l.b16 %v37
  %v228 = vunpack.c.h.b16 %v37
  %v229 = vunpack.c.l.b16 %v38
  %v230 = vunpack.c.l.b16 %v39
  %v231 = vunpack.c.h.b16 %v39
  %v232 = vunpack.c.l.b16 %v40
  %v233 = vunpack.c.h.b16 %v40
  %v234 = vunpack.c.l.b16 %v41
  %v235 = vunpack.c.l.b16 %v42
  %v236 = vunpack.c.h.b16 %v42
  %v237 = vunpack.c.l.b16 %v43
  %v238 = vunpack.c.h.b16 %v43
  %v239 = vunpack.c.l.b16 %v44
  %v240 = vunpack.c.l.b16 %v45
  %v241 = vunpack.c.h.b16 %v45
  %v242 = vunpack.c.l.b16 %v46
  %v243 = vunpack.c.h.b16 %v46
  %v244 = vunpack.c.l.b16 %v47
  %v245 = vunpack.c.l.b16 %v48
  %v246 = vunpack.c.h.b16 %v48
  %v247 = vunpack.c.l.b16 %v49
  %v248 = vunpack.c.h.b16 %v49
  %v249 = vunpack.c.l.b16 %v50
  %v250 = vunpack.c.l.b16 %v51
  %v251 = vunpack.c.h.b16 %v51
  %v252 = vunpack.c.l.b16 %v52
  %v253 = vunpack.c.h.b16 %v52
  %v254 = vunpack.c.l.b16 %v53
  %v255 = vunpack.c.l.b16 %v54
  %v256 = vunpack.c.h.b16 %v54
  %v257 = vunpack.c.l.b16 %v55
  %v258 = vunpack.c.h.b16 %v55
  %v259 = vunpack.c.l.b16 %v56
  %v260 = vunpack.c.l.b16 %v57
  %v261 = vunpack.c.h.b16 %v57
  %v262 = vunpack.c.l.b16 %v58
  %v263 = vunpack.c.h.b16 %v58
  %v264 = vunpack.c.l.b16 %v59
  %v265 = vunpack.c.l.b16 %v60
  %v266 = vunpack.c.h.b16 %v60
  %v267 = vunpack.c.l.b16 %v61
  %v268 = vunpack.c.h.b16 %v61
  %v269 = vunpack.c.l.b16 %v62
  %v270 = vpack.c.b16 %v195, %v190
  %v271 = vpack.c.b16 %v196, %v191
  %v272 = vpack.c.b16 %v197, %v192
  %v273 = vpack.c.b16 %v198, %v193
  %v274 = vpack.c.b16 %v199, %v194
  %v275 = vpack.c.b16 %v205, %v200
  %v276 = vpack.c.b16 %v206, %v201
  %v277 = vpack.c.b16 %v207, %v202
  %v278 = vpack.c.b16 %v208, %v203
  %v279 = vpack.c.b16 %v209, %v204
  %v280 = vpack.c.b16 %v215, %v210
  %v281 = vpack.c.b16 %v216, %v211
  %v282 = vpack.c.b16 %v217, %v212
  %v283 = vpack.c.b16 %v218, %v213
  %v284 = vpack.c.b16 %v219, %v214
  %v285 = vpack.c.b16 %v225, %v220
  %v286 = vpack.c.b16 %v226, %v221
  %v287 = vpack.c.b16 %v227, %v222
  %v288 = vpack.c.b16 %v228, %v223
  %v289 = vpack.c.b16 %v229, %v224
  %v290 = vpack.c.b16 %v235, %v230
  %v291 = vpack.c.b16 %v236, %v231
  %v292 = vpack.c.b16 %v237, %v232
  %v293 = vpack.c.b16 %v238, %v233
  %v294 = vpack.c.b16 %v239, %v234
  %v295 = vpack.c.b16 %v245, %v240
  %v296 = vpack.c.b16 %v246, %v241
  %v297 = vpack.c.b16 %v247, %v242
  %v298 = vpack.c.b16 %v248, %v243
  %v299 = vpack.c.b16 %v249, %v244
  %v300 = vpack.c.b16 %v255, %v250
  %v301 = vpack.c.b16 %v256, %v251
  %v302 = vpack.c.b16 %v257, %v252
  %v303 = vpack.c.b16 %v258, %v253
  %v304 = vpack.c.b16 %v259, %v254
  %v305 = vpack.c.b16 %v265, %v260
  %v306 = vpack.c.b16 %v266, %v261
  %v307 = vpack.c.b16 %v267, %v262
  %v308 = vpack.c.b16 %v268, %v263
  %v309 = vpack.c.b16 %v269, %v264
  %v414 = vunpack.c.l.b16 %v63
  %v415 = vunpack.c.l.b16 %v64
  %v416 = vunpack.c.l.b16 %v65
  %v417 = vunpack.c.l.b16 %v66
  %v418 = vunpack.c.l.b16 %v67
  %v419 = vunpack.c.l.b16 %v68
  %v420 = vunpack.c.l.b16 %v69
  %v421 = vunpack.c.l.b16 %v70
  %v422 = vunpack.c.l.b16 %v71
  %v423 = vunpack.c.l.b16 %v72
  %v424 = vunpack.c.l.b16 %v73
  %v425 = vunpack.c.l.b16 %v74
  %v426 = vunpack.c.l.b16 %v75
  %v427 = vunpack.c.l.b16 %v76
  %v428 = vunpack.c.l.b16 %v77
  %v429 = vunpack.c.l.b16 %v78
  %v430 = vunpack.c.l.b16 %v79
  %v431 = vunpack.c.l.b16 %v80
  %v432 = vunpack.c.l.b16 %v81
  %v433 = vunpack.c.l.b16 %v82
  %v434 = vunpack.c.l.b16 %v83
  %v435 = vunpack.c.l.b16 %v84
  %v436 = vunpack.c.l.b16 %v85
  %v437 = vunpack.c.l.b16 %v86
  %v438 = vunpack.c.l.b16 %v87
  %v439 = vunpack.c.l.b16 %v88
  %v440 = vunpack.c.l.b16 %v89
  %v441 = vunpack.c.l.b16 %v90
  %v442 = vunpack.c.l.b16 %v91
  %v443 = vunpack.c.l.b16 %v92
  %v444 = vunpack.c.l.b16 %v93
  %v445 = vunpack.c.l.b16 %v94
  %v446 = vunpack.c.l.b16 %v95
  %v447 = vunpack.c.l.b16 %v96
  %v448 = vunpack.c.l.b16 %v97
  %v449 = vunpack.c.l.b16 %v98
  %v450 = vunpack.c.l.b16 %v99
  %v451 = vunpack.c.l.b16 %v100
  %v452 = vunpack.c.l.b16 %v101
  %v453 = vunpack.c.l.b16 %v102
  %v454 = vunpack.c.l.b16 %v103
  %v455 = vunpack.c.l.b16 %v104
  %v456 = vunpack.c.l.b16 %v105
  %v457 = vunpack.c.l.b16 %v106
  %v458 = vunpack.c.l.b16 %v107
  %v459 = vunpack.c.l.b16 %v108
  %v460 = vunpack.c.l.b16 %v109
  %v461 = vunpack.c.l.b16 %v110
  %v462 = vunpack.c.l.b16 %v111
  %v463 = vunpack.c.l.b16 %v112
  %v464 = vunpack.c.l.b16 %v113
  %v465 = vunpack.c.l.b16 %v114
  %v466 = vunpack.c.l.b16 %v115
  %v467 = vunpack.c.l.b16 %v116
  %v468 = vunpack.c.l.b16 %v117
  %v469 = vunpack.c.l.b16 %v118
  %v470 = vunpack.c.l.b16 %v119
  %v471 = vunpack.c.l.b16 %v120
  %v472 = vunpack.c.l.b16 %v121
  %v473 = vunpack.c.l.b16 %v122
  %v474 = vunpack.c.l.b16 %v123
  %v475 = vunpack.c.l.b16 %v124
  %v476 = vunpack.c.l.b16 %v125
  %v477 = vunpack.c.l.b16 %v126
  %v478 = vunpack.c.l.b16 %v127
  %v479 = vunpack.c.l.b16 %v128
  %v480 = vunpack.c.l.b16 %v129
  %v481 = vunpack.c.l.b16 %v130
  %v482 = vunpack.c.l.b16 %v131
  %v483 = vunpack.c.l.b16 %v132
  %v484 = vunpack.c.l.b16 %v133
  %v485 = vunpack.c.l.b16 %v134
  %v486 = vpack.c.b16 %v415, %v414
  %v487 = vpack.c.b16 %v417, %v416
  %v488 = vpack.c.b16 %v419, %v418
  %v489 = vpack.c.b16 %v421, %v420
  %v490 = vpack.c.b16 %v423, %v422
  %v491 = vpack.c.b16 %v425, %v424
  %v492 = vpack.c.b16 %v427, %v426
  %v493 = vpack.c.b16 %v429, %v428
  %v494 = vpack.c.b16 %v431, %v430
  %v495 = vpack.c.b16 %v433, %v432
  %v496 = vpack.c.b16 %v435, %v434
  %v497 = vpack.c.b16 %v437, %v436
  %v498 = vpack.c.b16 %v439, %v438
  %v499 = vpack.c.b16 %v441, %v440
  %v500 = vpack.c.b16 %v443, %v442
  %v501 = vpack.c.b16 %v445, %v444
  %v502 = vpack.c.b16 %v447, %v446
  %v503 = vpack.c.b16 %v449, %v448
  %v504 = vpack.c.b16 %v451, %v450
  %v505 = vpack.c.b16 %v453, %v452
  %v506 = vpack.c.b16 %v455, %v454
  %v507 = vpack.c.b16 %v457, %v456
  %v508 = vpack.c.b16 %v459, %v458
  %v509 = vpack.c.b16 %v461, %v460
  %v510 = vpack.c.b16 %v463, %v462
  %v511 = vpack.c.b16 %v465, %v464
  %v512 = vpack.c.b16 %v467, %v466
  %v513 = vpack.c.b16 %v469, %v468
  %v514 = vpack.c.b16 %v471, %v470
  %v515 = vpack.c.b16 %v473, %v472
  %v516 = vpack.c.b16 %v475, %v474
  %v517 = vpack.c.b16 %v477, %v476
  %v518 = vpack.c.b16 %v479, %v478
  %v519 = vpack.c.b16 %v481, %v480
  %v520 = vpack.c.b16 %v483, %v482
  %v521 = vpack.c.b16 %v485, %v484
  %vm558 = vcmask 523264
  %v560 = vsel %vm558, %v274, 0
  %v563 = vsel %vm558, %v279, 0
  %v566 = vsel %vm558, %v284, 0
  %v569 = vsel %vm558, %v289, 0
  %v572 = vsel %vm558, %v294, 0
  %v575 = vsel %vm558, %v299, 0
  %v578 = vsel %vm558, %v304, 0
  %v581 = vsel %vm558, %v309, 0
  %583 = vmatprep.subr.bf16.mxu0 0
  %584 = vmatpush1.bf16.msra.mxu0 %v486
  %585 = vmatprep.subr.bf16.mxu0 0
  %586 = vmatpush1.bf16.msra.mxu0 %v487
  %587 = vmatprep.subr.bf16.mxu0 0
  %588 = vmatpush1.bf16.msra.mxu0 %v488
  %589 = vmatprep.subr.bf16.mxu0 0
  %590 = vmatpush1.bf16.msra.mxu0 %v489
  %591 = vmatprep.subr.bf16.mxu0 0
  %592 = vmatpush1.bf16.msra.mxu0 %v490
  %593 = vmatprep.subr.bf16.mxu0 0
  %594 = vmatpush1.bf16.msra.mxu0 %v491
  %595 = vmatprep.subr.bf16.mxu0 0
  %596 = vmatpush1.bf16.msra.mxu0 %v492
  %597 = vmatprep.subr.bf16.mxu0 0
  %598 = vmatpush1.bf16.msra.mxu0 %v493
  %599 = vmatprep.subr.bf16.mxu0 0
  %600 = vmatpush1.bf16.msra.mxu0 %v494
  %601 = vmatprep.subr.bf16.mxu0 0
  %602 = vmatpush1.bf16.msra.mxu0 %v495
  %603 = vmatprep.subr.bf16.mxu0 0
  %604 = vmatpush1.bf16.msra.mxu0 %v496
  %605 = vmatprep.subr.bf16.mxu0 0
  %606 = vmatpush1.bf16.msra.mxu0 %v497
  %607 = vmatprep.subr.bf16.mxu0 0
  %608 = vmatpush1.bf16.msra.mxu0 %v498
  %609 = vmatprep.subr.bf16.mxu0 0
  %610 = vmatpush1.bf16.msra.mxu0 %v499
  %611 = vmatprep.subr.bf16.mxu0 0
  %612 = vmatpush1.bf16.msra.mxu0 %v500
  %613 = vmatprep.subr.bf16.mxu0 0
  %614 = vmatpush1.bf16.msra.mxu0 %v501
  %615 = vmatprep.mubr.bf16.mxu0 %v271
  %616 = vmatmul.mubr.bf16.gmra.mrb[0].mxu0 %v270
  %v617 = vpop.f32.mrb[0].mxu0
  %v618 = vadd.f32 %v140, %v617
  %v619 = vpop.f32.mrb[0].mxu0
  %v620 = vpop.f32.mrb[0].mxu0
  %v621 = vadd.f32 %v140, %v620
  %v622 = vpop.f32.mrb[0].mxu0
  %623 = vmatprep.mubr.bf16.mxu0 %v276
  %624 = vmatmul.mubr.bf16.gmra.mrb[0].mxu0 %v275
  %v625 = vpop.f32.mrb[0].mxu0
  %v626 = vadd.f32 %v140, %v625
  %v627 = vpop.f32.mrb[0].mxu0
  %v628 = vpop.f32.mrb[0].mxu0
  %v629 = vadd.f32 %v140, %v628
  %v630 = vpop.f32.mrb[0].mxu0
  %631 = vmatprep.mubr.bf16.mxu0 %v281
  %632 = vmatmul.mubr.bf16.gmra.mrb[0].mxu0 %v280
  %v633 = vpop.f32.mrb[0].mxu0
  %v634 = vadd.f32 %v140, %v633
  %v635 = vpop.f32.mrb[0].mxu0
  %v636 = vpop.f32.mrb[0].mxu0
  %v637 = vadd.f32 %v140, %v636
  %v638 = vpop.f32.mrb[0].mxu0
  %639 = vmatprep.mubr.bf16.mxu0 %v286
  %640 = vmatmul.mubr.bf16.gmra.mrb[0].mxu0 %v285
  %v641 = vpop.f32.mrb[0].mxu0
  %v642 = vadd.f32 %v140, %v641
  %v643 = vpop.f32.mrb[0].mxu0
  %v644 = vpop.f32.mrb[0].mxu0
  %v645 = vadd.f32 %v140, %v644
  %v646 = vpop.f32.mrb[0].mxu0
  %647 = vmatprep.mubr.bf16.mxu0 %v291
  %648 = vmatmul.mubr.bf16.gmra.mrb[0].mxu0 %v290
  %v649 = vpop.f32.mrb[0].mxu0
  %v650 = vadd.f32 %v140, %v649
  %v651 = vpop.f32.mrb[0].mxu0
  %v652 = vpop.f32.mrb[0].mxu0
  %v653 = vadd.f32 %v140, %v652
  %v654 = vpop.f32.mrb[0].mxu0
  %655 = vmatprep.mubr.bf16.mxu0 %v296
  %656 = vmatmul.mubr.bf16.gmra.mrb[0].mxu0 %v295
  %v657 = vpop.f32.mrb[0].mxu0
  %v658 = vadd.f32 %v140, %v657
  %v659 = vpop.f32.mrb[0].mxu0
  %v660 = vpop.f32.mrb[0].mxu0
  %v661 = vadd.f32 %v140, %v660
  %v662 = vpop.f32.mrb[0].mxu0
  %663 = vmatprep.mubr.bf16.mxu0 %v301
  %664 = vmatmul.mubr.bf16.gmra.mrb[0].mxu0 %v300
  %v665 = vpop.f32.mrb[0].mxu0
  %v666 = vadd.f32 %v140, %v665
  %v667 = vpop.f32.mrb[0].mxu0
  %v668 = vpop.f32.mrb[0].mxu0
  %v669 = vadd.f32 %v140, %v668
  %v670 = vpop.f32.mrb[0].mxu0
  %671 = vmatprep.mubr.bf16.mxu0 %v306
  %672 = vmatmul.mubr.bf16.gmra.mrb[0].mxu0 %v305
  %v673 = vpop.f32.mrb[0].mxu0
  %v674 = vadd.f32 %v140, %v673
  %v675 = vpop.f32.mrb[0].mxu0
  %v676 = vpop.f32.mrb[0].mxu0
  %v677 = vadd.f32 %v140, %v676
  %v678 = vpop.f32.mrb[0].mxu0
  %679 = vdwg.mxu0
  %680 = vmatprep.subr.bf16.mxu0 0
  %681 = vmatpush1.bf16.msra.mxu0 %v502
  %682 = vmatprep.subr.bf16.mxu0 0
  %683 = vmatpush1.bf16.msra.mxu0 %v503
  %684 = vmatprep.subr.bf16.mxu0 0
  %685 = vmatpush1.bf16.msra.mxu0 %v504
  %686 = vmatprep.subr.bf16.mxu0 0
  %687 = vmatpush1.bf16.msra.mxu0 %v505
  %688 = vmatprep.subr.bf16.mxu0 0
  %689 = vmatpush1.bf16.msra.mxu0 %v506
  %690 = vmatprep.subr.bf16.mxu0 0
  %691 = vmatpush1.bf16.msra.mxu0 %v507
  %692 = vmatprep.subr.bf16.mxu0 0
  %693 = vmatpush1.bf16.msra.mxu0 %v508
  %694 = vmatprep.subr.bf16.mxu0 0
  %695 = vmatpush1.bf16.msra.mxu0 %v509
  %696 = vmatprep.subr.bf16.mxu0 0
  %697 = vmatpush1.bf16.msra.mxu0 %v510
  %698 = vmatprep.subr.bf16.mxu0 0
  %699 = vmatpush1.bf16.msra.mxu0 %v511
  %700 = vmatprep.subr.bf16.mxu0 0
  %701 = vmatpush1.bf16.msra.mxu0 %v512
  %702 = vmatprep.subr.bf16.mxu0 0
  %703 = vmatpush1.bf16.msra.mxu0 %v513
  %704 = vmatprep.subr.bf16.mxu0 0
  %705 = vmatpush1.bf16.msra.mxu0 %v514
  %706 = vmatprep.subr.bf16.mxu0 0
  %707 = vmatpush1.bf16.msra.mxu0 %v515
  %708 = vmatprep.subr.bf16.mxu0 0
  %709 = vmatpush1.bf16.msra.mxu0 %v516
  %710 = vmatprep.subr.bf16.mxu0 0
  %711 = vmatpush1.bf16.msra.mxu0 %v517
  %712 = vmatprep.mubr.bf16.mxu0 %v273
  %713 = vmatmul.mubr.bf16.gmra.mrb[0].mxu0 %v272
  %v714 = vpop.f32.mrb[0].mxu0
  %v715 = vadd.f32 %v618, %v714
  %v716 = vpop.f32.mrb[0].mxu0
  %v717 = vpop.f32.mrb[0].mxu0
  %v718 = vadd.f32 %v621, %v717
  %v719 = vpop.f32.mrb[0].mxu0
  %720 = vmatprep.mubr.bf16.mxu0 %v278
  %721 = vmatmul.mubr.bf16.gmra.mrb[0].mxu0 %v277
  %v722 = vpop.f32.mrb[0].mxu0
  %v723 = vadd.f32 %v626, %v722
  %v724 = vpop.f32.mrb[0].mxu0
  %v725 = vpop.f32.mrb[0].mxu0
  %v726 = vadd.f32 %v629, %v725
  %v727 = vpop.f32.mrb[0].mxu0
  %728 = vmatprep.mubr.bf16.mxu0 %v283
  %729 = vmatmul.mubr.bf16.gmra.mrb[0].mxu0 %v282
  %v730 = vpop.f32.mrb[0].mxu0
  %v731 = vadd.f32 %v634, %v730
  %v732 = vpop.f32.mrb[0].mxu0
  %v733 = vpop.f32.mrb[0].mxu0
  %v734 = vadd.f32 %v637, %v733
  %v735 = vpop.f32.mrb[0].mxu0
  %736 = vmatprep.mubr.bf16.mxu0 %v288
  %737 = vmatmul.mubr.bf16.gmra.mrb[0].mxu0 %v287
  %v738 = vpop.f32.mrb[0].mxu0
  %v739 = vadd.f32 %v642, %v738
  %v740 = vpop.f32.mrb[0].mxu0
  %v741 = vpop.f32.mrb[0].mxu0
  %v742 = vadd.f32 %v645, %v741
  %v743 = vpop.f32.mrb[0].mxu0
  %744 = vmatprep.mubr.bf16.mxu0 %v293
  %745 = vmatmul.mubr.bf16.gmra.mrb[0].mxu0 %v292
  %v746 = vpop.f32.mrb[0].mxu0
  %v747 = vadd.f32 %v650, %v746
  %v748 = vpop.f32.mrb[0].mxu0
  %v749 = vpop.f32.mrb[0].mxu0
  %v750 = vadd.f32 %v653, %v749
  %v751 = vpop.f32.mrb[0].mxu0
  %752 = vmatprep.mubr.bf16.mxu0 %v298
  %753 = vmatmul.mubr.bf16.gmra.mrb[0].mxu0 %v297
  %v754 = vpop.f32.mrb[0].mxu0
  %v755 = vadd.f32 %v658, %v754
  %v756 = vpop.f32.mrb[0].mxu0
  %v757 = vpop.f32.mrb[0].mxu0
  %v758 = vadd.f32 %v661, %v757
  %v759 = vpop.f32.mrb[0].mxu0
  %760 = vmatprep.mubr.bf16.mxu0 %v303
  %761 = vmatmul.mubr.bf16.gmra.mrb[0].mxu0 %v302
  %v762 = vpop.f32.mrb[0].mxu0
  %v763 = vadd.f32 %v666, %v762
  %v764 = vpop.f32.mrb[0].mxu0
  %v765 = vpop.f32.mrb[0].mxu0
  %v766 = vadd.f32 %v669, %v765
  %v767 = vpop.f32.mrb[0].mxu0
  %768 = vmatprep.mubr.bf16.mxu0 %v308
  %769 = vmatmul.mubr.bf16.gmra.mrb[0].mxu0 %v307
  %v770 = vpop.f32.mrb[0].mxu0
  %v771 = vadd.f32 %v674, %v770
  %v772 = vpop.f32.mrb[0].mxu0
  %v773 = vpop.f32.mrb[0].mxu0
  %v774 = vadd.f32 %v677, %v773
  %v775 = vpop.f32.mrb[0].mxu0
  %776 = vdwg.mxu0
  %777 = vmatprep.subr.bf16.mxu0 0
  %778 = vmatpush1.bf16.msra.mxu0 %v518
  %779 = vmatprep.subr.bf16.mxu0 0
  %780 = vmatpush1.bf16.msra.mxu0 %v519
  %781 = vmatprep.subr.bf16.mxu0 0
  %782 = vmatpush1.bf16.msra.mxu0 %v520
  %783 = vmatprep.subr.bf16.mxu0 0
  %784 = vmatpush1.bf16.msra.mxu0 %v521
  %785 = vmatprep.subr.bf16.mxu0 0
  %786 = vmatpush1.bf16.msra.mxu0 0
  %787 = vmatprep.subr.bf16.mxu0 0
  %788 = vmatpush1.bf16.msra.mxu0 0
  %789 = vmatprep.subr.bf16.mxu0 0
  %790 = vmatpush1.bf16.msra.mxu0 0
  %791 = vmatprep.subr.bf16.mxu0 0
  %792 = vmatpush1.bf16.msra.mxu0 0
  %793 = vmatprep.subr.bf16.mxu0 0
  %794 = vmatpush1.bf16.msra.mxu0 0
  %795 = vmatprep.subr.bf16.mxu0 0
  %796 = vmatpush1.bf16.msra.mxu0 0
  %797 = vmatprep.subr.bf16.mxu0 0
  %798 = vmatpush1.bf16.msra.mxu0 0
  %799 = vmatprep.subr.bf16.mxu0 0
  %800 = vmatpush1.bf16.msra.mxu0 0
  %801 = vmatprep.subr.bf16.mxu0 0
  %802 = vmatpush1.bf16.msra.mxu0 0
  %803 = vmatprep.subr.bf16.mxu0 0
  %804 = vmatpush1.bf16.msra.mxu0 0
  %805 = vmatprep.subr.bf16.mxu0 0
  %806 = vmatpush1.bf16.msra.mxu0 0
  %807 = vmatprep.subr.bf16.mxu0 0
  %808 = vmatpush1.bf16.msra.mxu0 0
  %809 = vmatprep.mubr.bf16.mxu0 0
  %810 = vmatmul.mubr.bf16.gmra.mrb[0].mxu0 %v560
  %v811 = vpop.f32.mrb[0].mxu0
  %v812 = vadd.f32 %v715, %v811
  %v813 = vpop.f32.mrb[0].mxu0
  %v814 = vpop.f32.mrb[0].mxu0
  %v815 = vadd.f32 %v718, %v814
  %v816 = vpop.f32.mrb[0].mxu0
  %817 = vmatprep.mubr.bf16.mxu0 0
  %818 = vmatmul.mubr.bf16.gmra.mrb[0].mxu0 %v563
  %v819 = vpop.f32.mrb[0].mxu0
  %v820 = vadd.f32 %v723, %v819
  %v821 = vpop.f32.mrb[0].mxu0
  %v822 = vpop.f32.mrb[0].mxu0
  %v823 = vadd.f32 %v726, %v822
  %v824 = vpop.f32.mrb[0].mxu0
  %825 = vmatprep.mubr.bf16.mxu0 0
  %826 = vmatmul.mubr.bf16.gmra.mrb[0].mxu0 %v566
  %v827 = vpop.f32.mrb[0].mxu0
  %v828 = vadd.f32 %v731, %v827
  %v829 = vpop.f32.mrb[0].mxu0
  %v830 = vpop.f32.mrb[0].mxu0
  %v831 = vadd.f32 %v734, %v830
  %v832 = vpop.f32.mrb[0].mxu0
  %833 = vmatprep.mubr.bf16.mxu0 0
  %834 = vmatmul.mubr.bf16.gmra.mrb[0].mxu0 %v569
  %v835 = vpop.f32.mrb[0].mxu0
  %v836 = vadd.f32 %v739, %v835
  %v837 = vpop.f32.mrb[0].mxu0
  %v838 = vpop.f32.mrb[0].mxu0
  %v839 = vadd.f32 %v742, %v838
  %v840 = vpop.f32.mrb[0].mxu0
  %841 = vmatprep.mubr.bf16.mxu0 0
  %842 = vmatmul.mubr.bf16.gmra.mrb[0].mxu0 %v572
  %v843 = vpop.f32.mrb[0].mxu0
  %v844 = vadd.f32 %v747, %v843
  %v845 = vpop.f32.mrb[0].mxu0
  %v846 = vpop.f32.mrb[0].mxu0
  %v847 = vadd.f32 %v750, %v846
  %v848 = vpop.f32.mrb[0].mxu0
  %849 = vmatprep.mubr.bf16.mxu0 0
  %850 = vmatmul.mubr.bf16.gmra.mrb[0].mxu0 %v575
  %v851 = vpop.f32.mrb[0].mxu0
  %v852 = vadd.f32 %v755, %v851
  %v853 = vpop.f32.mrb[0].mxu0
  %v854 = vpop.f32.mrb[0].mxu0
  %v855 = vadd.f32 %v758, %v854
  %v856 = vpop.f32.mrb[0].mxu0
  %857 = vmatprep.mubr.bf16.mxu0 0
  %858 = vmatmul.mubr.bf16.gmra.mrb[0].mxu0 %v578
  %v859 = vpop.f32.mrb[0].mxu0
  %v860 = vadd.f32 %v763, %v859
  %v861 = vpop.f32.mrb[0].mxu0
  %v862 = vpop.f32.mrb[0].mxu0
  %v863 = vadd.f32 %v766, %v862
  %v864 = vpop.f32.mrb[0].mxu0
  %865 = vmatprep.mubr.bf16.mxu0 0
  %866 = vmatmul.mubr.bf16.gmra.mrb[0].mxu0 %v581
  %v867 = vpop.f32.mrb[0].mxu0
  %v868 = vadd.f32 %v771, %v867
  %v869 = vpop.f32.mrb[0].mxu0
  %v870 = vpop.f32.mrb[0].mxu0
  %v871 = vadd.f32 %v774, %v870
  %v872 = vpop.f32.mrb[0].mxu0
  %873 = vdwg.mxu0
  %v874 = vmax.f32 %v812, 0.0
  %v875 = vmax.f32 %v815, 0.0
  %v876 = vmax.f32 %v820, 0.0
  %v877 = vmax.f32 %v823, 0.0
  %v878 = vmax.f32 %v828, 0.0
  %v879 = vmax.f32 %v831, 0.0
  %v880 = vmax.f32 %v836, 0.0
  %v881 = vmax.f32 %v839, 0.0
  %v882 = vmax.f32 %v844, 0.0
  %v883 = vmax.f32 %v847, 0.0
  %v884 = vmax.f32 %v852, 0.0
  %v885 = vmax.f32 %v855, 0.0
  %v886 = vmax.f32 %v860, 0.0
  %v887 = vmax.f32 %v863, 0.0
  %v888 = vmax.f32 %v868, 0.0
  %v889 = vmax.f32 %v871, 0.0
  %v890 = vpack.c.bf16 %v875, %v874
  %v891 = vpack.c.bf16 %v877, %v876
  %v892 = vpack.c.bf16 %v879, %v878
  %v893 = vpack.c.bf16 %v881, %v880
  %v894 = vpack.c.bf16 %v883, %v882
  %v895 = vpack.c.bf16 %v885, %v884
  %v896 = vpack.c.bf16 %v887, %v886
  %v897 = vpack.c.bf16 %v889, %v888
  %v906 = vunpack.c.l.b16 %v890
  %v907 = vunpack.c.h.b16 %v890
  %v908 = vunpack.c.l.b16 %v891
  %v909 = vunpack.c.h.b16 %v891
  %v910 = vunpack.c.l.b16 %v892
  %v911 = vunpack.c.h.b16 %v892
  %v912 = vunpack.c.l.b16 %v893
  %v913 = vunpack.c.h.b16 %v893
  %v914 = vunpack.c.l.b16 %v894
  %v915 = vunpack.c.h.b16 %v894
  %v916 = vunpack.c.l.b16 %v895
  %v917 = vunpack.c.h.b16 %v895
  %v918 = vunpack.c.l.b16 %v896
  %v919 = vunpack.c.h.b16 %v896
  %v920 = vunpack.c.l.b16 %v897
  %v921 = vunpack.c.h.b16 %v897
  %v922 = vpack.c.b16 %v906, %v906
  %v923 = vpack.c.b16 %v907, %v907
  %v924 = vpack.c.b16 %v908, %v908
  %v925 = vpack.c.b16 %v909, %v909
  %v926 = vpack.c.b16 %v910, %v910
  %v927 = vpack.c.b16 %v911, %v911
  %v928 = vpack.c.b16 %v912, %v912
  %v929 = vpack.c.b16 %v913, %v913
  %v930 = vpack.c.b16 %v914, %v914
  %v931 = vpack.c.b16 %v915, %v915
  %v932 = vpack.c.b16 %v916, %v916
  %v933 = vpack.c.b16 %v917, %v917
  %v934 = vpack.c.b16 %v918, %v918
  %v935 = vpack.c.b16 %v919, %v919
  %v936 = vpack.c.b16 %v920, %v920
  %v937 = vpack.c.b16 %v921, %v921
  %954 = vst [vmem:[%s3] sm:$0xf] %v922
  %955 = vst [vmem:[%s3 + $0x4] sm:$0xf] %v923
  %956 = vst [vmem:[%s3 + $0x8] sm:$0xf] %v924
  %957 = vst [vmem:[%s3 + $0xc] sm:$0xf] %v925
  %958 = vst [vmem:[%s3 + $0x10] sm:$0xf] %v926
  %959 = vst [vmem:[%s3 + $0x14] sm:$0xf] %v927
  %960 = vst [vmem:[%s3 + $0x18] sm:$0xf] %v928
  %961 = vst [vmem:[%s3 + $0x1c] sm:$0xf] %v929
  %962 = vst [vmem:[%s3 + $0x20] sm:$0xf] %v930
  %963 = vst [vmem:[%s3 + $0x24] sm:$0xf] %v931
  %964 = vst [vmem:[%s3 + $0x28] sm:$0xf] %v932
  %965 = vst [vmem:[%s3 + $0x2c] sm:$0xf] %v933
  %966 = vst [vmem:[%s3 + $0x30] sm:$0xf] %v934
  %967 = vst [vmem:[%s3 + $0x34] sm:$0xf] %v935
  %968 = vst [vmem:[%s3 + $0x38] sm:$0xf] %v936
  %969 = vst [vmem:[%s3 + $0x3c] sm:$0xf] %v937
  // Predicated region
  $region14: #{net2_forward.12} parent=0 // pred_check
    _
  $region15: #{net2_forward.12} parent=0 // pred_check_branch
    %971 = sbr.rel (0) target = $region17
  $region16: #{net2_forward.12} parent=0 // pred_region
    _
  $region17: #{net2_forward.12} parent=0 // pred_fallthru
    _
  // Predicated region
  $region18: #{net2_forward.12} parent=0 // pred_check
    _
  $region19: #{net2_forward.12} parent=0 // pred_check_branch
    %973 = sbr.rel (0) target = $region21
  $region20: #{net2_forward.12} parent=0 // pred_region
    _
  $region21: #{net2_forward.12} parent=0 // pred_fallthru
    _

// kernel: net2_forward.13
$region0: #{net2_forward.13}
  #allocation0 [shape = 'u32[]', space=smem, size = 0x4, offset = 0x4, fixed_abs, tag = 'smem constant byte address 0x4 - core index']
  #allocation1 [shape = 'u32[144,128]{1,0:T(1,128)}', space=vmem, size = 0x12000, scoped, tag = 'internal scratch']
  %s0 = inlined_call_operand.vmem [shape: bf16[16,2048], index: 0, kind: input, shape index: {}]
  %s1 = inlined_call_operand.vmem [shape: bf16[16,512], index: 1, kind: output, shape index: {}]
  %s2 = sld [smem:[#allocation0]]
  $region14: #{net2_forward.13} parent=0
    _
  %s4 = ssub.s32 1, %s2
  %s5 = scalar_select 0, %s4, %s2
  // Predicated region
  $region2: #{net2_forward.13} parent=0 // pred_check
    _
  $region3: #{net2_forward.13} parent=0 // pred_check_branch
    %7 = sbr.rel (0) target = $region5
  $region4: #{net2_forward.13} parent=0 // pred_region
    _
  $region5: #{net2_forward.13} parent=0 // pred_fallthru
    _
  %v8 = vld [vmem:[%s0] sm:$0xff]
  %v9 = vld [vmem:[%s0 + $0x8] sm:$0xff]
  %v10 = vld [vmem:[%s0 + $0x10] sm:$0xff]
  %v11 = vld [vmem:[%s0 + $0x18] sm:$0xff]
  %v12 = vld [vmem:[%s0 + $0x20] sm:$0xff]
  %v13 = vld [vmem:[%s0 + $0x28] sm:$0xff]
  %v14 = vld [vmem:[%s0 + $0x30] sm:$0xff]
  %v15 = vld [vmem:[%s0 + $0x38] sm:$0xff]
  %v16 = vld [vmem:[%s0 + $0x40] sm:$0xff]
  %v17 = vld [vmem:[%s0 + $0x48] sm:$0xff]
  %v18 = vld [vmem:[%s0 + $0x50] sm:$0xff]
  %v19 = vld [vmem:[%s0 + $0x58] sm:$0xff]
  %v20 = vld [vmem:[%s0 + $0x60] sm:$0xff]
  %v21 = vld [vmem:[%s0 + $0x68] sm:$0xff]
  %v22 = vld [vmem:[%s0 + $0x70] sm:$0xff]
  %v23 = vld [vmem:[%s0 + $0x78] sm:$0xff]
  %v24 = vmax.bf16 %v8, %v12
  %v25 = vmax.bf16 %v9, %v13
  %v26 = vmax.bf16 %v10, %v14
  %v27 = vmax.bf16 %v11, %v15
  %v28 = vmax.bf16 %v16, %v20
  %v29 = vmax.bf16 %v17, %v21
  %v30 = vmax.bf16 %v18, %v22
  %v31 = vmax.bf16 %v19, %v23
  %v34 = vrot.slane %v24, 4
  %v35 = vrot.slane %v28, 4
  %v38 = vmax.bf16 %v24, %v34
  %v39 = vmax.bf16 %v28, %v35
  %v42 = vrot.slane %v25, 4
  %v43 = vrot.slane %v29, 4
  %v46 = vmax.bf16 %v25, %v42
  %v47 = vmax.bf16 %v29, %v43
  %v50 = vrot.slane %v26, 4
  %v51 = vrot.slane %v30, 4
  %v54 = vmax.bf16 %v26, %v50
  %v55 = vmax.bf16 %v30, %v51
  %v58 = vrot.slane %v27, 4
  %v59 = vrot.slane %v31, 4
  %v62 = vmax.bf16 %v27, %v58
  %v63 = vmax.bf16 %v31, %v59
  %v66 = vunpack.c.l.b16 %v38
  %v67 = vunpack.c.l.b16 %v39
  %v70 = vunpack.c.l.b16 %v46
  %v71 = vunpack.c.l.b16 %v47
  %v74 = vunpack.c.l.b16 %v54
  %v75 = vunpack.c.l.b16 %v55
  %v78 = vunpack.c.l.b16 %v62
  %v79 = vunpack.c.l.b16 %v63
  %v80 = vpack.c.b16 %v70, %v66
  %v81 = vpack.c.b16 %v78, %v74
  %v82 = vpack.c.b16 %v71, %v67
  %v83 = vpack.c.b16 %v79, %v75
  %88 = vst [vmem:[%s1] sm:$0xff] %v80
  %89 = vst [vmem:[%s1 + $0x8] sm:$0xff] %v81
  %90 = vst [vmem:[%s1 + $0x10] sm:$0xff] %v82
  %91 = vst [vmem:[%s1 + $0x18] sm:$0xff] %v83
  // Predicated region
  $region6: #{net2_forward.13} parent=0 // pred_check
    _
  $region7: #{net2_forward.13} parent=0 // pred_check_branch
    %93 = sbr.rel (0) target = $region9
  $region8: #{net2_forward.13} parent=0 // pred_region
    _
  $region9: #{net2_forward.13} parent=0 // pred_fallthru
    _
  // Predicated region
  $region10: #{net2_forward.13} parent=0 // pred_check
    _
  $region11: #{net2_forward.13} parent=0 // pred_check_branch
    %95 = sbr.rel (0) target = $region13
  $region12: #{net2_forward.13} parent=0 // pred_region
    _
  $region13: #{net2_forward.13} parent=0 // pred_fallthru
    _

// kernel: net2_forward.15
$region0: #{net2_forward.15}
  #allocation0 [shape = 'u32[]', space=smem, size = 0x4, offset = 0x4, fixed_abs, tag = 'smem constant byte address 0x4 - core index']
  #allocation1 [shape = 'u32[144,128]{1,0:T(1,128)}', space=vmem, size = 0x12000, scoped, tag = 'internal scratch']
  %s0 = inlined_call_operand.vmem [shape: bf16[16,128], index: 0, kind: input, shape index: {}]
  %s1 = inlined_call_operand.vmem [shape: bf16[128,10], index: 1, kind: input, shape index: {}]
  %s2 = inlined_call_operand.vmem [shape: f32[1,10], index: 2, kind: input, shape index: {}]
  %s3 = inlined_call_operand.vmem [shape: f32[16,10], index: 3, kind: output, shape index: {}]
  %s4 = sld [smem:[#allocation0]]
  $region22: #{net2_forward.15} parent=0
    _
  %s6 = ssub.s32 1, %s4
  %s7 = scalar_select 0, %s6, %s4
  // Predicated region
  $region2: #{net2_forward.15} parent=0 // pred_check
    _
  $region3: #{net2_forward.15} parent=0 // pred_check_branch
    %9 = sbr.rel (0) target = $region5
  $region4: #{net2_forward.15} parent=0 // pred_region
    _
  $region5: #{net2_forward.15} parent=0 // pred_fallthru
    _
  // Predicated region
  $region6: #{net2_forward.15} parent=0 // pred_check
    _
  $region7: #{net2_forward.15} parent=0 // pred_check_branch
    %11 = sbr.rel (0) target = $region9
  $region8: #{net2_forward.15} parent=0 // pred_region
    _
  $region9: #{net2_forward.15} parent=0 // pred_fallthru
    _
  // Predicated region
  $region10: #{net2_forward.15} parent=0 // pred_check
    _
  $region11: #{net2_forward.15} parent=0 // pred_check_branch
    %13 = sbr.rel (0) target = $region13
  $region12: #{net2_forward.15} parent=0 // pred_region
    _
  $region13: #{net2_forward.15} parent=0 // pred_fallthru
    _
  %v15 = vld [vmem:[%s0] sm:$0xf]
  %v16 = vld [vmem:[%s0 + $0x4] sm:$0xf]
  %v17 = vld [vmem:[%s1] sm:$0xf]
  %v18 = vld [vmem:[%s1 + $0x4] sm:$0xf]
  %v19 = vld [vmem:[%s1 + $0x8] sm:$0xf]
  %v20 = vld [vmem:[%s1 + $0xc] sm:$0xf]
  %v21 = vld [vmem:[%s1 + $0x10] sm:$0xf]
  %v22 = vld [vmem:[%s1 + $0x14] sm:$0xf]
  %v23 = vld [vmem:[%s1 + $0x18] sm:$0xf]
  %v24 = vld [vmem:[%s1 + $0x1c] sm:$0xf]
  %v25 = vld [vmem:[%s1 + $0x20] sm:$0xf]
  %v26 = vld [vmem:[%s1 + $0x24] sm:$0xf]
  %v27 = vld [vmem:[%s1 + $0x28] sm:$0xf]
  %v28 = vld [vmem:[%s1 + $0x2c] sm:$0xf]
  %v29 = vld [vmem:[%s1 + $0x30] sm:$0xf]
  %v30 = vld [vmem:[%s1 + $0x34] sm:$0xf]
  %v31 = vld [vmem:[%s1 + $0x38] sm:$0xf]
  %v32 = vld [vmem:[%s1 + $0x3c] sm:$0xf]
  %v33 = vld [vmem:[%s2] sm:$0x1]
  %v35 = vlaneseq
  %v36 = vshrl.u32 %v35, 7
  %v37 = vsub.s32 0, %v36
  %v38 = vrot.slane %v33, %v37
  %v42 = vunpack.c.l.b16 %v15
  %v43 = vunpack.c.l.b16 %v16
  %v44 = vpack.c.b16 %v43, %v42
  %v62 = vunpack.c.l.b16 %v17
  %v63 = vunpack.c.l.b16 %v18
  %v64 = vunpack.c.l.b16 %v19
  %v65 = vunpack.c.l.b16 %v20
  %v66 = vunpack.c.l.b16 %v21
  %v67 = vunpack.c.l.b16 %v22
  %v68 = vunpack.c.l.b16 %v23
  %v69 = vunpack.c.l.b16 %v24
  %v70 = vunpack.c.l.b16 %v25
  %v71 = vunpack.c.l.b16 %v26
  %v72 = vunpack.c.l.b16 %v27
  %v73 = vunpack.c.l.b16 %v28
  %v74 = vunpack.c.l.b16 %v29
  %v75 = vunpack.c.l.b16 %v30
  %v76 = vunpack.c.l.b16 %v31
  %v77 = vunpack.c.l.b16 %v32
  %v78 = vpack.c.b16 %v63, %v62
  %v79 = vpack.c.b16 %v65, %v64
  %v80 = vpack.c.b16 %v67, %v66
  %v81 = vpack.c.b16 %v69, %v68
  %v82 = vpack.c.b16 %v71, %v70
  %v83 = vpack.c.b16 %v73, %v72
  %v84 = vpack.c.b16 %v75, %v74
  %v85 = vpack.c.b16 %v77, %v76
  %94 = vmatprep.subr.bf16.mxu0 0
  %95 = vmatpush1.bf16.msra.mxu0 %v78
  %96 = vmatprep.subr.bf16.mxu0 0
  %97 = vmatpush1.bf16.msra.mxu0 %v79
  %98 = vmatprep.subr.bf16.mxu0 0
  %99 = vmatpush1.bf16.msra.mxu0 %v80
  %100 = vmatprep.subr.bf16.mxu0 0
  %101 = vmatpush1.bf16.msra.mxu0 %v81
  %102 = vmatprep.subr.bf16.mxu0 0
  %103 = vmatpush1.bf16.msra.mxu0 %v82
  %104 = vmatprep.subr.bf16.mxu0 0
  %105 = vmatpush1.bf16.msra.mxu0 %v83
  %106 = vmatprep.subr.bf16.mxu0 0
  %107 = vmatpush1.bf16.msra.mxu0 %v84
  %108 = vmatprep.subr.bf16.mxu0 0
  %109 = vmatpush1.bf16.msra.mxu0 %v85
  %110 = vmatprep.subr.bf16.mxu0 0
  %111 = vmatpush1.bf16.msra.mxu0 0
  %112 = vmatprep.subr.bf16.mxu0 0
  %113 = vmatpush1.bf16.msra.mxu0 0
  %114 = vmatprep.subr.bf16.mxu0 0
  %115 = vmatpush1.bf16.msra.mxu0 0
  %116 = vmatprep.subr.bf16.mxu0 0
  %117 = vmatpush1.bf16.msra.mxu0 0
  %118 = vmatprep.subr.bf16.mxu0 0
  %119 = vmatpush1.bf16.msra.mxu0 0
  %120 = vmatprep.subr.bf16.mxu0 0
  %121 = vmatpush1.bf16.msra.mxu0 0
  %122 = vmatprep.subr.bf16.mxu0 0
  %123 = vmatpush1.bf16.msra.mxu0 0
  %124 = vmatprep.subr.bf16.mxu0 0
  %125 = vmatpush1.bf16.msra.mxu0 0
  %126 = vmatprep.mubr.bf16.mxu0 0
  %127 = vmatmul.mubr.bf16.gmra.mrb[0].mxu0 %v44
  %v128 = vpop.f32.mrb[0].mxu0
  %v129 = vadd.f32 %v38, %v128
  %v130 = vpop.f32.mrb[0].mxu0
  %v131 = vpop.f32.mrb[0].mxu0
  %v132 = vadd.f32 %v38, %v131
  %v133 = vpop.f32.mrb[0].mxu0
  %134 = vdwg.mxu0
  %vm135 = vcmask 80896
  %v136 = vsel %vm135, %v129, -inf
  %137 = vmax.xlane.f32.xlu0 %v136
  %v138 = vpop.xlane.xlu0 %137
  %v139 = vsel %vm135, %v132, -inf
  %140 = vmax.xlane.f32.xlu0 %v139
  %v141 = vpop.xlane.xlu0 %140
  %v142 = vsub.f32 %v129, %v138
  %v143 = vsub.f32 %v132, %v141
  %v144 = vmul.f32 %v142, 1.442695
  %v145 = vpow.pop %v144
  %v146 = vmul.f32 %v143, 1.442695
  %v147 = vpow.pop %v146
  %v148 = vsel %vm135, %v145, 0.0
  %149 = vadd.xlane.f32.xlu0 %v148
  %v150 = vpop.xlane.xlu0 %149
  %v151 = vsel %vm135, %v147, 0.0
  %152 = vadd.xlane.f32.xlu0 %v151
  %v153 = vpop.xlane.xlu0 %152
  %v154 = vlog2.pop %v150
  %v155 = vmul.f32 %v154, 0.6931472
  %v156 = vlog2.pop %v153
  %v157 = vmul.f32 %v156, 0.6931472
  %v158 = vsub.f32 %v142, %v155
  %v159 = vsub.f32 %v143, %v157
  %160 = vst.msk [vmem:[%s3] sm:$0xff] %vm135, %v158
  %161 = vst.msk [vmem:[%s3 + $0x8] sm:$0xff] %vm135, %v159
  // Predicated region
  $region14: #{net2_forward.15} parent=0 // pred_check
    _
  $region15: #{net2_forward.15} parent=0 // pred_check_branch
    %163 = sbr.rel (0) target = $region17
  $region16: #{net2_forward.15} parent=0 // pred_region
    _
  $region17: #{net2_forward.15} parent=0 // pred_fallthru
    _
  // Predicated region
  $region18: #{net2_forward.15} parent=0 // pred_check
    _
  $region19: #{net2_forward.15} parent=0 // pred_check_branch
    %165 = sbr.rel (0) target = $region21
  $region20: #{net2_forward.15} parent=0 // pred_region
    _
  $region21: #{net2_forward.15} parent=0 // pred_fallthru
    _

// kernel: net2_forward.14
$region0: #{net2_forward.14}
  #allocation0 [shape = 'u32[]', space=smem, size = 0x4, offset = 0x4, fixed_abs, tag = 'smem constant byte address 0x4 - core index']
  #allocation1 [shape = 'u32[144,128]{1,0:T(1,128)}', space=vmem, size = 0x12000, scoped, tag = 'internal scratch']
  %s0 = inlined_call_operand.vmem [shape: bf16[16,2048], index: 0, kind: input, shape index: {}]
  %s1 = inlined_call_operand.vmem [shape: bf16[2048,128], index: 1, kind: input, shape index: {}]
  %s2 = inlined_call_operand.vmem [shape: f32[1,128], index: 2, kind: input, shape index: {}]
  %s3 = inlined_call_operand.vmem [shape: bf16[16,128], index: 3, kind: output, shape index: {}]
  %s4 = sld [smem:[#allocation0]]
  $region22: #{net2_forward.14} parent=0
    _
  %s6 = ssub.s32 1, %s4
  %s7 = scalar_select 0, %s6, %s4
  // Predicated region
  $region2: #{net2_forward.14} parent=0 // pred_check
    _
  $region3: #{net2_forward.14} parent=0 // pred_check_branch
    %9 = sbr.rel (0) target = $region5
  $region4: #{net2_forward.14} parent=0 // pred_region
    _
  $region5: #{net2_forward.14} parent=0 // pred_fallthru
    _
  // Predicated region
  $region6: #{net2_forward.14} parent=0 // pred_check
    _
  $region7: #{net2_forward.14} parent=0 // pred_check_branch
    %11 = sbr.rel (0) target = $region9
  $region8: #{net2_forward.14} parent=0 // pred_region
    _
  $region9: #{net2_forward.14} parent=0 // pred_fallthru
    _
  // Predicated region
  $region10: #{net2_forward.14} parent=0 // pred_check
    _
  $region11: #{net2_forward.14} parent=0 // pred_check_branch
    %13 = sbr.rel (0) target = $region13
  $region12: #{net2_forward.14} parent=0 // pred_region
    _
  $region13: #{net2_forward.14} parent=0 // pred_fallthru
    _
  %v15 = vld [vmem:[%s0] sm:$0xff]
  %v16 = vld [vmem:[%s0 + $0x8] sm:$0xff]
  %v17 = vld [vmem:[%s0 + $0x10] sm:$0xff]
  %v18 = vld [vmem:[%s0 + $0x18] sm:$0xff]
  %v19 = vld [vmem:[%s0 + $0x20] sm:$0xff]
  %v20 = vld [vmem:[%s0 + $0x28] sm:$0xff]
  %v21 = vld [vmem:[%s0 + $0x30] sm:$0xff]
  %v22 = vld [vmem:[%s0 + $0x38] sm:$0xff]
  %v23 = vld [vmem:[%s0 + $0x40] sm:$0xff]
  %v24 = vld [vmem:[%s0 + $0x48] sm:$0xff]
  %v25 = vld [vmem:[%s0 + $0x50] sm:$0xff]
  %v26 = vld [vmem:[%s0 + $0x58] sm:$0xff]
  %v27 = vld [vmem:[%s0 + $0x60] sm:$0xff]
  %v28 = vld [vmem:[%s0 + $0x68] sm:$0xff]
  %v29 = vld [vmem:[%s0 + $0x70] sm:$0xff]
  %v30 = vld [vmem:[%s0 + $0x78] sm:$0xff]
  %v31 = vld [vmem:[%s1] sm:$0xf]
  %v32 = vld [vmem:[%s1 + $0x4] sm:$0xf]
  %v33 = vld [vmem:[%s1 + $0x8] sm:$0xf]
  %v34 = vld [vmem:[%s1 + $0xc] sm:$0xf]
  %v35 = vld [vmem:[%s1 + $0x10] sm:$0xf]
  %v36 = vld [vmem:[%s1 + $0x14] sm:$0xf]
  %v37 = vld [vmem:[%s1 + $0x18] sm:$0xf]
  %v38 = vld [vmem:[%s1 + $0x1c] sm:$0xf]
  %v39 = vld [vmem:[%s1 + $0x20] sm:$0xf]
  %v40 = vld [vmem:[%s1 + $0x24] sm:$0xf]
  %v41 = vld [vmem:[%s1 + $0x28] sm:$0xf]
  %v42 = vld [vmem:[%s1 + $0x2c] sm:$0xf]
  %v43 = vld [vmem:[%s1 + $0x30] sm:$0xf]
  %v44 = vld [vmem:[%s1 + $0x34] sm:$0xf]
  %v45 = vld [vmem:[%s1 + $0x38] sm:$0xf]
  %v46 = vld [vmem:[%s1 + $0x3c] sm:$0xf]
  %v47 = vld [vmem:[%s1 + $0x40] sm:$0xf]
  %v48 = vld [vmem:[%s1 + $0x44] sm:$0xf]
  %v49 = vld [vmem:[%s1 + $0x48] sm:$0xf]
  %v50 = vld [vmem:[%s1 + $0x4c] sm:$0xf]
  %v51 = vld [vmem:[%s1 + $0x50] sm:$0xf]
  %v52 = vld [vmem:[%s1 + $0x54] sm:$0xf]
  %v53 = vld [vmem:[%s1 + $0x58] sm:$0xf]
  %v54 = vld [vmem:[%s1 + $0x5c] sm:$0xf]
  %v55 = vld [vmem:[%s1 + $0x60] sm:$0xf]
  %v56 = vld [vmem:[%s1 + $0x64] sm:$0xf]
  %v57 = vld [vmem:[%s1 + $0x68] sm:$0xf]
  %v58 = vld [vmem:[%s1 + $0x6c] sm:$0xf]
  %v59 = vld [vmem:[%s1 + $0x70] sm:$0xf]
  %v60 = vld [vmem:[%s1 + $0x74] sm:$0xf]
  %v61 = vld [vmem:[%s1 + $0x78] sm:$0xf]
  %v62 = vld [vmem:[%s1 + $0x7c] sm:$0xf]
  %v63 = vld [vmem:[%s1 + $0x80] sm:$0xf]
  %v64 = vld [vmem:[%s1 + $0x84] sm:$0xf]
  %v65 = vld [vmem:[%s1 + $0x88] sm:$0xf]
  %v66 = vld [vmem:[%s1 + $0x8c] sm:$0xf]
  %v67 = vld [vmem:[%s1 + $0x90] sm:$0xf]
  %v68 = vld [vmem:[%s1 + $0x94] sm:$0xf]
  %v69 = vld [vmem:[%s1 + $0x98] sm:$0xf]
  %v70 = vld [vmem:[%s1 + $0x9c] sm:$0xf]
  %v71 = vld [vmem:[%s1 + $0xa0] sm:$0xf]
  %v72 = vld [vmem:[%s1 + $0xa4] sm:$0xf]
  %v73 = vld [vmem:[%s1 + $0xa8] sm:$0xf]
  %v74 = vld [vmem:[%s1 + $0xac] sm:$0xf]
  %v75 = vld [vmem:[%s1 + $0xb0] sm:$0xf]
  %v76 = vld [vmem:[%s1 + $0xb4] sm:$0xf]
  %v77 = vld [vmem:[%s1 + $0xb8] sm:$0xf]
  %v78 = vld [vmem:[%s1 + $0xbc] sm:$0xf]
  %v79 = vld [vmem:[%s1 + $0xc0] sm:$0xf]
  %v80 = vld [vmem:[%s1 + $0xc4] sm:$0xf]
  %v81 = vld [vmem:[%s1 + $0xc8] sm:$0xf]
  %v82 = vld [vmem:[%s1 + $0xcc] sm:$0xf]
  %v83 = vld [vmem:[%s1 + $0xd0] sm:$0xf]
  %v84 = vld [vmem:[%s1 + $0xd4] sm:$0xf]
  %v85 = vld [vmem:[%s1 + $0xd8] sm:$0xf]
  %v86 = vld [vmem:[%s1 + $0xdc] sm:$0xf]
  %v87 = vld [vmem:[%s1 + $0xe0] sm:$0xf]
  %v88 = vld [vmem:[%s1 + $0xe4] sm:$0xf]
  %v89 = vld [vmem:[%s1 + $0xe8] sm:$0xf]
  %v90 = vld [vmem:[%s1 + $0xec] sm:$0xf]
  %v91 = vld [vmem:[%s1 + $0xf0] sm:$0xf]
  %v92 = vld [vmem:[%s1 + $0xf4] sm:$0xf]
  %v93 = vld [vmem:[%s1 + $0xf8] sm:$0xf]
  %v94 = vld [vmem:[%s1 + $0xfc] sm:$0xf]
  %v95 = vld [vmem:[%s1 + $0x100] sm:$0xf]
  %v96 = vld [vmem:[%s1 + $0x104] sm:$0xf]
  %v97 = vld [vmem:[%s1 + $0x108] sm:$0xf]
  %v98 = vld [vmem:[%s1 + $0x10c] sm:$0xf]
  %v99 = vld [vmem:[%s1 + $0x110] sm:$0xf]
  %v100 = vld [vmem:[%s1 + $0x114] sm:$0xf]
  %v101 = vld [vmem:[%s1 + $0x118] sm:$0xf]
  %v102 = vld [vmem:[%s1 + $0x11c] sm:$0xf]
  %v103 = vld [vmem:[%s1 + $0x120] sm:$0xf]
  %v104 = vld [vmem:[%s1 + $0x124] sm:$0xf]
  %v105 = vld [vmem:[%s1 + $0x128] sm:$0xf]
  %v106 = vld [vmem:[%s1 + $0x12c] sm:$0xf]
  %v107 = vld [vmem:[%s1 + $0x130] sm:$0xf]
  %v108 = vld [vmem:[%s1 + $0x134] sm:$0xf]
  %v109 = vld [vmem:[%s1 + $0x138] sm:$0xf]
  %v110 = vld [vmem:[%s1 + $0x13c] sm:$0xf]
  %v111 = vld [vmem:[%s1 + $0x140] sm:$0xf]
  %v112 = vld [vmem:[%s1 + $0x144] sm:$0xf]
  %v113 = vld [vmem:[%s1 + $0x148] sm:$0xf]
  %v114 = vld [vmem:[%s1 + $0x14c] sm:$0xf]
  %v115 = vld [vmem:[%s1 + $0x150] sm:$0xf]
  %v116 = vld [vmem:[%s1 + $0x154] sm:$0xf]
  %v117 = vld [vmem:[%s1 + $0x158] sm:$0xf]
  %v118 = vld [vmem:[%s1 + $0x15c] sm:$0xf]
  %v119 = vld [vmem:[%s1 + $0x160] sm:$0xf]
  %v120 = vld [vmem:[%s1 + $0x164] sm:$0xf]
  %v121 = vld [vmem:[%s1 + $0x168] sm:$0xf]
  %v122 = vld [vmem:[%s1 + $0x16c] sm:$0xf]
  %v123 = vld [vmem:[%s1 + $0x170] sm:$0xf]
  %v124 = vld [vmem:[%s1 + $0x174] sm:$0xf]
  %v125 = vld [vmem:[%s1 + $0x178] sm:$0xf]
  %v126 = vld [vmem:[%s1 + $0x17c] sm:$0xf]
  %v127 = vld [vmem:[%s1 + $0x180] sm:$0xf]
  %v128 = vld [vmem:[%s1 + $0x184] sm:$0xf]
  %v129 = vld [vmem:[%s1 + $0x188] sm:$0xf]
  %v130 = vld [vmem:[%s1 + $0x18c] sm:$0xf]
  %v131 = vld [vmem:[%s1 + $0x190] sm:$0xf]
  %v132 = vld [vmem:[%s1 + $0x194] sm:$0xf]
  %v133 = vld [vmem:[%s1 + $0x198] sm:$0xf]
  %v134 = vld [vmem:[%s1 + $0x19c] sm:$0xf]
  %v135 = vld [vmem:[%s1 + $0x1a0] sm:$0xf]
  %v136 = vld [vmem:[%s1 + $0x1a4] sm:$0xf]
  %v137 = vld [vmem:[%s1 + $0x1a8] sm:$0xf]
  %v138 = vld [vmem:[%s1 + $0x1ac] sm:$0xf]
  %v139 = vld [vmem:[%s1 + $0x1b0] sm:$0xf]
  %v140 = vld [vmem:[%s1 + $0x1b4] sm:$0xf]
  %v141 = vld [vmem:[%s1 + $0x1b8] sm:$0xf]
  %v142 = vld [vmem:[%s1 + $0x1bc] sm:$0xf]
  %v143 = vld [vmem:[%s1 + $0x1c0] sm:$0xf]
  %v144 = vld [vmem:[%s1 + $0x1c4] sm:$0xf]
  %v145 = vld [vmem:[%s1 + $0x1c8] sm:$0xf]
  %v146 = vld [vmem:[%s1 + $0x1cc] sm:$0xf]
  %v147 = vld [vmem:[%s1 + $0x1d0] sm:$0xf]
  %v148 = vld [vmem:[%s1 + $0x1d4] sm:$0xf]
  %v149 = vld [vmem:[%s1 + $0x1d8] sm:$0xf]
  %v150 = vld [vmem:[%s1 + $0x1dc] sm:$0xf]
  %v151 = vld [vmem:[%s1 + $0x1e0] sm:$0xf]
  %v152 = vld [vmem:[%s1 + $0x1e4] sm:$0xf]
  %v153 = vld [vmem:[%s1 + $0x1e8] sm:$0xf]
  %v154 = vld [vmem:[%s1 + $0x1ec] sm:$0xf]
  %v155 = vld [vmem:[%s1 + $0x1f0] sm:$0xf]
  %v156 = vld [vmem:[%s1 + $0x1f4] sm:$0xf]
  %v157 = vld [vmem:[%s1 + $0x1f8] sm:$0xf]
  %v158 = vld [vmem:[%s1 + $0x1fc] sm:$0xf]
  %v159 = vld [vmem:[%s1 + $0x200] sm:$0xf]
  %v160 = vld [vmem:[%s1 + $0x204] sm:$0xf]
  %v161 = vld [vmem:[%s1 + $0x208] sm:$0xf]
  %v162 = vld [vmem:[%s1 + $0x20c] sm:$0xf]
  %v163 = vld [vmem:[%s1 + $0x210] sm:$0xf]
  %v164 = vld [vmem:[%s1 + $0x214] sm:$0xf]
  %v165 = vld [vmem:[%s1 + $0x218] sm:$0xf]
  %v166 = vld [vmem:[%s1 + $0x21c] sm:$0xf]
  %v167 = vld [vmem:[%s1 + $0x220] sm:$0xf]
  %v168 = vld [vmem:[%s1 + $0x224] sm:$0xf]
  %v169 = vld [vmem:[%s1 + $0x228] sm:$0xf]
  %v170 = vld [vmem:[%s1 + $0x22c] sm:$0xf]
  %v171 = vld [vmem:[%s1 + $0x230] sm:$0xf]
  %v172 = vld [vmem:[%s1 + $0x234] sm:$0xf]
  %v173 = vld [vmem:[%s1 + $0x238] sm:$0xf]
  %v174 = vld [vmem:[%s1 + $0x23c] sm:$0xf]
  %v175 = vld [vmem:[%s1 + $0x240] sm:$0xf]
  %v176 = vld [vmem:[%s1 + $0x244] sm:$0xf]
  %v177 = vld [vmem:[%s1 + $0x248] sm:$0xf]
  %v178 = vld [vmem:[%s1 + $0x24c] sm:$0xf]
  %v179 = vld [vmem:[%s1 + $0x250] sm:$0xf]
  %v180 = vld [vmem:[%s1 + $0x254] sm:$0xf]
  %v181 = vld [vmem:[%s1 + $0x258] sm:$0xf]
  %v182 = vld [vmem:[%s1 + $0x25c] sm:$0xf]
  %v183 = vld [vmem:[%s1 + $0x260] sm:$0xf]
  %v184 = vld [vmem:[%s1 + $0x264] sm:$0xf]
  %v185 = vld [vmem:[%s1 + $0x268] sm:$0xf]
  %v186 = vld [vmem:[%s1 + $0x26c] sm:$0xf]
  %v187 = vld [vmem:[%s1 + $0x270] sm:$0xf]
  %v188 = vld [vmem:[%s1 + $0x274] sm:$0xf]
  %v189 = vld [vmem:[%s1 + $0x278] sm:$0xf]
  %v190 = vld [vmem:[%s1 + $0x27c] sm:$0xf]
  %v191 = vld [vmem:[%s1 + $0x280] sm:$0xf]
  %v192 = vld [vmem:[%s1 + $0x284] sm:$0xf]
  %v193 = vld [vmem:[%s1 + $0x288] sm:$0xf]
  %v194 = vld [vmem:[%s1 + $0x28c] sm:$0xf]
  %v195 = vld [vmem:[%s1 + $0x290] sm:$0xf]
  %v196 = vld [vmem:[%s1 + $0x294] sm:$0xf]
  %v197 = vld [vmem:[%s1 + $0x298] sm:$0xf]
  %v198 = vld [vmem:[%s1 + $0x29c] sm:$0xf]
  %v199 = vld [vmem:[%s1 + $0x2a0] sm:$0xf]
  %v200 = vld [vmem:[%s1 + $0x2a4] sm:$0xf]
  %v201 = vld [vmem:[%s1 + $0x2a8] sm:$0xf]
  %v202 = vld [vmem:[%s1 + $0x2ac] sm:$0xf]
  %v203 = vld [vmem:[%s1 + $0x2b0] sm:$0xf]
  %v204 = vld [vmem:[%s1 + $0x2b4] sm:$0xf]
  %v205 = vld [vmem:[%s1 + $0x2b8] sm:$0xf]
  %v206 = vld [vmem:[%s1 + $0x2bc] sm:$0xf]
  %v207 = vld [vmem:[%s1 + $0x2c0] sm:$0xf]
  %v208 = vld [vmem:[%s1 + $0x2c4] sm:$0xf]
  %v209 = vld [vmem:[%s1 + $0x2c8] sm:$0xf]
  %v210 = vld [vmem:[%s1 + $0x2cc] sm:$0xf]
  %v211 = vld [vmem:[%s1 + $0x2d0] sm:$0xf]
  %v212 = vld [vmem:[%s1 + $0x2d4] sm:$0xf]
  %v213 = vld [vmem:[%s1 + $0x2d8] sm:$0xf]
  %v214 = vld [vmem:[%s1 + $0x2dc] sm:$0xf]
  %v215 = vld [vmem:[%s1 + $0x2e0] sm:$0xf]
  %v216 = vld [vmem:[%s1 + $0x2e4] sm:$0xf]
  %v217 = vld [vmem:[%s1 + $0x2e8] sm:$0xf]
  %v218 = vld [vmem:[%s1 + $0x2ec] sm:$0xf]
  %v219 = vld [vmem:[%s1 + $0x2f0] sm:$0xf]
  %v220 = vld [vmem:[%s1 + $0x2f4] sm:$0xf]
  %v221 = vld [vmem:[%s1 + $0x2f8] sm:$0xf]
  %v222 = vld [vmem:[%s1 + $0x2fc] sm:$0xf]
  %v223 = vld [vmem:[%s1 + $0x300] sm:$0xf]
  %v224 = vld [vmem:[%s1 + $0x304] sm:$0xf]
  %v225 = vld [vmem:[%s1 + $0x308] sm:$0xf]
  %v226 = vld [vmem:[%s1 + $0x30c] sm:$0xf]
  %v227 = vld [vmem:[%s1 + $0x310] sm:$0xf]
  %v228 = vld [vmem:[%s1 + $0x314] sm:$0xf]
  %v229 = vld [vmem:[%s1 + $0x318] sm:$0xf]
  %v230 = vld [vmem:[%s1 + $0x31c] sm:$0xf]
  %v231 = vld [vmem:[%s1 + $0x320] sm:$0xf]
  %v232 = vld [vmem:[%s1 + $0x324] sm:$0xf]
  %v233 = vld [vmem:[%s1 + $0x328] sm:$0xf]
  %v234 = vld [vmem:[%s1 + $0x32c] sm:$0xf]
  %v235 = vld [vmem:[%s1 + $0x330] sm:$0xf]
  %v236 = vld [vmem:[%s1 + $0x334] sm:$0xf]
  %v237 = vld [vmem:[%s1 + $0x338] sm:$0xf]
  %v238 = vld [vmem:[%s1 + $0x33c] sm:$0xf]
  %v239 = vld [vmem:[%s1 + $0x340] sm:$0xf]
  %v240 = vld [vmem:[%s1 + $0x344] sm:$0xf]
  %v241 = vld [vmem:[%s1 + $0x348] sm:$0xf]
  %v242 = vld [vmem:[%s1 + $0x34c] sm:$0xf]
  %v243 = vld [vmem:[%s1 + $0x350] sm:$0xf]
  %v244 = vld [vmem:[%s1 + $0x354] sm:$0xf]
  %v245 = vld [vmem:[%s1 + $0x358] sm:$0xf]
  %v246 = vld [vmem:[%s1 + $0x35c] sm:$0xf]
  %v247 = vld [vmem:[%s1 + $0x360] sm:$0xf]
  %v248 = vld [vmem:[%s1 + $0x364] sm:$0xf]
  %v249 = vld [vmem:[%s1 + $0x368] sm:$0xf]
  %v250 = vld [vmem:[%s1 + $0x36c] sm:$0xf]
  %v251 = vld [vmem:[%s1 + $0x370] sm:$0xf]
  %v252 = vld [vmem:[%s1 + $0x374] sm:$0xf]
  %v253 = vld [vmem:[%s1 + $0x378] sm:$0xf]
  %v254 = vld [vmem:[%s1 + $0x37c] sm:$0xf]
  %v255 = vld [vmem:[%s1 + $0x380] sm:$0xf]
  %v256 = vld [vmem:[%s1 + $0x384] sm:$0xf]
  %v257 = vld [vmem:[%s1 + $0x388] sm:$0xf]
  %v258 = vld [vmem:[%s1 + $0x38c] sm:$0xf]
  %v259 = vld [vmem:[%s1 + $0x390] sm:$0xf]
  %v260 = vld [vmem:[%s1 + $0x394] sm:$0xf]
  %v261 = vld [vmem:[%s1 + $0x398] sm:$0xf]
  %v262 = vld [vmem:[%s1 + $0x39c] sm:$0xf]
  %v263 = vld [vmem:[%s1 + $0x3a0] sm:$0xf]
  %v264 = vld [vmem:[%s1 + $0x3a4] sm:$0xf]
  %v265 = vld [vmem:[%s1 + $0x3a8] sm:$0xf]
  %v266 = vld [vmem:[%s1 + $0x3ac] sm:$0xf]
  %v267 = vld [vmem:[%s1 + $0x3b0] sm:$0xf]
  %v268 = vld [vmem:[%s1 + $0x3b4] sm:$0xf]
  %v269 = vld [vmem:[%s1 + $0x3b8] sm:$0xf]
  %v270 = vld [vmem:[%s1 + $0x3bc] sm:$0xf]
  %v271 = vld [vmem:[%s1 + $0x3c0] sm:$0xf]
  %v272 = vld [vmem:[%s1 + $0x3c4] sm:$0xf]
  %v273 = vld [vmem:[%s1 + $0x3c8] sm:$0xf]
  %v274 = vld [vmem:[%s1 + $0x3cc] sm:$0xf]
  %v275 = vld [vmem:[%s1 + $0x3d0] sm:$0xf]
  %v276 = vld [vmem:[%s1 + $0x3d4] sm:$0xf]
  %v277 = vld [vmem:[%s1 + $0x3d8] sm:$0xf]
  %v278 = vld [vmem:[%s1 + $0x3dc] sm:$0xf]
  %v279 = vld [vmem:[%s1 + $0x3e0] sm:$0xf]
  %v280 = vld [vmem:[%s1 + $0x3e4] sm:$0xf]
  %v281 = vld [vmem:[%s1 + $0x3e8] sm:$0xf]
  %v282 = vld [vmem:[%s1 + $0x3ec] sm:$0xf]
  %v283 = vld [vmem:[%s1 + $0x3f0] sm:$0xf]
  %v284 = vld [vmem:[%s1 + $0x3f4] sm:$0xf]
  %v285 = vld [vmem:[%s1 + $0x3f8] sm:$0xf]
  %v286 = vld [vmem:[%s1 + $0x3fc] sm:$0xf]
  %v287 = vld [vmem:[%s2] sm:$0x1]
  %v289 = vlaneseq
  %v290 = vshrl.u32 %v289, 7
  %v291 = vsub.s32 0, %v290
  %v292 = vrot.slane %v287, %v291
  %v310 = vunpack.c.l.b16 %v15
  %v311 = vunpack.c.h.b16 %v15
  %v312 = vunpack.c.l.b16 %v16
  %v313 = vunpack.c.h.b16 %v16
  %v314 = vunpack.c.l.b16 %v17
  %v315 = vunpack.c.h.b16 %v17
  %v316 = vunpack.c.l.b16 %v18
  %v317 = vunpack.c.h.b16 %v18
  %v318 = vunpack.c.l.b16 %v19
  %v319 = vunpack.c.h.b16 %v19
  %v320 = vunpack.c.l.b16 %v20
  %v321 = vunpack.c.h.b16 %v20
  %v322 = vunpack.c.l.b16 %v21
  %v323 = vunpack.c.h.b16 %v21
  %v324 = vunpack.c.l.b16 %v22
  %v325 = vunpack.c.h.b16 %v22
  %v326 = vunpack.c.l.b16 %v23
  %v327 = vunpack.c.h.b16 %v23
  %v328 = vunpack.c.l.b16 %v24
  %v329 = vunpack.c.h.b16 %v24
  %v330 = vunpack.c.l.b16 %v25
  %v331 = vunpack.c.h.b16 %v25
  %v332 = vunpack.c.l.b16 %v26
  %v333 = vunpack.c.h.b16 %v26
  %v334 = vunpack.c.l.b16 %v27
  %v335 = vunpack.c.h.b16 %v27
  %v336 = vunpack.c.l.b16 %v28
  %v337 = vunpack.c.h.b16 %v28
  %v338 = vunpack.c.l.b16 %v29
  %v339 = vunpack.c.h.b16 %v29
  %v340 = vunpack.c.l.b16 %v30
  %v341 = vunpack.c.h.b16 %v30
  %v342 = vpack.c.b16 %v326, %v310
  %v343 = vpack.c.b16 %v327, %v311
  %v344 = vpack.c.b16 %v328, %v312
  %v345 = vpack.c.b16 %v329, %v313
  %v346 = vpack.c.b16 %v330, %v314
  %v347 = vpack.c.b16 %v331, %v315
  %v348 = vpack.c.b16 %v332, %v316
  %v349 = vpack.c.b16 %v333, %v317
  %v350 = vpack.c.b16 %v334, %v318
  %v351 = vpack.c.b16 %v335, %v319
  %v352 = vpack.c.b16 %v336, %v320
  %v353 = vpack.c.b16 %v337, %v321
  %v354 = vpack.c.b16 %v338, %v322
  %v355 = vpack.c.b16 %v339, %v323
  %v356 = vpack.c.b16 %v340, %v324
  %v357 = vpack.c.b16 %v341, %v325
  %v630 = vunpack.c.l.b16 %v31
  %v631 = vunpack.c.l.b16 %v32
  %v632 = vunpack.c.l.b16 %v33
  %v633 = vunpack.c.l.b16 %v34
  %v634 = vunpack.c.l.b16 %v35
  %v635 = vunpack.c.l.b16 %v36
  %v636 = vunpack.c.l.b16 %v37
  %v637 = vunpack.c.l.b16 %v38
  %v638 = vunpack.c.l.b16 %v39
  %v639 = vunpack.c.l.b16 %v40
  %v640 = vunpack.c.l.b16 %v41
  %v641 = vunpack.c.l.b16 %v42
  %v642 = vunpack.c.l.b16 %v43
  %v643 = vunpack.c.l.b16 %v44
  %v644 = vunpack.c.l.b16 %v45
  %v645 = vunpack.c.l.b16 %v46
  %v646 = vunpack.c.l.b16 %v47
  %v647 = vunpack.c.l.b16 %v48
  %v648 = vunpack.c.l.b16 %v49
  %v649 = vunpack.c.l.b16 %v50
  %v650 = vunpack.c.l.b16 %v51
  %v651 = vunpack.c.l.b16 %v52
  %v652 = vunpack.c.l.b16 %v53
  %v653 = vunpack.c.l.b16 %v54
  %v654 = vunpack.c.l.b16 %v55
  %v655 = vunpack.c.l.b16 %v56
  %v656 = vunpack.c.l.b16 %v57
  %v657 = vunpack.c.l.b16 %v58
  %v658 = vunpack.c.l.b16 %v59
  %v659 = vunpack.c.l.b16 %v60
  %v660 = vunpack.c.l.b16 %v61
  %v661 = vunpack.c.l.b16 %v62
  %v662 = vunpack.c.l.b16 %v63
  %v663 = vunpack.c.l.b16 %v64
  %v664 = vunpack.c.l.b16 %v65
  %v665 = vunpack.c.l.b16 %v66
  %v666 = vunpack.c.l.b16 %v67
  %v667 = vunpack.c.l.b16 %v68
  %v668 = vunpack.c.l.b16 %v69
  %v669 = vunpack.c.l.b16 %v70
  %v670 = vunpack.c.l.b16 %v71
  %v671 = vunpack.c.l.b16 %v72
  %v672 = vunpack.c.l.b16 %v73
  %v673 = vunpack.c.l.b16 %v74
  %v674 = vunpack.c.l.b16 %v75
  %v675 = vunpack.c.l.b16 %v76
  %v676 = vunpack.c.l.b16 %v77
  %v677 = vunpack.c.l.b16 %v78
  %v678 = vunpack.c.l.b16 %v79
  %v679 = vunpack.c.l.b16 %v80
  %v680 = vunpack.c.l.b16 %v81
  %v681 = vunpack.c.l.b16 %v82
  %v682 = vunpack.c.l.b16 %v83
  %v683 = vunpack.c.l.b16 %v84
  %v684 = vunpack.c.l.b16 %v85
  %v685 = vunpack.c.l.b16 %v86
  %v686 = vunpack.c.l.b16 %v87
  %v687 = vunpack.c.l.b16 %v88
  %v688 = vunpack.c.l.b16 %v89
  %v689 = vunpack.c.l.b16 %v90
  %v690 = vunpack.c.l.b16 %v91
  %v691 = vunpack.c.l.b16 %v92
  %v692 = vunpack.c.l.b16 %v93
  %v693 = vunpack.c.l.b16 %v94
  %v694 = vunpack.c.l.b16 %v95
  %v695 = vunpack.c.l.b16 %v96
  %v696 = vunpack.c.l.b16 %v97
  %v697 = vunpack.c.l.b16 %v98
  %v698 = vunpack.c.l.b16 %v99
  %v699 = vunpack.c.l.b16 %v100
  %v700 = vunpack.c.l.b16 %v101
  %v701 = vunpack.c.l.b16 %v102
  %v702 = vunpack.c.l.b16 %v103
  %v703 = vunpack.c.l.b16 %v104
  %v704 = vunpack.c.l.b16 %v105
  %v705 = vunpack.c.l.b16 %v106
  %v706 = vunpack.c.l.b16 %v107
  %v707 = vunpack.c.l.b16 %v108
  %v708 = vunpack.c.l.b16 %v109
  %v709 = vunpack.c.l.b16 %v110
  %v710 = vunpack.c.l.b16 %v111
  %v711 = vunpack.c.l.b16 %v112
  %v712 = vunpack.c.l.b16 %v113
  %v713 = vunpack.c.l.b16 %v114
  %v714 = vunpack.c.l.b16 %v115
  %v715 = vunpack.c.l.b16 %v116
  %v716 = vunpack.c.l.b16 %v117
  %v717 = vunpack.c.l.b16 %v118
  %v718 = vunpack.c.l.b16 %v119
  %v719 = vunpack.c.l.b16 %v120
  %v720 = vunpack.c.l.b16 %v121
  %v721 = vunpack.c.l.b16 %v122
  %v722 = vunpack.c.l.b16 %v123
  %v723 = vunpack.c.l.b16 %v124
  %v724 = vunpack.c.l.b16 %v125
  %v725 = vunpack.c.l.b16 %v126
  %v726 = vunpack.c.l.b16 %v127
  %v727 = vunpack.c.l.b16 %v128
  %v728 = vunpack.c.l.b16 %v129
  %v729 = vunpack.c.l.b16 %v130
  %v730 = vunpack.c.l.b16 %v131
  %v731 = vunpack.c.l.b16 %v132
  %v732 = vunpack.c.l.b16 %v133
  %v733 = vunpack.c.l.b16 %v134
  %v734 = vunpack.c.l.b16 %v135
  %v735 = vunpack.c.l.b16 %v136
  %v736 = vunpack.c.l.b16 %v137
  %v737 = vunpack.c.l.b16 %v138
  %v738 = vunpack.c.l.b16 %v139
  %v739 = vunpack.c.l.b16 %v140
  %v740 = vunpack.c.l.b16 %v141
  %v741 = vunpack.c.l.b16 %v142
  %v742 = vunpack.c.l.b16 %v143
  %v743 = vunpack.c.l.b16 %v144
  %v744 = vunpack.c.l.b16 %v145
  %v745 = vunpack.c.l.b16 %v146
  %v746 = vunpack.c.l.b16 %v147
  %v747 = vunpack.c.l.b16 %v148
  %v748 = vunpack.c.l.b16 %v149
  %v749 = vunpack.c.l.b16 %v150
  %v750 = vunpack.c.l.b16 %v151
  %v751 = vunpack.c.l.b16 %v152
  %v752 = vunpack.c.l.b16 %v153
  %v753 = vunpack.c.l.b16 %v154
  %v754 = vunpack.c.l.b16 %v155
  %v755 = vunpack.c.l.b16 %v156
  %v756 = vunpack.c.l.b16 %v157
  %v757 = vunpack.c.l.b16 %v158
  %v758 = vunpack.c.l.b16 %v159
  %v759 = vunpack.c.l.b16 %v160
  %v760 = vunpack.c.l.b16 %v161
  %v761 = vunpack.c.l.b16 %v162
  %v762 = vunpack.c.l.b16 %v163
  %v763 = vunpack.c.l.b16 %v164
  %v764 = vunpack.c.l.b16 %v165
  %v765 = vunpack.c.l.b16 %v166
  %v766 = vunpack.c.l.b16 %v167
  %v767 = vunpack.c.l.b16 %v168
  %v768 = vunpack.c.l.b16 %v169
  %v769 = vunpack.c.l.b16 %v170
  %v770 = vunpack.c.l.b16 %v171
  %v771 = vunpack.c.l.b16 %v172
  %v772 = vunpack.c.l.b16 %v173
  %v773 = vunpack.c.l.b16 %v174
  %v774 = vunpack.c.l.b16 %v175
  %v775 = vunpack.c.l.b16 %v176
  %v776 = vunpack.c.l.b16 %v177
  %v777 = vunpack.c.l.b16 %v178
  %v778 = vunpack.c.l.b16 %v179
  %v779 = vunpack.c.l.b16 %v180
  %v780 = vunpack.c.l.b16 %v181
  %v781 = vunpack.c.l.b16 %v182
  %v782 = vunpack.c.l.b16 %v183
  %v783 = vunpack.c.l.b16 %v184
  %v784 = vunpack.c.l.b16 %v185
  %v785 = vunpack.c.l.b16 %v186
  %v786 = vunpack.c.l.b16 %v187
  %v787 = vunpack.c.l.b16 %v188
  %v788 = vunpack.c.l.b16 %v189
  %v789 = vunpack.c.l.b16 %v190
  %v790 = vunpack.c.l.b16 %v191
  %v791 = vunpack.c.l.b16 %v192
  %v792 = vunpack.c.l.b16 %v193
  %v793 = vunpack.c.l.b16 %v194
  %v794 = vunpack.c.l.b16 %v195
  %v795 = vunpack.c.l.b16 %v196
  %v796 = vunpack.c.l.b16 %v197
  %v797 = vunpack.c.l.b16 %v198
  %v798 = vunpack.c.l.b16 %v199
  %v799 = vunpack.c.l.b16 %v200
  %v800 = vunpack.c.l.b16 %v201
  %v801 = vunpack.c.l.b16 %v202
  %v802 = vunpack.c.l.b16 %v203
  %v803 = vunpack.c.l.b16 %v204
  %v804 = vunpack.c.l.b16 %v205
  %v805 = vunpack.c.l.b16 %v206
  %v806 = vunpack.c.l.b16 %v207
  %v807 = vunpack.c.l.b16 %v208
  %v808 = vunpack.c.l.b16 %v209
  %v809 = vunpack.c.l.b16 %v210
  %v810 = vunpack.c.l.b16 %v211
  %v811 = vunpack.c.l.b16 %v212
  %v812 = vunpack.c.l.b16 %v213
  %v813 = vunpack.c.l.b16 %v214
  %v814 = vunpack.c.l.b16 %v215
  %v815 = vunpack.c.l.b16 %v216
  %v816 = vunpack.c.l.b16 %v217
  %v817 = vunpack.c.l.b16 %v218
  %v818 = vunpack.c.l.b16 %v219
  %v819 = vunpack.c.l.b16 %v220
  %v820 = vunpack.c.l.b16 %v221
  %v821 = vunpack.c.l.b16 %v222
  %v822 = vunpack.c.l.b16 %v223
  %v823 = vunpack.c.l.b16 %v224
  %v824 = vunpack.c.l.b16 %v225
  %v825 = vunpack.c.l.b16 %v226
  %v826 = vunpack.c.l.b16 %v227
  %v827 = vunpack.c.l.b16 %v228
  %v828 = vunpack.c.l.b16 %v229
  %v829 = vunpack.c.l.b16 %v230
  %v830 = vunpack.c.l.b16 %v231
  %v831 = vunpack.c.l.b16 %v232
  %v832 = vunpack.c.l.b16 %v233
  %v833 = vunpack.c.l.b16 %v234
  %v834 = vunpack.c.l.b16 %v235
  %v835 = vunpack.c.l.b16 %v236
  %v836 = vunpack.c.l.b16 %v237
  %v837 = vunpack.c.l.b16 %v238
  %v838 = vunpack.c.l.b16 %v239
  %v839 = vunpack.c.l.b16 %v240
  %v840 = vunpack.c.l.b16 %v241
  %v841 = vunpack.c.l.b16 %v242
  %v842 = vunpack.c.l.b16 %v243
  %v843 = vunpack.c.l.b16 %v244
  %v844 = vunpack.c.l.b16 %v245
  %v845 = vunpack.c.l.b16 %v246
  %v846 = vunpack.c.l.b16 %v247
  %v847 = vunpack.c.l.b16 %v248
  %v848 = vunpack.c.l.b16 %v249
  %v849 = vunpack.c.l.b16 %v250
  %v850 = vunpack.c.l.b16 %v251
  %v851 = vunpack.c.l.b16 %v252
  %v852 = vunpack.c.l.b16 %v253
  %v853 = vunpack.c.l.b16 %v254
  %v854 = vunpack.c.l.b16 %v255
  %v855 = vunpack.c.l.b16 %v256
  %v856 = vunpack.c.l.b16 %v257
  %v857 = vunpack.c.l.b16 %v258
  %v858 = vunpack.c.l.b16 %v259
  %v859 = vunpack.c.l.b16 %v260
  %v860 = vunpack.c.l.b16 %v261
  %v861 = vunpack.c.l.b16 %v262
  %v862 = vunpack.c.l.b16 %v263
  %v863 = vunpack.c.l.b16 %v264
  %v864 = vunpack.c.l.b16 %v265
  %v865 = vunpack.c.l.b16 %v266
  %v866 = vunpack.c.l.b16 %v267
  %v867 = vunpack.c.l.b16 %v268
  %v868 = vunpack.c.l.b16 %v269
  %v869 = vunpack.c.l.b16 %v270
  %v870 = vunpack.c.l.b16 %v271
  %v871 = vunpack.c.l.b16 %v272
  %v872 = vunpack.c.l.b16 %v273
  %v873 = vunpack.c.l.b16 %v274
  %v874 = vunpack.c.l.b16 %v275
  %v875 = vunpack.c.l.b16 %v276
  %v876 = vunpack.c.l.b16 %v277
  %v877 = vunpack.c.l.b16 %v278
  %v878 = vunpack.c.l.b16 %v279
  %v879 = vunpack.c.l.b16 %v280
  %v880 = vunpack.c.l.b16 %v281
  %v881 = vunpack.c.l.b16 %v282
  %v882 = vunpack.c.l.b16 %v283
  %v883 = vunpack.c.l.b16 %v284
  %v884 = vunpack.c.l.b16 %v285
  %v885 = vunpack.c.l.b16 %v286
  %v886 = vpack.c.b16 %v631, %v630
  %v887 = vpack.c.b16 %v633, %v632
  %v888 = vpack.c.b16 %v635, %v634
  %v889 = vpack.c.b16 %v637, %v636
  %v890 = vpack.c.b16 %v639, %v638
  %v891 = vpack.c.b16 %v641, %v640
  %v892 = vpack.c.b16 %v643, %v642
  %v893 = vpack.c.b16 %v645, %v644
  %v894 = vpack.c.b16 %v647, %v646
  %v895 = vpack.c.b16 %v649, %v648
  %v896 = vpack.c.b16 %v651, %v650
  %v897 = vpack.c.b16 %v653, %v652
  %v898 = vpack.c.b16 %v655, %v654
  %v899 = vpack.c.b16 %v657, %v656
  %v900 = vpack.c.b16 %v659, %v658
  %v901 = vpack.c.b16 %v661, %v660
  %v902 = vpack.c.b16 %v663, %v662
  %v903 = vpack.c.b16 %v665, %v664
  %v904 = vpack.c.b16 %v667, %v666
  %v905 = vpack.c.b16 %v669, %v668
  %v906 = vpack.c.b16 %v671, %v670
  %v907 = vpack.c.b16 %v673, %v672
  %v908 = vpack.c.b16 %v675, %v674
  %v909 = vpack.c.b16 %v677, %v676
  %v910 = vpack.c.b16 %v679, %v678
  %v911 = vpack.c.b16 %v681, %v680
  %v912 = vpack.c.b16 %v683, %v682
  %v913 = vpack.c.b16 %v685, %v684
  %v914 = vpack.c.b16 %v687, %v686
  %v915 = vpack.c.b16 %v689, %v688
  %v916 = vpack.c.b16 %v691, %v690
  %v917 = vpack.c.b16 %v693, %v692
  %v918 = vpack.c.b16 %v695, %v694
  %v919 = vpack.c.b16 %v697, %v696
  %v920 = vpack.c.b16 %v699, %v698
  %v921 = vpack.c.b16 %v701, %v700
  %v922 = vpack.c.b16 %v703, %v702
  %v923 = vpack.c.b16 %v705, %v704
  %v924 = vpack.c.b16 %v707, %v706
  %v925 = vpack.c.b16 %v709, %v708
  %v926 = vpack.c.b16 %v711, %v710
  %v927 = vpack.c.b16 %v713, %v712
  %v928 = vpack.c.b16 %v715, %v714
  %v929 = vpack.c.b16 %v717, %v716
  %v930 = vpack.c.b16 %v719, %v718
  %v931 = vpack.c.b16 %v721, %v720
  %v932 = vpack.c.b16 %v723, %v722
  %v933 = vpack.c.b16 %v725, %v724
  %v934 = vpack.c.b16 %v727, %v726
  %v935 = vpack.c.b16 %v729, %v728
  %v936 = vpack.c.b16 %v731, %v730
  %v937 = vpack.c.b16 %v733, %v732
  %v938 = vpack.c.b16 %v735, %v734
  %v939 = vpack.c.b16 %v737, %v736
  %v940 = vpack.c.b16 %v739, %v738
  %v941 = vpack.c.b16 %v741, %v740
  %v942 = vpack.c.b16 %v743, %v742
  %v943 = vpack.c.b16 %v745, %v744
  %v944 = vpack.c.b16 %v747, %v746
  %v945 = vpack.c.b16 %v749, %v748
  %v946 = vpack.c.b16 %v751, %v750
  %v947 = vpack.c.b16 %v753, %v752
  %v948 = vpack.c.b16 %v755, %v754
  %v949 = vpack.c.b16 %v757, %v756
  %v950 = vpack.c.b16 %v759, %v758
  %v951 = vpack.c.b16 %v761, %v760
  %v952 = vpack.c.b16 %v763, %v762
  %v953 = vpack.c.b16 %v765, %v764
  %v954 = vpack.c.b16 %v767, %v766
  %v955 = vpack.c.b16 %v769, %v768
  %v956 = vpack.c.b16 %v771, %v770
  %v957 = vpack.c.b16 %v773, %v772
  %v958 = vpack.c.b16 %v775, %v774
  %v959 = vpack.c.b16 %v777, %v776
  %v960 = vpack.c.b16 %v779, %v778
  %v961 = vpack.c.b16 %v781, %v780
  %v962 = vpack.c.b16 %v783, %v782
  %v963 = vpack.c.b16 %v785, %v784
  %v964 = vpack.c.b16 %v787, %v786
  %v965 = vpack.c.b16 %v789, %v788
  %v966 = vpack.c.b16 %v791, %v790
  %v967 = vpack.c.b16 %v793, %v792
  %v968 = vpack.c.b16 %v795, %v794
  %v969 = vpack.c.b16 %v797, %v796
  %v970 = vpack.c.b16 %v799, %v798
  %v971 = vpack.c.b16 %v801, %v800
  %v972 = vpack.c.b16 %v803, %v802
  %v973 = vpack.c.b16 %v805, %v804
  %v974 = vpack.c.b16 %v807, %v806
  %v975 = vpack.c.b16 %v809, %v808
  %v976 = vpack.c.b16 %v811, %v810
  %v977 = vpack.c.b16 %v813, %v812
  %v978 = vpack.c.b16 %v815, %v814
  %v979 = vpack.c.b16 %v817, %v816
  %v980 = vpack.c.b16 %v819, %v818
  %v981 = vpack.c.b16 %v821, %v820
  %v982 = vpack.c.b16 %v823, %v822
  %v983 = vpack.c.b16 %v825, %v824
  %v984 = vpack.c.b16 %v827, %v826
  %v985 = vpack.c.b16 %v829, %v828
  %v986 = vpack.c.b16 %v831, %v830
  %v987 = vpack.c.b16 %v833, %v832
  %v988 = vpack.c.b16 %v835, %v834
  %v989 = vpack.c.b16 %v837, %v836
  %v990 = vpack.c.b16 %v839, %v838
  %v991 = vpack.c.b16 %v841, %v840
  %v992 = vpack.c.b16 %v843, %v842
  %v993 = vpack.c.b16 %v845, %v844
  %v994 = vpack.c.b16 %v847, %v846
  %v995 = vpack.c.b16 %v849, %v848
  %v996 = vpack.c.b16 %v851, %v850
  %v997 = vpack.c.b16 %v853, %v852
  %v998 = vpack.c.b16 %v855, %v854
  %v999 = vpack.c.b16 %v857, %v856
  %v1000 = vpack.c.b16 %v859, %v858
  %v1001 = vpack.c.b16 %v861, %v860
  %v1002 = vpack.c.b16 %v863, %v862
  %v1003 = vpack.c.b16 %v865, %v864
  %v1004 = vpack.c.b16 %v867, %v866
  %v1005 = vpack.c.b16 %v869, %v868
  %v1006 = vpack.c.b16 %v871, %v870
  %v1007 = vpack.c.b16 %v873, %v872
  %v1008 = vpack.c.b16 %v875, %v874
  %v1009 = vpack.c.b16 %v877, %v876
  %v1010 = vpack.c.b16 %v879, %v878
  %v1011 = vpack.c.b16 %v881, %v880
  %v1012 = vpack.c.b16 %v883, %v882
  %v1013 = vpack.c.b16 %v885, %v884
  %1142 = vmatprep.subr.bf16.mxu0 0
  %1143 = vmatpush1.bf16.msra.mxu0 %v886
  %1144 = vmatprep.subr.bf16.mxu0 0
  %1145 = vmatpush1.bf16.msra.mxu0 %v887
  %1146 = vmatprep.subr.bf16.mxu0 0
  %1147 = vmatpush1.bf16.msra.mxu0 %v888
  %1148 = vmatprep.subr.bf16.mxu0 0
  %1149 = vmatpush1.bf16.msra.mxu0 %v889
  %1150 = vmatprep.subr.bf16.mxu0 0
  %1151 = vmatpush1.bf16.msra.mxu0 %v890
  %1152 = vmatprep.subr.bf16.mxu0 0
  %1153 = vmatpush1.bf16.msra.mxu0 %v891
  %1154 = vmatprep.subr.bf16.mxu0 0
  %1155 = vmatpush1.bf16.msra.mxu0 %v892
  %1156 = vmatprep.subr.bf16.mxu0 0
  %1157 = vmatpush1.bf16.msra.mxu0 %v893
  %1158 = vmatprep.subr.bf16.mxu0 0
  %1159 = vmatpush1.bf16.msra.mxu0 %v894
  %1160 = vmatprep.subr.bf16.mxu0 0
  %1161 = vmatpush1.bf16.msra.mxu0 %v895
  %1162 = vmatprep.subr.bf16.mxu0 0
  %1163 = vmatpush1.bf16.msra.mxu0 %v896
  %1164 = vmatprep.subr.bf16.mxu0 0
  %1165 = vmatpush1.bf16.msra.mxu0 %v897
  %1166 = vmatprep.subr.bf16.mxu0 0
  %1167 = vmatpush1.bf16.msra.mxu0 %v898
  %1168 = vmatprep.subr.bf16.mxu0 0
  %1169 = vmatpush1.bf16.msra.mxu0 %v899
  %1170 = vmatprep.subr.bf16.mxu0 0
  %1171 = vmatpush1.bf16.msra.mxu0 %v900
  %1172 = vmatprep.subr.bf16.mxu0 0
  %1173 = vmatpush1.bf16.msra.mxu0 %v901
  %1174 = vmatprep.mubr.bf16.mxu0 %v343
  %1175 = vmatmul.mubr.bf16.gmra.mrb[0].mxu0 %v342
  %v1176 = vpop.f32.mrb[0].mxu0
  %v1177 = vadd.f32 %v292, %v1176
  %v1178 = vpop.f32.mrb[0].mxu0
  %v1179 = vpop.f32.mrb[0].mxu0
  %v1180 = vadd.f32 %v292, %v1179
  %v1181 = vpop.f32.mrb[0].mxu0
  %1182 = vdwg.mxu0
  %1183 = vmatprep.subr.bf16.mxu0 0
  %1184 = vmatpush1.bf16.msra.mxu0 %v902
  %1185 = vmatprep.subr.bf16.mxu0 0
  %1186 = vmatpush1.bf16.msra.mxu0 %v903
  %1187 = vmatprep.subr.bf16.mxu0 0
  %1188 = vmatpush1.bf16.msra.mxu0 %v904
  %1189 = vmatprep.subr.bf16.mxu0 0
  %1190 = vmatpush1.bf16.msra.mxu0 %v905
  %1191 = vmatprep.subr.bf16.mxu0 0
  %1192 = vmatpush1.bf16.msra.mxu0 %v906
  %1193 = vmatprep.subr.bf16.mxu0 0
  %1194 = vmatpush1.bf16.msra.mxu0 %v907
  %1195 = vmatprep.subr.bf16.mxu0 0
  %1196 = vmatpush1.bf16.msra.mxu0 %v908
  %1197 = vmatprep.subr.bf16.mxu0 0
  %1198 = vmatpush1.bf16.msra.mxu0 %v909
  %1199 = vmatprep.subr.bf16.mxu0 0
  %1200 = vmatpush1.bf16.msra.mxu0 %v910
  %1201 = vmatprep.subr.bf16.mxu0 0
  %1202 = vmatpush1.bf16.msra.mxu0 %v911
  %1203 = vmatprep.subr.bf16.mxu0 0
  %1204 = vmatpush1.bf16.msra.mxu0 %v912
  %1205 = vmatprep.subr.bf16.mxu0 0
  %1206 = vmatpush1.bf16.msra.mxu0 %v913
  %1207 = vmatprep.subr.bf16.mxu0 0
  %1208 = vmatpush1.bf16.msra.mxu0 %v914
  %1209 = vmatprep.subr.bf16.mxu0 0
  %1210 = vmatpush1.bf16.msra.mxu0 %v915
  %1211 = vmatprep.subr.bf16.mxu0 0
  %1212 = vmatpush1.bf16.msra.mxu0 %v916
  %1213 = vmatprep.subr.bf16.mxu0 0
  %1214 = vmatpush1.bf16.msra.mxu0 %v917
  %1215 = vmatprep.mubr.bf16.mxu0 %v345
  %1216 = vmatmul.mubr.bf16.gmra.mrb[0].mxu0 %v344
  %v1217 = vpop.f32.mrb[0].mxu0
  %v1218 = vadd.f32 %v1177, %v1217
  %v1219 = vpop.f32.mrb[0].mxu0
  %v1220 = vpop.f32.mrb[0].mxu0
  %v1221 = vadd.f32 %v1180, %v1220
  %v1222 = vpop.f32.mrb[0].mxu0
  %1223 = vdwg.mxu0
  %1224 = vmatprep.subr.bf16.mxu0 0
  %1225 = vmatpush1.bf16.msra.mxu0 %v918
  %1226 = vmatprep.subr.bf16.mxu0 0
  %1227 = vmatpush1.bf16.msra.mxu0 %v919
  %1228 = vmatprep.subr.bf16.mxu0 0
  %1229 = vmatpush1.bf16.msra.mxu0 %v920
  %1230 = vmatprep.subr.bf16.mxu0 0
  %1231 = vmatpush1.bf16.msra.mxu0 %v921
  %1232 = vmatprep.subr.bf16.mxu0 0
  %1233 = vmatpush1.bf16.msra.mxu0 %v922
  %1234 = vmatprep.subr.bf16.mxu0 0
  %1235 = vmatpush1.bf16.msra.mxu0 %v923
  %1236 = vmatprep.subr.bf16.mxu0 0
  %1237 = vmatpush1.bf16.msra.mxu0 %v924
  %1238 = vmatprep.subr.bf16.mxu0 0
  %1239 = vmatpush1.bf16.msra.mxu0 %v925
  %1240 = vmatprep.subr.bf16.mxu0 0
  %1241 = vmatpush1.bf16.msra.mxu0 %v926
  %1242 = vmatprep.subr.bf16.mxu0 0
  %1243 = vmatpush1.bf16.msra.mxu0 %v927
  %1244 = vmatprep.subr.bf16.mxu0 0
  %1245 = vmatpush1.bf16.msra.mxu0 %v928
  %1246 = vmatprep.subr.bf16.mxu0 0
  %1247 = vmatpush1.bf16.msra.mxu0 %v929
  %1248 = vmatprep.subr.bf16.mxu0 0
  %1249 = vmatpush1.bf16.msra.mxu0 %v930
  %1250 = vmatprep.subr.bf16.mxu0 0
  %1251 = vmatpush1.bf16.msra.mxu0 %v931
  %1252 = vmatprep.subr.bf16.mxu0 0
  %1253 = vmatpush1.bf16.msra.mxu0 %v932
  %1254 = vmatprep.subr.bf16.mxu0 0
  %1255 = vmatpush1.bf16.msra.mxu0 %v933
  %1256 = vmatprep.mubr.bf16.mxu0 %v347
  %1257 = vmatmul.mubr.bf16.gmra.mrb[0].mxu0 %v346
  %v1258 = vpop.f32.mrb[0].mxu0
  %v1259 = vadd.f32 %v1218, %v1258
  %v1260 = vpop.f32.mrb[0].mxu0
  %v1261 = vpop.f32.mrb[0].mxu0
  %v1262 = vadd.f32 %v1221, %v1261
  %v1263 = vpop.f32.mrb[0].mxu0
  %1264 = vdwg.mxu0
  %1265 = vmatprep.subr.bf16.mxu0 0
  %1266 = vmatpush1.bf16.msra.mxu0 %v934
  %1267 = vmatprep.subr.bf16.mxu0 0
  %1268 = vmatpush1.bf16.msra.mxu0 %v935
  %1269 = vmatprep.subr.bf16.mxu0 0
  %1270 = vmatpush1.bf16.msra.mxu0 %v936
  %1271 = vmatprep.subr.bf16.mxu0 0
  %1272 = vmatpush1.bf16.msra.mxu0 %v937
  %1273 = vmatprep.subr.bf16.mxu0 0
  %1274 = vmatpush1.bf16.msra.mxu0 %v938
  %1275 = vmatprep.subr.bf16.mxu0 0
  %1276 = vmatpush1.bf16.msra.mxu0 %v939
  %1277 = vmatprep.subr.bf16.mxu0 0
  %1278 = vmatpush1.bf16.msra.mxu0 %v940
  %1279 = vmatprep.subr.bf16.mxu0 0
  %1280 = vmatpush1.bf16.msra.mxu0 %v941
  %1281 = vmatprep.subr.bf16.mxu0 0
  %1282 = vmatpush1.bf16.msra.mxu0 %v942
  %1283 = vmatprep.subr.bf16.mxu0 0
  %1284 = vmatpush1.bf16.msra.mxu0 %v943
  %1285 = vmatprep.subr.bf16.mxu0 0
  %1286 = vmatpush1.bf16.msra.mxu0 %v944
  %1287 = vmatprep.subr.bf16.mxu0 0
  %1288 = vmatpush1.bf16.msra.mxu0 %v945
  %1289 = vmatprep.subr.bf16.mxu0 0
  %1290 = vmatpush1.bf16.msra.mxu0 %v946
  %1291 = vmatprep.subr.bf16.mxu0 0
  %1292 = vmatpush1.bf16.msra.mxu0 %v947
  %1293 = vmatprep.subr.bf16.mxu0 0
  %1294 = vmatpush1.bf16.msra.mxu0 %v948
  %1295 = vmatprep.subr.bf16.mxu0 0
  %1296 = vmatpush1.bf16.msra.mxu0 %v949
  %1297 = vmatprep.mubr.bf16.mxu0 %v349
  %1298 = vmatmul.mubr.bf16.gmra.mrb[0].mxu0 %v348
  %v1299 = vpop.f32.mrb[0].mxu0
  %v1300 = vadd.f32 %v1259, %v1299
  %v1301 = vpop.f32.mrb[0].mxu0
  %v1302 = vpop.f32.mrb[0].mxu0
  %v1303 = vadd.f32 %v1262, %v1302
  %v1304 = vpop.f32.mrb[0].mxu0
  %1305 = vdwg.mxu0
  %1306 = vmatprep.subr.bf16.mxu0 0
  %1307 = vmatpush1.bf16.msra.mxu0 %v950
  %1308 = vmatprep.subr.bf16.mxu0 0
  %1309 = vmatpush1.bf16.msra.mxu0 %v951
  %1310 = vmatprep.subr.bf16.mxu0 0
  %1311 = vmatpush1.bf16.msra.mxu0 %v952
  %1312 = vmatprep.subr.bf16.mxu0 0
  %1313 = vmatpush1.bf16.msra.mxu0 %v953
  %1314 = vmatprep.subr.bf16.mxu0 0
  %1315 = vmatpush1.bf16.msra.mxu0 %v954
  %1316 = vmatprep.subr.bf16.mxu0 0
  %1317 = vmatpush1.bf16.msra.mxu0 %v955
  %1318 = vmatprep.subr.bf16.mxu0 0
  %1319 = vmatpush1.bf16.msra.mxu0 %v956
  %1320 = vmatprep.subr.bf16.mxu0 0
  %1321 = vmatpush1.bf16.msra.mxu0 %v957
  %1322 = vmatprep.subr.bf16.mxu0 0
  %1323 = vmatpush1.bf16.msra.mxu0 %v958
  %1324 = vmatprep.subr.bf16.mxu0 0
  %1325 = vmatpush1.bf16.msra.mxu0 %v959
  %1326 = vmatprep.subr.bf16.mxu0 0
  %1327 = vmatpush1.bf16.msra.mxu0 %v960
  %1328 = vmatprep.subr.bf16.mxu0 0
  %1329 = vmatpush1.bf16.msra.mxu0 %v961
  %1330 = vmatprep.subr.bf16.mxu0 0
  %1331 = vmatpush1.bf16.msra.mxu0 %v962
  %1332 = vmatprep.subr.bf16.mxu0 0
  %1333 = vmatpush1.bf16.msra.mxu0 %v963
  %1334 = vmatprep.subr.bf16.mxu0 0
  %1335 = vmatpush1.bf16.msra.mxu0 %v964
  %1336 = vmatprep.subr.bf16.mxu0 0
  %1337 = vmatpush1.bf16.msra.mxu0 %v965
  %1338 = vmatprep.mubr.bf16.mxu0 %v351
  %1339 = vmatmul.mubr.bf16.gmra.mrb[0].mxu0 %v350
  %v1340 = vpop.f32.mrb[0].mxu0
  %v1341 = vadd.f32 %v1300, %v1340
  %v1342 = vpop.f32.mrb[0].mxu0
  %v1343 = vpop.f32.mrb[0].mxu0
  %v1344 = vadd.f32 %v1303, %v1343
  %v1345 = vpop.f32.mrb[0].mxu0
  %1346 = vdwg.mxu0
  %1347 = vmatprep.subr.bf16.mxu0 0
  %1348 = vmatpush1.bf16.msra.mxu0 %v966
  %1349 = vmatprep.subr.bf16.mxu0 0
  %1350 = vmatpush1.bf16.msra.mxu0 %v967
  %1351 = vmatprep.subr.bf16.mxu0 0
  %1352 = vmatpush1.bf16.msra.mxu0 %v968
  %1353 = vmatprep.subr.bf16.mxu0 0
  %1354 = vmatpush1.bf16.msra.mxu0 %v969
  %1355 = vmatprep.subr.bf16.mxu0 0
  %1356 = vmatpush1.bf16.msra.mxu0 %v970
  %1357 = vmatprep.subr.bf16.mxu0 0
  %1358 = vmatpush1.bf16.msra.mxu0 %v971
  %1359 = vmatprep.subr.bf16.mxu0 0
  %1360 = vmatpush1.bf16.msra.mxu0 %v972
  %1361 = vmatprep.subr.bf16.mxu0 0
  %1362 = vmatpush1.bf16.msra.mxu0 %v973
  %1363 = vmatprep.subr.bf16.mxu0 0
  %1364 = vmatpush1.bf16.msra.mxu0 %v974
  %1365 = vmatprep.subr.bf16.mxu0 0
  %1366 = vmatpush1.bf16.msra.mxu0 %v975
  %1367 = vmatprep.subr.bf16.mxu0 0
  %1368 = vmatpush1.bf16.msra.mxu0 %v976
  %1369 = vmatprep.subr.bf16.mxu0 0
  %1370 = vmatpush1.bf16.msra.mxu0 %v977
  %1371 = vmatprep.subr.bf16.mxu0 0
  %1372 = vmatpush1.bf16.msra.mxu0 %v978
  %1373 = vmatprep.subr.bf16.mxu0 0
  %1374 = vmatpush1.bf16.msra.mxu0 %v979
  %1375 = vmatprep.subr.bf16.mxu0 0
  %1376 = vmatpush1.bf16.msra.mxu0 %v980
  %1377 = vmatprep.subr.bf16.mxu0 0
  %1378 = vmatpush1.bf16.msra.mxu0 %v981
  %1379 = vmatprep.mubr.bf16.mxu0 %v353
  %1380 = vmatmul.mubr.bf16.gmra.mrb[0].mxu0 %v352
  %v1381 = vpop.f32.mrb[0].mxu0
  %v1382 = vadd.f32 %v1341, %v1381
  %v1383 = vpop.f32.mrb[0].mxu0
  %v1384 = vpop.f32.mrb[0].mxu0
  %v1385 = vadd.f32 %v1344, %v1384
  %v1386 = vpop.f32.mrb[0].mxu0
  %1387 = vdwg.mxu0
  %1388 = vmatprep.subr.bf16.mxu0 0
  %1389 = vmatpush1.bf16.msra.mxu0 %v982
  %1390 = vmatprep.subr.bf16.mxu0 0
  %1391 = vmatpush1.bf16.msra.mxu0 %v983
  %1392 = vmatprep.subr.bf16.mxu0 0
  %1393 = vmatpush1.bf16.msra.mxu0 %v984
  %1394 = vmatprep.subr.bf16.mxu0 0
  %1395 = vmatpush1.bf16.msra.mxu0 %v985
  %1396 = vmatprep.subr.bf16.mxu0 0
  %1397 = vmatpush1.bf16.msra.mxu0 %v986
  %1398 = vmatprep.subr.bf16.mxu0 0
  %1399 = vmatpush1.bf16.msra.mxu0 %v987
  %1400 = vmatprep.subr.bf16.mxu0 0
  %1401 = vmatpush1.bf16.msra.mxu0 %v988
  %1402 = vmatprep.subr.bf16.mxu0 0
  %1403 = vmatpush1.bf16.msra.mxu0 %v989
  %1404 = vmatprep.subr.bf16.mxu0 0
  %1405 = vmatpush1.bf16.msra.mxu0 %v990
  %1406 = vmatprep.subr.bf16.mxu0 0
  %1407 = vmatpush1.bf16.msra.mxu0 %v991
  %1408 = vmatprep.subr.bf16.mxu0 0
  %1409 = vmatpush1.bf16.msra.mxu0 %v992
  %1410 = vmatprep.subr.bf16.mxu0 0
  %1411 = vmatpush1.bf16.msra.mxu0 %v993
  %1412 = vmatprep.subr.bf16.mxu0 0
  %1413 = vmatpush1.bf16.msra.mxu0 %v994
  %1414 = vmatprep.subr.bf16.mxu0 0
  %1415 = vmatpush1.bf16.msra.mxu0 %v995
  %1416 = vmatprep.subr.bf16.mxu0 0
  %1417 = vmatpush1.bf16.msra.mxu0 %v996
  %1418 = vmatprep.subr.bf16.mxu0 0
  %1419 = vmatpush1.bf16.msra.mxu0 %v997
  %1420 = vmatprep.mubr.bf16.mxu0 %v355
  %1421 = vmatmul.mubr.bf16.gmra.mrb[0].mxu0 %v354
  %v1422 = vpop.f32.mrb[0].mxu0
  %v1423 = vadd.f32 %v1382, %v1422
  %v1424 = vpop.f32.mrb[0].mxu0
  %v1425 = vpop.f32.mrb[0].mxu0
  %v1426 = vadd.f32 %v1385, %v1425
  %v1427 = vpop.f32.mrb[0].mxu0
  %1428 = vdwg.mxu0
  %1429 = vmatprep.subr.bf16.mxu0 0
  %1430 = vmatpush1.bf16.msra.mxu0 %v998
  %1431 = vmatprep.subr.bf16.mxu0 0
  %1432 = vmatpush1.bf16.msra.mxu0 %v999
  %1433 = vmatprep.subr.bf16.mxu0 0
  %1434 = vmatpush1.bf16.msra.mxu0 %v1000
  %1435 = vmatprep.subr.bf16.mxu0 0
  %1436 = vmatpush1.bf16.msra.mxu0 %v1001
  %1437 = vmatprep.subr.bf16.mxu0 0
  %1438 = vmatpush1.bf16.msra.mxu0 %v1002
  %1439 = vmatprep.subr.bf16.mxu0 0
  %1440 = vmatpush1.bf16.msra.mxu0 %v1003
  %1441 = vmatprep.subr.bf16.mxu0 0
  %1442 = vmatpush1.bf16.msra.mxu0 %v1004
  %1443 = vmatprep.subr.bf16.mxu0 0
  %1444 = vmatpush1.bf16.msra.mxu0 %v1005
  %1445 = vmatprep.subr.bf16.mxu0 0
  %1446 = vmatpush1.bf16.msra.mxu0 %v1006
  %1447 = vmatprep.subr.bf16.mxu0 0
  %1448 = vmatpush1.bf16.msra.mxu0 %v1007
  %1449 = vmatprep.subr.bf16.mxu0 0
  %1450 = vmatpush1.bf16.msra.mxu0 %v1008
  %1451 = vmatprep.subr.bf16.mxu0 0
  %1452 = vmatpush1.bf16.msra.mxu0 %v1009
  %1453 = vmatprep.subr.bf16.mxu0 0
  %1454 = vmatpush1.bf16.msra.mxu0 %v1010
  %1455 = vmatprep.subr.bf16.mxu0 0
  %1456 = vmatpush1.bf16.msra.mxu0 %v1011
  %1457 = vmatprep.subr.bf16.mxu0 0
  %1458 = vmatpush1.bf16.msra.mxu0 %v1012
  %1459 = vmatprep.subr.bf16.mxu0 0
  %1460 = vmatpush1.bf16.msra.mxu0 %v1013
  %1461 = vmatprep.mubr.bf16.mxu0 %v357
  %1462 = vmatmul.mubr.bf16.gmra.mrb[0].mxu0 %v356
  %v1463 = vpop.f32.mrb[0].mxu0
  %v1464 = vadd.f32 %v1423, %v1463
  %v1465 = vpop.f32.mrb[0].mxu0
  %v1466 = vpop.f32.mrb[0].mxu0
  %v1467 = vadd.f32 %v1426, %v1466
  %v1468 = vpop.f32.mrb[0].mxu0
  %1469 = vdwg.mxu0
  %v1470 = vmax.f32 %v1464, 0.0
  %v1471 = vmax.f32 %v1467, 0.0
  %v1472 = vpack.c.bf16 %v1471, %v1470
  %v1474 = vunpack.c.l.b16 %v1472
  %v1475 = vunpack.c.h.b16 %v1472
  %v1476 = vpack.c.b16 %v1474, %v1474
  %v1477 = vpack.c.b16 %v1475, %v1475
  %1480 = vst [vmem:[%s3] sm:$0xf] %v1476
  %1481 = vst [vmem:[%s3 + $0x4] sm:$0xf] %v1477
  // Predicated region
  $region14: #{net2_forward.14} parent=0 // pred_check
    _
  $region15: #{net2_forward.14} parent=0 // pred_check_branch
    %1483 = sbr.rel (0) target = $region17
  $region16: #{net2_forward.14} parent=0 // pred_region
    _
  $region17: #{net2_forward.14} parent=0 // pred_fallthru
    _
  // Predicated region
  $region18: #{net2_forward.14} parent=0 // pred_check
    _
  $region19: #{net2_forward.14} parent=0 // pred_check_branch
    %1485 = sbr.rel (0) target = $region21
  $region20: #{net2_forward.14} parent=0 // pred_region
    _
  $region21: #{net2_forward.14} parent=0 // pred_fallthru
    _

</llo_original>
